<compile_context>
chip_gen: v5e
topology: v5e:2x2
jax: 0.10.0
libtpu: 0.0.40
codegen_flags: <defaults>
</compile_context>

<pallas_src>
import functools
import math

import jax
import jax.numpy as jnp
from jax.experimental import pallas as pl
from jax.experimental.pallas import tpu as pltpu


# -----------------------------------------------------------------------------
# Pallas kernels
# -----------------------------------------------------------------------------
def pointnet_layer_kernel(x_ref, w1_ref, b1_ref, w2_ref, b2_ref, o_ref):
    """One node tile of a PointNetLayer, channels-major.

    x_ref : [K, D, T]   message inputs (T nodes on lanes, D channels on sublanes)
    w1_ref: [H, D], b1_ref: [H, 1]   first Linear of the message MLP
    w2_ref: [H, H], b2_ref: [H, 1]   second Linear of the message MLP
    o_ref : [H, T]      relu( max_k( W2 @ relu(W1 @ x[k] + b1) + b2 ) )
    """
    w1 = w1_ref[...]
    b1 = b1_ref[...]
    w2 = w2_ref[...]
    b2 = b2_ref[...]
    num_k = x_ref.shape[0]

    acc = None
    for k in range(num_k):                      # static unroll, K = 16
        xk = x_ref[k]                           # [D, T] leading-axis slice (free)
        h1 = jnp.dot(w1, xk, preferred_element_type=jnp.float32) + b1
        h1 = jnp.maximum(h1, 0.0)               # ReLU inside the message MLP
        h2 = jnp.dot(w2, h1, preferred_element_type=jnp.float32) + b2
        acc = h2 if acc is None else jnp.maximum(acc, h2)   # max aggregation

    # Fused post-aggregation ReLU (h = h.relu() in the PyTorch forward).
    o_ref[...] = jnp.maximum(acc, 0.0).astype(o_ref.dtype)


def pool_classify_kernel(h_ref, wc_ref, bc_ref, o_ref):
    """global_max_pool over points per graph, then Linear(C, 1).

    h_ref : [C, B, P]   channels-major activations, P points per graph
    wc_ref: [1, C], bc_ref: [1, 1]
    o_ref : [1, B]
    """
    pooled = jnp.max(h_ref[...], axis=-1)                       # [C, B]
    o_ref[...] = (jnp.dot(wc_ref[...], pooled, preferred_element_type=jnp.float32)
                  + bc_ref[...]).astype(o_ref.dtype)


# -----------------------------------------------------------------------------
# Wrappers calling pallas_call
# -----------------------------------------------------------------------------
def pointnet_layer(msg_kdn, w1, b1, w2, b2, *, tile_n=512):
    """msg_kdn: [K, D, N] channels-major message inputs -> [H, N] activations."""
    k, d, n = msg_kdn.shape
    h = w1.shape[0]

    # Large, lane-aligned node tile (tiny tiles are pure launch/DMA overhead).
    # Tail nodes are zero-padded and sliced off afterwards.
    if n <= tile_n:
        tile = n
        n_pad = n
    else:
        tile = max(128, (tile_n // 128) * 128)
        n_pad = ((n + tile - 1) // tile) * tile
        if n_pad != n:
            msg_kdn = jnp.pad(msg_kdn, ((0, 0), (0, 0), (0, n_pad - n)))

    grid = (n_pad // tile,)
    flops = 2 * k * n_pad * (d * h + h * h)
    bytes_accessed = 4 * (k * d * n_pad + h * n_pad + d * h + h * h + 2 * h)

    out = pl.pallas_call(
        pointnet_layer_kernel,
        out_shape=jax.ShapeDtypeStruct((h, n_pad), jnp.float32),
        grid=grid,
        in_specs=[
            pl.BlockSpec((k, d, tile), lambda i: (0, 0, i)),
            pl.BlockSpec((h, d), lambda i: (0, 0)),
            pl.BlockSpec((h, 1), lambda i: (0, 0)),
            pl.BlockSpec((h, h), lambda i: (0, 0)),
            pl.BlockSpec((h, 1), lambda i: (0, 0)),
        ],
        out_specs=pl.BlockSpec((h, tile), lambda i: (0, i)),
        compiler_params=pltpu.CompilerParams(
            dimension_semantics=("parallel",),      # shards across TCs on v7x
            vmem_limit_bytes=32 * 1024 * 1024,      # explicit, safe on v5e/v6e/v7x
        ),
        cost_estimate=pl.CostEstimate(flops=flops, transcendentals=0,
                                      bytes_accessed=bytes_accessed),
    )(msg_kdn, w1, b1, w2, b2)
    return out[:, :n] if n_pad != n else out


def pool_and_classify(h_cbp, wc, bc):
    """h_cbp: [C, B, P] -> logits [B]."""
    c, b, p = h_cbp.shape
    out = pl.pallas_call(
        pool_classify_kernel,
        out_shape=jax.ShapeDtypeStruct((1, b), jnp.float32),
        # gridless: all operands are tiny and fully VMEM-resident
    )(h_cbp, wc, bc)
    return out[0]


# -----------------------------------------------------------------------------
# JAX glue: kNN graph, channels-major neighbor gather, parameter init
# -----------------------------------------------------------------------------
def knn_graph(pos, batch, k):
    """Dense kNN with self-loops (loop=True): [N, k] neighbor indices.
    Requires every graph to have >= k points (true here)."""
    d2 = jnp.sum((pos[:, None, :] - pos[None, :, :]) ** 2, axis=-1)      # [N, N]
    d2 = jnp.where(batch[:, None] != batch[None, :], jnp.inf, d2)
    _, nbr = jax.lax.top_k(-d2, k)                                        # [N, k]
    return nbr


# TODO(synk): kNN (top_k) and the neighbor gather stay in XLA glue; an in-kernel
# dynamic/DMA gather (scalar-prefetched nbr) would avoid materializing the
# K-expanded [K, D, N] message tensor in HBM for large N.
def gather_msg_kdn(h_cm, pos_cm, nbr_t):
    """out[k, :, n] = [h[:, j], pos[:, j] - pos[:, n]] with j = nbr_t[k, n].

    h_cm [C, N], pos_cm [3, N], nbr_t [K, N]  ->  [K, C+3, N]
    (already in the channels-major layout the layer kernel consumes)."""
    c = h_cm.shape[0]
    feat = jnp.concatenate([h_cm, pos_cm], axis=0)                        # [C+3, N]
    g = jax.vmap(lambda idx: jnp.take(feat, idx, axis=1))(nbr_t)          # [K, C+3, N]
    rel = g[:, c:, :] - pos_cm[None, :, :]                                # pos_j - pos_i
    return jnp.concatenate([g[:, :c, :], rel], axis=1)                    # [K, C+3, N]


def linear_params(key, fan_in, fan_out):
    """torch.nn.Linear-style uniform init; weight stored [out, in], bias [out, 1]."""
    kw, kb = jax.random.split(key)
    bound = 1.0 / math.sqrt(fan_in)
    w = jax.random.uniform(kw, (fan_out, fan_in), jnp.float32, -bound, bound)
    b = jax.random.uniform(kb, (fan_out, 1), jnp.float32, -bound, bound)
    return w, b


def init_pointnet_params(key):
    ks = jax.random.split(key, 5)
    p = {}
    p["c1_w1"], p["c1_b1"] = linear_params(ks[0], 3 + 3, 32)    # conv1 Linear(6, 32)
    p["c1_w2"], p["c1_b2"] = linear_params(ks[1], 32, 32)       # conv1 Linear(32, 32)
    p["c2_w1"], p["c2_b1"] = linear_params(ks[2], 32 + 3, 32)   # conv2 Linear(35, 32)
    p["c2_w2"], p["c2_b2"] = linear_params(ks[3], 32, 32)       # conv2 Linear(32, 32)
    p["cls_w"], p["cls_b"] = linear_params(ks[4], 32, 1)        # classifier Linear(32, 1)
    return p


@functools.partial(jax.jit, static_argnames=("k", "points_per_graph", "tile_n"))
def pointnet_forward(params, pos, batch, *, k=16, points_per_graph=32, tile_n=512):
    n = pos.shape[0]
    assert n % points_per_graph == 0
    nbr_t = knn_graph(pos, batch, k).T                           # [K, N]
    pos_cm = pos.T                                               # [3, N] channels-major

    # conv1 (h = pos); post-ReLU fused into the kernel
    x1 = gather_msg_kdn(pos_cm, pos_cm, nbr_t)                   # [K, 6, N]
    h = pointnet_layer(x1, params["c1_w1"], params["c1_b1"],
                       params["c1_w2"], params["c1_b2"], tile_n=tile_n)   # [32, N]

    # conv2; post-ReLU fused into the kernel
    x2 = gather_msg_kdn(h, pos_cm, nbr_t)                        # [K, 35, N]
    h = pointnet_layer(x2, params["c2_w1"], params["c2_b1"],
                       params["c2_w2"], params["c2_b2"], tile_n=tile_n)   # [32, N]

    # global_max_pool + classifier (equal-sized graphs -> [C, B, P])
    b = n // points_per_graph
    h_cbp = h.reshape(h.shape[0], b, points_per_graph)
    return pool_and_classify(h_cbp, params["cls_w"], params["cls_b"])     # [B]


# -----------------------------------------------------------------------------
# Pure-JAX reference (sanity check of the Pallas kernels)
# -----------------------------------------------------------------------------
def reference_forward(params, pos, batch, *, k=16, points_per_graph=32):
    nbr = knn_graph(pos, batch, k)                               # [N, K]

    def layer(h, w1, b1, w2, b2):
        msg = jnp.concatenate([h[nbr], pos[nbr] - pos[:, None, :]], axis=-1)  # [N,K,D]
        z1 = jnp.maximum(msg @ w1.T + b1[:, 0], 0.0)
        z2 = z1 @ w2.T + b2[:, 0]
        return jnp.maximum(jnp.max(z2, axis=1), 0.0)             # max agg + trailing ReLU

    h = layer(pos, params["c1_w1"], params["c1_b1"], params["c1_w2"], params["c1_b2"])
    h = layer(h, params["c2_w1"], params["c2_b1"], params["c2_w2"], params["c2_b2"])
    b = h.shape[0] // points_per_graph
    pooled = jnp.max(h.reshape(b, points_per_graph, -1), axis=1)
    return (pooled @ params["cls_w"].T + params["cls_b"][:, 0])[:, 0]


# -----------------------------------------------------------------------------
if __name__ == "__main__":
    key = jax.random.PRNGKey(0)
    k_pos, k_params = jax.random.split(key)

    num_graphs = 2
    points_per_graph = 32          # >= k so every node has 16 same-graph neighbors
    n = num_graphs * points_per_graph

    pos = jax.random.normal(k_pos, (n, 3), jnp.float32)
    batch = jnp.repeat(jnp.arange(num_graphs, dtype=jnp.int32), points_per_graph)

    params = init_pointnet_params(k_params)

    out = pointnet_forward(params, pos, batch, k=16,
                           points_per_graph=points_per_graph)
    out = jax.block_until_ready(out)

    ref = reference_forward(params, pos, batch, k=16,
                            points_per_graph=points_per_graph)
    assert out.shape == (num_graphs,)
    assert jnp.allclose(out, ref, atol=1e-3, rtol=1e-3), (out, ref)

    print("KERNEL_OK")
</pallas_src>

<mosaic_0001>
module attributes {stable_mosaic.version = 11 : i64} {
  func.func @pointnet_layer_kernel(%arg0: i32, %arg1: memref<16x6x64xf32, #tpu.memory_space<vmem>>, %arg2: memref<32x6xf32, #tpu.memory_space<vmem>>, %arg3: memref<32x1xf32, #tpu.memory_space<vmem>>, %arg4: memref<32x32xf32, #tpu.memory_space<vmem>>, %arg5: memref<32x1xf32, #tpu.memory_space<vmem>>, %arg6: memref<32x64xf32, #tpu.memory_space<vmem>>) attributes {dimension_semantics = [#tpu.dimension_semantics<parallel>], iteration_bounds = array<i64: 1>, scalar_prefetch = 0 : i64, scratch_operands = 0 : i64, tpu.core_type = #tpu.core_type<tc>, window_params = [{transform_indices = @transform_0, window_bounds = array<i64: 16, 6, 64>}, {pipeline_mode = #tpu.pipeline_mode<synchronous>, transform_indices = @transform_1, window_bounds = array<i64: 32, 6>}, {pipeline_mode = #tpu.pipeline_mode<synchronous>, transform_indices = @transform_2, window_bounds = array<i64: 32, 1>}, {pipeline_mode = #tpu.pipeline_mode<synchronous>, transform_indices = @transform_3, window_bounds = array<i64: 32, 32>}, {pipeline_mode = #tpu.pipeline_mode<synchronous>, transform_indices = @transform_4, window_bounds = array<i64: 32, 1>}, {transform_indices = @transform_5, window_bounds = array<i64: 32, 64>}]} {
    %c0 = arith.constant 0 : index
    %c0_0 = arith.constant 0 : index
    %0 = vector.load %arg2[%c0, %c0_0] : memref<32x6xf32, #tpu.memory_space<vmem>>, vector<32x6xf32>
    %c0_1 = arith.constant 0 : index
    %c0_2 = arith.constant 0 : index
    %1 = vector.load %arg3[%c0_1, %c0_2] : memref<32x1xf32, #tpu.memory_space<vmem>>, vector<32x1xf32>
    %c0_3 = arith.constant 0 : index
    %c0_4 = arith.constant 0 : index
    %2 = vector.load %arg4[%c0_3, %c0_4] : memref<32x32xf32, #tpu.memory_space<vmem>>, vector<32x32xf32>
    %c0_5 = arith.constant 0 : index
    %c0_6 = arith.constant 0 : index
    %3 = vector.load %arg5[%c0_5, %c0_6] : memref<32x1xf32, #tpu.memory_space<vmem>>, vector<32x1xf32>
    %c0_7 = arith.constant 0 : index
    %c0_8 = arith.constant 0 : index
    %c0_9 = arith.constant 0 : index
    %4 = vector.load %arg1[%c0_7, %c0_8, %c0_9] : memref<16x6x64xf32, #tpu.memory_space<vmem>>, vector<1x6x64xf32>
    %5 = vector.shape_cast %4 : vector<1x6x64xf32> to vector<6x64xf32>
    %cst = arith.constant dense<0.000000e+00> : vector<32x64xf32>
    %6 = tpu.matmul %0, %5, %cst {dimension_numbers = #tpu.dot_dimension_numbers<[1], [0], [0], [1], [0, 0, 1, 1], [], []>} : vector<32x6xf32>, vector<6x64xf32>, vector<32x64xf32> -> vector<32x64xf32>
    %7 = vector.broadcast %1 : vector<32x1xf32> to vector<32x64xf32>
    %8 = arith.addf %6, %7 : vector<32x64xf32>
    %cst_10 = arith.constant 0.000000e+00 : f32
    %9 = vector.broadcast %cst_10 : f32 to vector<32x64xf32>
    %10 = arith.maximumf %8, %9 : vector<32x64xf32>
    %cst_11 = arith.constant dense<0.000000e+00> : vector<32x64xf32>
    %11 = tpu.matmul %2, %10, %cst_11 {dimension_numbers = #tpu.dot_dimension_numbers<[1], [0], [0], [1], [0, 0, 1, 1], [], []>} : vector<32x32xf32>, vector<32x64xf32>, vector<32x64xf32> -> vector<32x64xf32>
    %12 = vector.broadcast %3 : vector<32x1xf32> to vector<32x64xf32>
    %13 = arith.addf %11, %12 : vector<32x64xf32>
    %c1 = arith.constant 1 : index
    %c0_12 = arith.constant 0 : index
    %c0_13 = arith.constant 0 : index
    %14 = vector.load %arg1[%c1, %c0_12, %c0_13] : memref<16x6x64xf32, #tpu.memory_space<vmem>>, vector<1x6x64xf32>
    %15 = vector.shape_cast %14 : vector<1x6x64xf32> to vector<6x64xf32>
    %cst_14 = arith.constant dense<0.000000e+00> : vector<32x64xf32>
    %16 = tpu.matmul %0, %15, %cst_14 {dimension_numbers = #tpu.dot_dimension_numbers<[1], [0], [0], [1], [0, 0, 1, 1], [], []>} : vector<32x6xf32>, vector<6x64xf32>, vector<32x64xf32> -> vector<32x64xf32>
    %17 = vector.broadcast %1 : vector<32x1xf32> to vector<32x64xf32>
    %18 = arith.addf %16, %17 : vector<32x64xf32>
    %cst_15 = arith.constant 0.000000e+00 : f32
    %19 = vector.broadcast %cst_15 : f32 to vector<32x64xf32>
    %20 = arith.maximumf %18, %19 : vector<32x64xf32>
    %cst_16 = arith.constant dense<0.000000e+00> : vector<32x64xf32>
    %21 = tpu.matmul %2, %20, %cst_16 {dimension_numbers = #tpu.dot_dimension_numbers<[1], [0], [0], [1], [0, 0, 1, 1], [], []>} : vector<32x32xf32>, vector<32x64xf32>, vector<32x64xf32> -> vector<32x64xf32>
    %22 = vector.broadcast %3 : vector<32x1xf32> to vector<32x64xf32>
    %23 = arith.addf %21, %22 : vector<32x64xf32>
    %24 = arith.maximumf %13, %23 : vector<32x64xf32>
    %c2 = arith.constant 2 : index
    %c0_17 = arith.constant 0 : index
    %c0_18 = arith.constant 0 : index
    %25 = vector.load %arg1[%c2, %c0_17, %c0_18] : memref<16x6x64xf32, #tpu.memory_space<vmem>>, vector<1x6x64xf32>
    %26 = vector.shape_cast %25 : vector<1x6x64xf32> to vector<6x64xf32>
    %cst_19 = arith.constant dense<0.000000e+00> : vector<32x64xf32>
    %27 = tpu.matmul %0, %26, %cst_19 {dimension_numbers = #tpu.dot_dimension_numbers<[1], [0], [0], [1], [0, 0, 1, 1], [], []>} : vector<32x6xf32>, vector<6x64xf32>, vector<32x64xf32> -> vector<32x64xf32>
    %28 = vector.broadcast %1 : vector<32x1xf32> to vector<32x64xf32>
    %29 = arith.addf %27, %28 : vector<32x64xf32>
    %cst_20 = arith.constant 0.000000e+00 : f32
    %30 = vector.broadcast %cst_20 : f32 to vector<32x64xf32>
    %31 = arith.maximumf %29, %30 : vector<32x64xf32>
    %cst_21 = arith.constant dense<0.000000e+00> : vector<32x64xf32>
    %32 = tpu.matmul %2, %31, %cst_21 {dimension_numbers = #tpu.dot_dimension_numbers<[1], [0], [0], [1], [0, 0, 1, 1], [], []>} : vector<32x32xf32>, vector<32x64xf32>, vector<32x64xf32> -> vector<32x64xf32>
    %33 = vector.broadcast %3 : vector<32x1xf32> to vector<32x64xf32>
    %34 = arith.addf %32, %33 : vector<32x64xf32>
    %35 = arith.maximumf %24, %34 : vector<32x64xf32>
    %c3 = arith.constant 3 : index
    %c0_22 = arith.constant 0 : index
    %c0_23 = arith.constant 0 : index
    %36 = vector.load %arg1[%c3, %c0_22, %c0_23] : memref<16x6x64xf32, #tpu.memory_space<vmem>>, vector<1x6x64xf32>
    %37 = vector.shape_cast %36 : vector<1x6x64xf32> to vector<6x64xf32>
    %cst_24 = arith.constant dense<0.000000e+00> : vector<32x64xf32>
    %38 = tpu.matmul %0, %37, %cst_24 {dimension_numbers = #tpu.dot_dimension_numbers<[1], [0], [0], [1], [0, 0, 1, 1], [], []>} : vector<32x6xf32>, vector<6x64xf32>, vector<32x64xf32> -> vector<32x64xf32>
    %39 = vector.broadcast %1 : vector<32x1xf32> to vector<32x64xf32>
    %40 = arith.addf %38, %39 : vector<32x64xf32>
    %cst_25 = arith.constant 0.000000e+00 : f32
    %41 = vector.broadcast %cst_25 : f32 to vector<32x64xf32>
    %42 = arith.maximumf %40, %41 : vector<32x64xf32>
    %cst_26 = arith.constant dense<0.000000e+00> : vector<32x64xf32>
    %43 = tpu.matmul %2, %42, %cst_26 {dimension_numbers = #tpu.dot_dimension_numbers<[1], [0], [0], [1], [0, 0, 1, 1], [], []>} : vector<32x32xf32>, vector<32x64xf32>, vector<32x64xf32> -> vector<32x64xf32>
    %44 = vector.broadcast %3 : vector<32x1xf32> to vector<32x64xf32>
    %45 = arith.addf %43, %44 : vector<32x64xf32>
    %46 = arith.maximumf %35, %45 : vector<32x64xf32>
    %c4 = arith.constant 4 : index
    %c0_27 = arith.constant 0 : index
    %c0_28 = arith.constant 0 : index
    %47 = vector.load %arg1[%c4, %c0_27, %c0_28] : memref<16x6x64xf32, #tpu.memory_space<vmem>>, vector<1x6x64xf32>
    %48 = vector.shape_cast %47 : vector<1x6x64xf32> to vector<6x64xf32>
    %cst_29 = arith.constant dense<0.000000e+00> : vector<32x64xf32>
    %49 = tpu.matmul %0, %48, %cst_29 {dimension_numbers = #tpu.dot_dimension_numbers<[1], [0], [0], [1], [0, 0, 1, 1], [], []>} : vector<32x6xf32>, vector<6x64xf32>, vector<32x64xf32> -> vector<32x64xf32>
    %50 = vector.broadcast %1 : vector<32x1xf32> to vector<32x64xf32>
    %51 = arith.addf %49, %50 : vector<32x64xf32>
    %cst_30 = arith.constant 0.000000e+00 : f32
    %52 = vector.broadcast %cst_30 : f32 to vector<32x64xf32>
    %53 = arith.maximumf %51, %52 : vector<32x64xf32>
    %cst_31 = arith.constant dense<0.000000e+00> : vector<32x64xf32>
    %54 = tpu.matmul %2, %53, %cst_31 {dimension_numbers = #tpu.dot_dimension_numbers<[1], [0], [0], [1], [0, 0, 1, 1], [], []>} : vector<32x32xf32>, vector<32x64xf32>, vector<32x64xf32> -> vector<32x64xf32>
    %55 = vector.broadcast %3 : vector<32x1xf32> to vector<32x64xf32>
    %56 = arith.addf %54, %55 : vector<32x64xf32>
    %57 = arith.maximumf %46, %56 : vector<32x64xf32>
    %c5 = arith.constant 5 : index
    %c0_32 = arith.constant 0 : index
    %c0_33 = arith.constant 0 : index
    %58 = vector.load %arg1[%c5, %c0_32, %c0_33] : memref<16x6x64xf32, #tpu.memory_space<vmem>>, vector<1x6x64xf32>
    %59 = vector.shape_cast %58 : vector<1x6x64xf32> to vector<6x64xf32>
    %cst_34 = arith.constant dense<0.000000e+00> : vector<32x64xf32>
    %60 = tpu.matmul %0, %59, %cst_34 {dimension_numbers = #tpu.dot_dimension_numbers<[1], [0], [0], [1], [0, 0, 1, 1], [], []>} : vector<32x6xf32>, vector<6x64xf32>, vector<32x64xf32> -> vector<32x64xf32>
    %61 = vector.broadcast %1 : vector<32x1xf32> to vector<32x64xf32>
    %62 = arith.addf %60, %61 : vector<32x64xf32>
    %cst_35 = arith.constant 0.000000e+00 : f32
    %63 = vector.broadcast %cst_35 : f32 to vector<32x64xf32>
    %64 = arith.maximumf %62, %63 : vector<32x64xf32>
    %cst_36 = arith.constant dense<0.000000e+00> : vector<32x64xf32>
    %65 = tpu.matmul %2, %64, %cst_36 {dimension_numbers = #tpu.dot_dimension_numbers<[1], [0], [0], [1], [0, 0, 1, 1], [], []>} : vector<32x32xf32>, vector<32x64xf32>, vector<32x64xf32> -> vector<32x64xf32>
    %66 = vector.broadcast %3 : vector<32x1xf32> to vector<32x64xf32>
    %67 = arith.addf %65, %66 : vector<32x64xf32>
    %68 = arith.maximumf %57, %67 : vector<32x64xf32>
    %c6 = arith.constant 6 : index
    %c0_37 = arith.constant 0 : index
    %c0_38 = arith.constant 0 : index
    %69 = vector.load %arg1[%c6, %c0_37, %c0_38] : memref<16x6x64xf32, #tpu.memory_space<vmem>>, vector<1x6x64xf32>
    %70 = vector.shape_cast %69 : vector<1x6x64xf32> to vector<6x64xf32>
    %cst_39 = arith.constant dense<0.000000e+00> : vector<32x64xf32>
    %71 = tpu.matmul %0, %70, %cst_39 {dimension_numbers = #tpu.dot_dimension_numbers<[1], [0], [0], [1], [0, 0, 1, 1], [], []>} : vector<32x6xf32>, vector<6x64xf32>, vector<32x64xf32> -> vector<32x64xf32>
    %72 = vector.broadcast %1 : vector<32x1xf32> to vector<32x64xf32>
    %73 = arith.addf %71, %72 : vector<32x64xf32>
    %cst_40 = arith.constant 0.000000e+00 : f32
    %74 = vector.broadcast %cst_40 : f32 to vector<32x64xf32>
    %75 = arith.maximumf %73, %74 : vector<32x64xf32>
    %cst_41 = arith.constant dense<0.000000e+00> : vector<32x64xf32>
    %76 = tpu.matmul %2, %75, %cst_41 {dimension_numbers = #tpu.dot_dimension_numbers<[1], [0], [0], [1], [0, 0, 1, 1], [], []>} : vector<32x32xf32>, vector<32x64xf32>, vector<32x64xf32> -> vector<32x64xf32>
    %77 = vector.broadcast %3 : vector<32x1xf32> to vector<32x64xf32>
    %78 = arith.addf %76, %77 : vector<32x64xf32>
    %79 = arith.maximumf %68, %78 : vector<32x64xf32>
    %c7 = arith.constant 7 : index
    %c0_42 = arith.constant 0 : index
    %c0_43 = arith.constant 0 : index
    %80 = vector.load %arg1[%c7, %c0_42, %c0_43] : memref<16x6x64xf32, #tpu.memory_space<vmem>>, vector<1x6x64xf32>
    %81 = vector.shape_cast %80 : vector<1x6x64xf32> to vector<6x64xf32>
    %cst_44 = arith.constant dense<0.000000e+00> : vector<32x64xf32>
    %82 = tpu.matmul %0, %81, %cst_44 {dimension_numbers = #tpu.dot_dimension_numbers<[1], [0], [0], [1], [0, 0, 1, 1], [], []>} : vector<32x6xf32>, vector<6x64xf32>, vector<32x64xf32> -> vector<32x64xf32>
    %83 = vector.broadcast %1 : vector<32x1xf32> to vector<32x64xf32>
    %84 = arith.addf %82, %83 : vector<32x64xf32>
    %cst_45 = arith.constant 0.000000e+00 : f32
    %85 = vector.broadcast %cst_45 : f32 to vector<32x64xf32>
    %86 = arith.maximumf %84, %85 : vector<32x64xf32>
    %cst_46 = arith.constant dense<0.000000e+00> : vector<32x64xf32>
    %87 = tpu.matmul %2, %86, %cst_46 {dimension_numbers = #tpu.dot_dimension_numbers<[1], [0], [0], [1], [0, 0, 1, 1], [], []>} : vector<32x32xf32>, vector<32x64xf32>, vector<32x64xf32> -> vector<32x64xf32>
    %88 = vector.broadcast %3 : vector<32x1xf32> to vector<32x64xf32>
    %89 = arith.addf %87, %88 : vector<32x64xf32>
    %90 = arith.maximumf %79, %89 : vector<32x64xf32>
    %c8 = arith.constant 8 : index
    %c0_47 = arith.constant 0 : index
    %c0_48 = arith.constant 0 : index
    %91 = vector.load %arg1[%c8, %c0_47, %c0_48] : memref<16x6x64xf32, #tpu.memory_space<vmem>>, vector<1x6x64xf32>
    %92 = vector.shape_cast %91 : vector<1x6x64xf32> to vector<6x64xf32>
    %cst_49 = arith.constant dense<0.000000e+00> : vector<32x64xf32>
    %93 = tpu.matmul %0, %92, %cst_49 {dimension_numbers = #tpu.dot_dimension_numbers<[1], [0], [0], [1], [0, 0, 1, 1], [], []>} : vector<32x6xf32>, vector<6x64xf32>, vector<32x64xf32> -> vector<32x64xf32>
    %94 = vector.broadcast %1 : vector<32x1xf32> to vector<32x64xf32>
    %95 = arith.addf %93, %94 : vector<32x64xf32>
    %cst_50 = arith.constant 0.000000e+00 : f32
    %96 = vector.broadcast %cst_50 : f32 to vector<32x64xf32>
    %97 = arith.maximumf %95, %96 : vector<32x64xf32>
    %cst_51 = arith.constant dense<0.000000e+00> : vector<32x64xf32>
    %98 = tpu.matmul %2, %97, %cst_51 {dimension_numbers = #tpu.dot_dimension_numbers<[1], [0], [0], [1], [0, 0, 1, 1], [], []>} : vector<32x32xf32>, vector<32x64xf32>, vector<32x64xf32> -> vector<32x64xf32>
    %99 = vector.broadcast %3 : vector<32x1xf32> to vector<32x64xf32>
    %100 = arith.addf %98, %99 : vector<32x64xf32>
    %101 = arith.maximumf %90, %100 : vector<32x64xf32>
    %c9 = arith.constant 9 : index
    %c0_52 = arith.constant 0 : index
    %c0_53 = arith.constant 0 : index
    %102 = vector.load %arg1[%c9, %c0_52, %c0_53] : memref<16x6x64xf32, #tpu.memory_space<vmem>>, vector<1x6x64xf32>
    %103 = vector.shape_cast %102 : vector<1x6x64xf32> to vector<6x64xf32>
    %cst_54 = arith.constant dense<0.000000e+00> : vector<32x64xf32>
    %104 = tpu.matmul %0, %103, %cst_54 {dimension_numbers = #tpu.dot_dimension_numbers<[1], [0], [0], [1], [0, 0, 1, 1], [], []>} : vector<32x6xf32>, vector<6x64xf32>, vector<32x64xf32> -> vector<32x64xf32>
    %105 = vector.broadcast %1 : vector<32x1xf32> to vector<32x64xf32>
    %106 = arith.addf %104, %105 : vector<32x64xf32>
    %cst_55 = arith.constant 0.000000e+00 : f32
    %107 = vector.broadcast %cst_55 : f32 to vector<32x64xf32>
    %108 = arith.maximumf %106, %107 : vector<32x64xf32>
    %cst_56 = arith.constant dense<0.000000e+00> : vector<32x64xf32>
    %109 = tpu.matmul %2, %108, %cst_56 {dimension_numbers = #tpu.dot_dimension_numbers<[1], [0], [0], [1], [0, 0, 1, 1], [], []>} : vector<32x32xf32>, vector<32x64xf32>, vector<32x64xf32> -> vector<32x64xf32>
    %110 = vector.broadcast %3 : vector<32x1xf32> to vector<32x64xf32>
    %111 = arith.addf %109, %110 : vector<32x64xf32>
    %112 = arith.maximumf %101, %111 : vector<32x64xf32>
    %c10 = arith.constant 10 : index
    %c0_57 = arith.constant 0 : index
    %c0_58 = arith.constant 0 : index
    %113 = vector.load %arg1[%c10, %c0_57, %c0_58] : memref<16x6x64xf32, #tpu.memory_space<vmem>>, vector<1x6x64xf32>
    %114 = vector.shape_cast %113 : vector<1x6x64xf32> to vector<6x64xf32>
    %cst_59 = arith.constant dense<0.000000e+00> : vector<32x64xf32>
    %115 = tpu.matmul %0, %114, %cst_59 {dimension_numbers = #tpu.dot_dimension_numbers<[1], [0], [0], [1], [0, 0, 1, 1], [], []>} : vector<32x6xf32>, vector<6x64xf32>, vector<32x64xf32> -> vector<32x64xf32>
    %116 = vector.broadcast %1 : vector<32x1xf32> to vector<32x64xf32>
    %117 = arith.addf %115, %116 : vector<32x64xf32>
    %cst_60 = arith.constant 0.000000e+00 : f32
    %118 = vector.broadcast %cst_60 : f32 to vector<32x64xf32>
    %119 = arith.maximumf %117, %118 : vector<32x64xf32>
    %cst_61 = arith.constant dense<0.000000e+00> : vector<32x64xf32>
    %120 = tpu.matmul %2, %119, %cst_61 {dimension_numbers = #tpu.dot_dimension_numbers<[1], [0], [0], [1], [0, 0, 1, 1], [], []>} : vector<32x32xf32>, vector<32x64xf32>, vector<32x64xf32> -> vector<32x64xf32>
    %121 = vector.broadcast %3 : vector<32x1xf32> to vector<32x64xf32>
    %122 = arith.addf %120, %121 : vector<32x64xf32>
    %123 = arith.maximumf %112, %122 : vector<32x64xf32>
    %c11 = arith.constant 11 : index
    %c0_62 = arith.constant 0 : index
    %c0_63 = arith.constant 0 : index
    %124 = vector.load %arg1[%c11, %c0_62, %c0_63] : memref<16x6x64xf32, #tpu.memory_space<vmem>>, vector<1x6x64xf32>
    %125 = vector.shape_cast %124 : vector<1x6x64xf32> to vector<6x64xf32>
    %cst_64 = arith.constant dense<0.000000e+00> : vector<32x64xf32>
    %126 = tpu.matmul %0, %125, %cst_64 {dimension_numbers = #tpu.dot_dimension_numbers<[1], [0], [0], [1], [0, 0, 1, 1], [], []>} : vector<32x6xf32>, vector<6x64xf32>, vector<32x64xf32> -> vector<32x64xf32>
    %127 = vector.broadcast %1 : vector<32x1xf32> to vector<32x64xf32>
    %128 = arith.addf %126, %127 : vector<32x64xf32>
    %cst_65 = arith.constant 0.000000e+00 : f32
    %129 = vector.broadcast %cst_65 : f32 to vector<32x64xf32>
    %130 = arith.maximumf %128, %129 : vector<32x64xf32>
    %cst_66 = arith.constant dense<0.000000e+00> : vector<32x64xf32>
    %131 = tpu.matmul %2, %130, %cst_66 {dimension_numbers = #tpu.dot_dimension_numbers<[1], [0], [0], [1], [0, 0, 1, 1], [], []>} : vector<32x32xf32>, vector<32x64xf32>, vector<32x64xf32> -> vector<32x64xf32>
    %132 = vector.broadcast %3 : vector<32x1xf32> to vector<32x64xf32>
    %133 = arith.addf %131, %132 : vector<32x64xf32>
    %134 = arith.maximumf %123, %133 : vector<32x64xf32>
    %c12 = arith.constant 12 : index
    %c0_67 = arith.constant 0 : index
    %c0_68 = arith.constant 0 : index
    %135 = vector.load %arg1[%c12, %c0_67, %c0_68] : memref<16x6x64xf32, #tpu.memory_space<vmem>>, vector<1x6x64xf32>
    %136 = vector.shape_cast %135 : vector<1x6x64xf32> to vector<6x64xf32>
    %cst_69 = arith.constant dense<0.000000e+00> : vector<32x64xf32>
    %137 = tpu.matmul %0, %136, %cst_69 {dimension_numbers = #tpu.dot_dimension_numbers<[1], [0], [0], [1], [0, 0, 1, 1], [], []>} : vector<32x6xf32>, vector<6x64xf32>, vector<32x64xf32> -> vector<32x64xf32>
    %138 = vector.broadcast %1 : vector<32x1xf32> to vector<32x64xf32>
    %139 = arith.addf %137, %138 : vector<32x64xf32>
    %cst_70 = arith.constant 0.000000e+00 : f32
    %140 = vector.broadcast %cst_70 : f32 to vector<32x64xf32>
    %141 = arith.maximumf %139, %140 : vector<32x64xf32>
    %cst_71 = arith.constant dense<0.000000e+00> : vector<32x64xf32>
    %142 = tpu.matmul %2, %141, %cst_71 {dimension_numbers = #tpu.dot_dimension_numbers<[1], [0], [0], [1], [0, 0, 1, 1], [], []>} : vector<32x32xf32>, vector<32x64xf32>, vector<32x64xf32> -> vector<32x64xf32>
    %143 = vector.broadcast %3 : vector<32x1xf32> to vector<32x64xf32>
    %144 = arith.addf %142, %143 : vector<32x64xf32>
    %145 = arith.maximumf %134, %144 : vector<32x64xf32>
    %c13 = arith.constant 13 : index
    %c0_72 = arith.constant 0 : index
    %c0_73 = arith.constant 0 : index
    %146 = vector.load %arg1[%c13, %c0_72, %c0_73] : memref<16x6x64xf32, #tpu.memory_space<vmem>>, vector<1x6x64xf32>
    %147 = vector.shape_cast %146 : vector<1x6x64xf32> to vector<6x64xf32>
    %cst_74 = arith.constant dense<0.000000e+00> : vector<32x64xf32>
    %148 = tpu.matmul %0, %147, %cst_74 {dimension_numbers = #tpu.dot_dimension_numbers<[1], [0], [0], [1], [0, 0, 1, 1], [], []>} : vector<32x6xf32>, vector<6x64xf32>, vector<32x64xf32> -> vector<32x64xf32>
    %149 = vector.broadcast %1 : vector<32x1xf32> to vector<32x64xf32>
    %150 = arith.addf %148, %149 : vector<32x64xf32>
    %cst_75 = arith.constant 0.000000e+00 : f32
    %151 = vector.broadcast %cst_75 : f32 to vector<32x64xf32>
    %152 = arith.maximumf %150, %151 : vector<32x64xf32>
    %cst_76 = arith.constant dense<0.000000e+00> : vector<32x64xf32>
    %153 = tpu.matmul %2, %152, %cst_76 {dimension_numbers = #tpu.dot_dimension_numbers<[1], [0], [0], [1], [0, 0, 1, 1], [], []>} : vector<32x32xf32>, vector<32x64xf32>, vector<32x64xf32> -> vector<32x64xf32>
    %154 = vector.broadcast %3 : vector<32x1xf32> to vector<32x64xf32>
    %155 = arith.addf %153, %154 : vector<32x64xf32>
    %156 = arith.maximumf %145, %155 : vector<32x64xf32>
    %c14 = arith.constant 14 : index
    %c0_77 = arith.constant 0 : index
    %c0_78 = arith.constant 0 : index
    %157 = vector.load %arg1[%c14, %c0_77, %c0_78] : memref<16x6x64xf32, #tpu.memory_space<vmem>>, vector<1x6x64xf32>
    %158 = vector.shape_cast %157 : vector<1x6x64xf32> to vector<6x64xf32>
    %cst_79 = arith.constant dense<0.000000e+00> : vector<32x64xf32>
    %159 = tpu.matmul %0, %158, %cst_79 {dimension_numbers = #tpu.dot_dimension_numbers<[1], [0], [0], [1], [0, 0, 1, 1], [], []>} : vector<32x6xf32>, vector<6x64xf32>, vector<32x64xf32> -> vector<32x64xf32>
    %160 = vector.broadcast %1 : vector<32x1xf32> to vector<32x64xf32>
    %161 = arith.addf %159, %160 : vector<32x64xf32>
    %cst_80 = arith.constant 0.000000e+00 : f32
    %162 = vector.broadcast %cst_80 : f32 to vector<32x64xf32>
    %163 = arith.maximumf %161, %162 : vector<32x64xf32>
    %cst_81 = arith.constant dense<0.000000e+00> : vector<32x64xf32>
    %164 = tpu.matmul %2, %163, %cst_81 {dimension_numbers = #tpu.dot_dimension_numbers<[1], [0], [0], [1], [0, 0, 1, 1], [], []>} : vector<32x32xf32>, vector<32x64xf32>, vector<32x64xf32> -> vector<32x64xf32>
    %165 = vector.broadcast %3 : vector<32x1xf32> to vector<32x64xf32>
    %166 = arith.addf %164, %165 : vector<32x64xf32>
    %167 = arith.maximumf %156, %166 : vector<32x64xf32>
    %c15 = arith.constant 15 : index
    %c0_82 = arith.constant 0 : index
    %c0_83 = arith.constant 0 : index
    %168 = vector.load %arg1[%c15, %c0_82, %c0_83] : memref<16x6x64xf32, #tpu.memory_space<vmem>>, vector<1x6x64xf32>
    %169 = vector.shape_cast %168 : vector<1x6x64xf32> to vector<6x64xf32>
    %cst_84 = arith.constant dense<0.000000e+00> : vector<32x64xf32>
    %170 = tpu.matmul %0, %169, %cst_84 {dimension_numbers = #tpu.dot_dimension_numbers<[1], [0], [0], [1], [0, 0, 1, 1], [], []>} : vector<32x6xf32>, vector<6x64xf32>, vector<32x64xf32> -> vector<32x64xf32>
    %171 = vector.broadcast %1 : vector<32x1xf32> to vector<32x64xf32>
    %172 = arith.addf %170, %171 : vector<32x64xf32>
    %cst_85 = arith.constant 0.000000e+00 : f32
    %173 = vector.broadcast %cst_85 : f32 to vector<32x64xf32>
    %174 = arith.maximumf %172, %173 : vector<32x64xf32>
    %cst_86 = arith.constant dense<0.000000e+00> : vector<32x64xf32>
    %175 = tpu.matmul %2, %174, %cst_86 {dimension_numbers = #tpu.dot_dimension_numbers<[1], [0], [0], [1], [0, 0, 1, 1], [], []>} : vector<32x32xf32>, vector<32x64xf32>, vector<32x64xf32> -> vector<32x64xf32>
    %176 = vector.broadcast %3 : vector<32x1xf32> to vector<32x64xf32>
    %177 = arith.addf %175, %176 : vector<32x64xf32>
    %178 = arith.maximumf %167, %177 : vector<32x64xf32>
    %cst_87 = arith.constant 0.000000e+00 : f32
    %179 = vector.broadcast %cst_87 : f32 to vector<32x64xf32>
    %180 = arith.maximumf %178, %179 : vector<32x64xf32>
    %c0_88 = arith.constant 0 : index
    %c0_89 = arith.constant 0 : index
    %181 = vector.load %arg6[%c0_88, %c0_89] : memref<32x64xf32, #tpu.memory_space<vmem>>, vector<32x64xf32>
    tpu.vector_store %arg6[%c0_88, %c0_89], %180 {strides = array<i32>} : memref<32x64xf32, #tpu.memory_space<vmem>>, vector<32x64xf32>,
    return
  }
  func.func @transform_0(%arg0: i32) -> (i32, i32, i32) {
    %c0_i32 = arith.constant 0 : i32
    %c0_i32_0 = arith.constant 0 : i32
    %c0_i32_1 = arith.constant 0 : i32
    return %c0_i32, %c0_i32_0, %arg0 : i32, i32, i32
  }
  func.func @transform_1(%arg0: i32) -> (i32, i32) {
    %c0_i32 = arith.constant 0 : i32
    %c0_i32_0 = arith.constant 0 : i32
    %c0_i32_1 = arith.constant 0 : i32
    return %c0_i32, %c0_i32_0 : i32, i32
  }
  func.func @transform_2(%arg0: i32) -> (i32, i32) {
    %c0_i32 = arith.constant 0 : i32
    %c0_i32_0 = arith.constant 0 : i32
    %c0_i32_1 = arith.constant 0 : i32
    return %c0_i32, %c0_i32_0 : i32, i32
  }
  func.func @transform_3(%arg0: i32) -> (i32, i32) {
    %c0_i32 = arith.constant 0 : i32
    %c0_i32_0 = arith.constant 0 : i32
    %c0_i32_1 = arith.constant 0 : i32
    return %c0_i32, %c0_i32_0 : i32, i32
  }
  func.func @transform_4(%arg0: i32) -> (i32, i32) {
    %c0_i32 = arith.constant 0 : i32
    %c0_i32_0 = arith.constant 0 : i32
    %c0_i32_1 = arith.constant 0 : i32
    return %c0_i32, %c0_i32_0 : i32, i32
  }
  func.func @transform_5(%arg0: i32) -> (i32, i32) {
    %c0_i32 = arith.constant 0 : i32
    %c0_i32_0 = arith.constant 0 : i32
    return %c0_i32, %arg0 : i32, i32
  }
}

module attributes {stable_mosaic.version = 11 : i64} {
  func.func @pointnet_layer_kernel(%arg0: i32, %arg1: memref<16x35x64xf32, #tpu.memory_space<vmem>>, %arg2: memref<32x35xf32, #tpu.memory_space<vmem>>, %arg3: memref<32x1xf32, #tpu.memory_space<vmem>>, %arg4: memref<32x32xf32, #tpu.memory_space<vmem>>, %arg5: memref<32x1xf32, #tpu.memory_space<vmem>>, %arg6: memref<32x64xf32, #tpu.memory_space<vmem>>) attributes {dimension_semantics = [#tpu.dimension_semantics<parallel>], iteration_bounds = array<i64: 1>, scalar_prefetch = 0 : i64, scratch_operands = 0 : i64, tpu.core_type = #tpu.core_type<tc>, window_params = [{transform_indices = @transform_0, window_bounds = array<i64: 16, 35, 64>}, {pipeline_mode = #tpu.pipeline_mode<synchronous>, transform_indices = @transform_1, window_bounds = array<i64: 32, 35>}, {pipeline_mode = #tpu.pipeline_mode<synchronous>, transform_indices = @transform_2, window_bounds = array<i64: 32, 1>}, {pipeline_mode = #tpu.pipeline_mode<synchronous>, transform_indices = @transform_3, window_bounds = array<i64: 32, 32>}, {pipeline_mode = #tpu.pipeline_mode<synchronous>, transform_indices = @transform_4, window_bounds = array<i64: 32, 1>}, {transform_indices = @transform_5, window_bounds = array<i64: 32, 64>}]} {
    %c0 = arith.constant 0 : index
    %c0_0 = arith.constant 0 : index
    %0 = vector.load %arg2[%c0, %c0_0] : memref<32x35xf32, #tpu.memory_space<vmem>>, vector<32x35xf32>
    %c0_1 = arith.constant 0 : index
    %c0_2 = arith.constant 0 : index
    %1 = vector.load %arg3[%c0_1, %c0_2] : memref<32x1xf32, #tpu.memory_space<vmem>>, vector<32x1xf32>
    %c0_3 = arith.constant 0 : index
    %c0_4 = arith.constant 0 : index
    %2 = vector.load %arg4[%c0_3, %c0_4] : memref<32x32xf32, #tpu.memory_space<vmem>>, vector<32x32xf32>
    %c0_5 = arith.constant 0 : index
    %c0_6 = arith.constant 0 : index
    %3 = vector.load %arg5[%c0_5, %c0_6] : memref<32x1xf32, #tpu.memory_space<vmem>>, vector<32x1xf32>
    %c0_7 = arith.constant 0 : index
    %c0_8 = arith.constant 0 : index
    %c0_9 = arith.constant 0 : index
    %4 = vector.load %arg1[%c0_7, %c0_8, %c0_9] : memref<16x35x64xf32, #tpu.memory_space<vmem>>, vector<1x35x64xf32>
    %5 = vector.shape_cast %4 : vector<1x35x64xf32> to vector<35x64xf32>
    %cst = arith.constant dense<0.000000e+00> : vector<32x64xf32>
    %6 = tpu.matmul %0, %5, %cst {dimension_numbers = #tpu.dot_dimension_numbers<[1], [0], [0], [1], [0, 0, 1, 1], [], []>} : vector<32x35xf32>, vector<35x64xf32>, vector<32x64xf32> -> vector<32x64xf32>
    %7 = vector.broadcast %1 : vector<32x1xf32> to vector<32x64xf32>
    %8 = arith.addf %6, %7 : vector<32x64xf32>
    %cst_10 = arith.constant 0.000000e+00 : f32
    %9 = vector.broadcast %cst_10 : f32 to vector<32x64xf32>
    %10 = arith.maximumf %8, %9 : vector<32x64xf32>
    %cst_11 = arith.constant dense<0.000000e+00> : vector<32x64xf32>
    %11 = tpu.matmul %2, %10, %cst_11 {dimension_numbers = #tpu.dot_dimension_numbers<[1], [0], [0], [1], [0, 0, 1, 1], [], []>} : vector<32x32xf32>, vector<32x64xf32>, vector<32x64xf32> -> vector<32x64xf32>
    %12 = vector.broadcast %3 : vector<32x1xf32> to vector<32x64xf32>
    %13 = arith.addf %11, %12 : vector<32x64xf32>
    %c1 = arith.constant 1 : index
    %c0_12 = arith.constant 0 : index
    %c0_13 = arith.constant 0 : index
    %14 = vector.load %arg1[%c1, %c0_12, %c0_13] : memref<16x35x64xf32, #tpu.memory_space<vmem>>, vector<1x35x64xf32>
    %15 = vector.shape_cast %14 : vector<1x35x64xf32> to vector<35x64xf32>
    %cst_14 = arith.constant dense<0.000000e+00> : vector<32x64xf32>
    %16 = tpu.matmul %0, %15, %cst_14 {dimension_numbers = #tpu.dot_dimension_numbers<[1], [0], [0], [1], [0, 0, 1, 1], [], []>} : vector<32x35xf32>, vector<35x64xf32>, vector<32x64xf32> -> vector<32x64xf32>
    %17 = vector.broadcast %1 : vector<32x1xf32> to vector<32x64xf32>
    %18 = arith.addf %16, %17 : vector<32x64xf32>
    %cst_15 = arith.constant 0.000000e+00 : f32
    %19 = vector.broadcast %cst_15 : f32 to vector<32x64xf32>
    %20 = arith.maximumf %18, %19 : vector<32x64xf32>
    %cst_16 = arith.constant dense<0.000000e+00> : vector<32x64xf32>
    %21 = tpu.matmul %2, %20, %cst_16 {dimension_numbers = #tpu.dot_dimension_numbers<[1], [0], [0], [1], [0, 0, 1, 1], [], []>} : vector<32x32xf32>, vector<32x64xf32>, vector<32x64xf32> -> vector<32x64xf32>
    %22 = vector.broadcast %3 : vector<32x1xf32> to vector<32x64xf32>
    %23 = arith.addf %21, %22 : vector<32x64xf32>
    %24 = arith.maximumf %13, %23 : vector<32x64xf32>
    %c2 = arith.constant 2 : index
    %c0_17 = arith.constant 0 : index
    %c0_18 = arith.constant 0 : index
    %25 = vector.load %arg1[%c2, %c0_17, %c0_18] : memref<16x35x64xf32, #tpu.memory_space<vmem>>, vector<1x35x64xf32>
    %26 = vector.shape_cast %25 : vector<1x35x64xf32> to vector<35x64xf32>
    %cst_19 = arith.constant dense<0.000000e+00> : vector<32x64xf32>
    %27 = tpu.matmul %0, %26, %cst_19 {dimension_numbers = #tpu.dot_dimension_numbers<[1], [0], [0], [1], [0, 0, 1, 1], [], []>} : vector<32x35xf32>, vector<35x64xf32>, vector<32x64xf32> -> vector<32x64xf32>
    %28 = vector.broadcast %1 : vector<32x1xf32> to vector<32x64xf32>
    %29 = arith.addf %27, %28 : vector<32x64xf32>
    %cst_20 = arith.constant 0.000000e+00 : f32
    %30 = vector.broadcast %cst_20 : f32 to vector<32x64xf32>
    %31 = arith.maximumf %29, %30 : vector<32x64xf32>
    %cst_21 = arith.constant dense<0.000000e+00> : vector<32x64xf32>
    %32 = tpu.matmul %2, %31, %cst_21 {dimension_numbers = #tpu.dot_dimension_numbers<[1], [0], [0], [1], [0, 0, 1, 1], [], []>} : vector<32x32xf32>, vector<32x64xf32>, vector<32x64xf32> -> vector<32x64xf32>
    %33 = vector.broadcast %3 : vector<32x1xf32> to vector<32x64xf32>
    %34 = arith.addf %32, %33 : vector<32x64xf32>
    %35 = arith.maximumf %24, %34 : vector<32x64xf32>
    %c3 = arith.constant 3 : index
    %c0_22 = arith.constant 0 : index
    %c0_23 = arith.constant 0 : index
    %36 = vector.load %arg1[%c3, %c0_22, %c0_23] : memref<16x35x64xf32, #tpu.memory_space<vmem>>, vector<1x35x64xf32>
    %37 = vector.shape_cast %36 : vector<1x35x64xf32> to vector<35x64xf32>
    %cst_24 = arith.constant dense<0.000000e+00> : vector<32x64xf32>
    %38 = tpu.matmul %0, %37, %cst_24 {dimension_numbers = #tpu.dot_dimension_numbers<[1], [0], [0], [1], [0, 0, 1, 1], [], []>} : vector<32x35xf32>, vector<35x64xf32>, vector<32x64xf32> -> vector<32x64xf32>
    %39 = vector.broadcast %1 : vector<32x1xf32> to vector<32x64xf32>
    %40 = arith.addf %38, %39 : vector<32x64xf32>
    %cst_25 = arith.constant 0.000000e+00 : f32
    %41 = vector.broadcast %cst_25 : f32 to vector<32x64xf32>
    %42 = arith.maximumf %40, %41 : vector<32x64xf32>
    %cst_26 = arith.constant dense<0.000000e+00> : vector<32x64xf32>
    %43 = tpu.matmul %2, %42, %cst_26 {dimension_numbers = #tpu.dot_dimension_numbers<[1], [0], [0], [1], [0, 0, 1, 1], [], []>} : vector<32x32xf32>, vector<32x64xf32>, vector<32x64xf32> -> vector<32x64xf32>
    %44 = vector.broadcast %3 : vector<32x1xf32> to vector<32x64xf32>
    %45 = arith.addf %43, %44 : vector<32x64xf32>
    %46 = arith.maximumf %35, %45 : vector<32x64xf32>
    %c4 = arith.constant 4 : index
    %c0_27 = arith.constant 0 : index
    %c0_28 = arith.constant 0 : index
    %47 = vector.load %arg1[%c4, %c0_27, %c0_28] : memref<16x35x64xf32, #tpu.memory_space<vmem>>, vector<1x35x64xf32>
    %48 = vector.shape_cast %47 : vector<1x35x64xf32> to vector<35x64xf32>
    %cst_29 = arith.constant dense<0.000000e+00> : vector<32x64xf32>
    %49 = tpu.matmul %0, %48, %cst_29 {dimension_numbers = #tpu.dot_dimension_numbers<[1], [0], [0], [1], [0, 0, 1, 1], [], []>} : vector<32x35xf32>, vector<35x64xf32>, vector<32x64xf32> -> vector<32x64xf32>
    %50 = vector.broadcast %1 : vector<32x1xf32> to vector<32x64xf32>
    %51 = arith.addf %49, %50 : vector<32x64xf32>
    %cst_30 = arith.constant 0.000000e+00 : f32
    %52 = vector.broadcast %cst_30 : f32 to vector<32x64xf32>
    %53 = arith.maximumf %51, %52 : vector<32x64xf32>
    %cst_31 = arith.constant dense<0.000000e+00> : vector<32x64xf32>
    %54 = tpu.matmul %2, %53, %cst_31 {dimension_numbers = #tpu.dot_dimension_numbers<[1], [0], [0], [1], [0, 0, 1, 1], [], []>} : vector<32x32xf32>, vector<32x64xf32>, vector<32x64xf32> -> vector<32x64xf32>
    %55 = vector.broadcast %3 : vector<32x1xf32> to vector<32x64xf32>
    %56 = arith.addf %54, %55 : vector<32x64xf32>
    %57 = arith.maximumf %46, %56 : vector<32x64xf32>
    %c5 = arith.constant 5 : index
    %c0_32 = arith.constant 0 : index
    %c0_33 = arith.constant 0 : index
    %58 = vector.load %arg1[%c5, %c0_32, %c0_33] : memref<16x35x64xf32, #tpu.memory_space<vmem>>, vector<1x35x64xf32>
    %59 = vector.shape_cast %58 : vector<1x35x64xf32> to vector<35x64xf32>
    %cst_34 = arith.constant dense<0.000000e+00> : vector<32x64xf32>
    %60 = tpu.matmul %0, %59, %cst_34 {dimension_numbers = #tpu.dot_dimension_numbers<[1], [0], [0], [1], [0, 0, 1, 1], [], []>} : vector<32x35xf32>, vector<35x64xf32>, vector<32x64xf32> -> vector<32x64xf32>
    %61 = vector.broadcast %1 : vector<32x1xf32> to vector<32x64xf32>
    %62 = arith.addf %60, %61 : vector<32x64xf32>
    %cst_35 = arith.constant 0.000000e+00 : f32
    %63 = vector.broadcast %cst_35 : f32 to vector<32x64xf32>
    %64 = arith.maximumf %62, %63 : vector<32x64xf32>
    %cst_36 = arith.constant dense<0.000000e+00> : vector<32x64xf32>
    %65 = tpu.matmul %2, %64, %cst_36 {dimension_numbers = #tpu.dot_dimension_numbers<[1], [0], [0], [1], [0, 0, 1, 1], [], []>} : vector<32x32xf32>, vector<32x64xf32>, vector<32x64xf32> -> vector<32x64xf32>
    %66 = vector.broadcast %3 : vector<32x1xf32> to vector<32x64xf32>
    %67 = arith.addf %65, %66 : vector<32x64xf32>
    %68 = arith.maximumf %57, %67 : vector<32x64xf32>
    %c6 = arith.constant 6 : index
    %c0_37 = arith.constant 0 : index
    %c0_38 = arith.constant 0 : index
    %69 = vector.load %arg1[%c6, %c0_37, %c0_38] : memref<16x35x64xf32, #tpu.memory_space<vmem>>, vector<1x35x64xf32>
    %70 = vector.shape_cast %69 : vector<1x35x64xf32> to vector<35x64xf32>
    %cst_39 = arith.constant dense<0.000000e+00> : vector<32x64xf32>
    %71 = tpu.matmul %0, %70, %cst_39 {dimension_numbers = #tpu.dot_dimension_numbers<[1], [0], [0], [1], [0, 0, 1, 1], [], []>} : vector<32x35xf32>, vector<35x64xf32>, vector<32x64xf32> -> vector<32x64xf32>
    %72 = vector.broadcast %1 : vector<32x1xf32> to vector<32x64xf32>
    %73 = arith.addf %71, %72 : vector<32x64xf32>
    %cst_40 = arith.constant 0.000000e+00 : f32
    %74 = vector.broadcast %cst_40 : f32 to vector<32x64xf32>
    %75 = arith.maximumf %73, %74 : vector<32x64xf32>
    %cst_41 = arith.constant dense<0.000000e+00> : vector<32x64xf32>
    %76 = tpu.matmul %2, %75, %cst_41 {dimension_numbers = #tpu.dot_dimension_numbers<[1], [0], [0], [1], [0, 0, 1, 1], [], []>} : vector<32x32xf32>, vector<32x64xf32>, vector<32x64xf32> -> vector<32x64xf32>
    %77 = vector.broadcast %3 : vector<32x1xf32> to vector<32x64xf32>
    %78 = arith.addf %76, %77 : vector<32x64xf32>
    %79 = arith.maximumf %68, %78 : vector<32x64xf32>
    %c7 = arith.constant 7 : index
    %c0_42 = arith.constant 0 : index
    %c0_43 = arith.constant 0 : index
    %80 = vector.load %arg1[%c7, %c0_42, %c0_43] : memref<16x35x64xf32, #tpu.memory_space<vmem>>, vector<1x35x64xf32>
    %81 = vector.shape_cast %80 : vector<1x35x64xf32> to vector<35x64xf32>
    %cst_44 = arith.constant dense<0.000000e+00> : vector<32x64xf32>
    %82 = tpu.matmul %0, %81, %cst_44 {dimension_numbers = #tpu.dot_dimension_numbers<[1], [0], [0], [1], [0, 0, 1, 1], [], []>} : vector<32x35xf32>, vector<35x64xf32>, vector<32x64xf32> -> vector<32x64xf32>
    %83 = vector.broadcast %1 : vector<32x1xf32> to vector<32x64xf32>
    %84 = arith.addf %82, %83 : vector<32x64xf32>
    %cst_45 = arith.constant 0.000000e+00 : f32
    %85 = vector.broadcast %cst_45 : f32 to vector<32x64xf32>
    %86 = arith.maximumf %84, %85 : vector<32x64xf32>
    %cst_46 = arith.constant dense<0.000000e+00> : vector<32x64xf32>
    %87 = tpu.matmul %2, %86, %cst_46 {dimension_numbers = #tpu.dot_dimension_numbers<[1], [0], [0], [1], [0, 0, 1, 1], [], []>} : vector<32x32xf32>, vector<32x64xf32>, vector<32x64xf32> -> vector<32x64xf32>
    %88 = vector.broadcast %3 : vector<32x1xf32> to vector<32x64xf32>
    %89 = arith.addf %87, %88 : vector<32x64xf32>
    %90 = arith.maximumf %79, %89 : vector<32x64xf32>
    %c8 = arith.constant 8 : index
    %c0_47 = arith.constant 0 : index
    %c0_48 = arith.constant 0 : index
    %91 = vector.load %arg1[%c8, %c0_47, %c0_48] : memref<16x35x64xf32, #tpu.memory_space<vmem>>, vector<1x35x64xf32>
    %92 = vector.shape_cast %91 : vector<1x35x64xf32> to vector<35x64xf32>
    %cst_49 = arith.constant dense<0.000000e+00> : vector<32x64xf32>
    %93 = tpu.matmul %0, %92, %cst_49 {dimension_numbers = #tpu.dot_dimension_numbers<[1], [0], [0], [1], [0, 0, 1, 1], [], []>} : vector<32x35xf32>, vector<35x64xf32>, vector<32x64xf32> -> vector<32x64xf32>
    %94 = vector.broadcast %1 : vector<32x1xf32> to vector<32x64xf32>
    %95 = arith.addf %93, %94 : vector<32x64xf32>
    %cst_50 = arith.constant 0.000000e+00 : f32
    %96 = vector.broadcast %cst_50 : f32 to vector<32x64xf32>
    %97 = arith.maximumf %95, %96 : vector<32x64xf32>
    %cst_51 = arith.constant dense<0.000000e+00> : vector<32x64xf32>
    %98 = tpu.matmul %2, %97, %cst_51 {dimension_numbers = #tpu.dot_dimension_numbers<[1], [0], [0], [1], [0, 0, 1, 1], [], []>} : vector<32x32xf32>, vector<32x64xf32>, vector<32x64xf32> -> vector<32x64xf32>
    %99 = vector.broadcast %3 : vector<32x1xf32> to vector<32x64xf32>
    %100 = arith.addf %98, %99 : vector<32x64xf32>
    %101 = arith.maximumf %90, %100 : vector<32x64xf32>
    %c9 = arith.constant 9 : index
    %c0_52 = arith.constant 0 : index
    %c0_53 = arith.constant 0 : index
    %102 = vector.load %arg1[%c9, %c0_52, %c0_53] : memref<16x35x64xf32, #tpu.memory_space<vmem>>, vector<1x35x64xf32>
    %103 = vector.shape_cast %102 : vector<1x35x64xf32> to vector<35x64xf32>
    %cst_54 = arith.constant dense<0.000000e+00> : vector<32x64xf32>
    %104 = tpu.matmul %0, %103, %cst_54 {dimension_numbers = #tpu.dot_dimension_numbers<[1], [0], [0], [1], [0, 0, 1, 1], [], []>} : vector<32x35xf32>, vector<35x64xf32>, vector<32x64xf32> -> vector<32x64xf32>
    %105 = vector.broadcast %1 : vector<32x1xf32> to vector<32x64xf32>
    %106 = arith.addf %104, %105 : vector<32x64xf32>
    %cst_55 = arith.constant 0.000000e+00 : f32
    %107 = vector.broadcast %cst_55 : f32 to vector<32x64xf32>
    %108 = arith.maximumf %106, %107 : vector<32x64xf32>
    %cst_56 = arith.constant dense<0.000000e+00> : vector<32x64xf32>
    %109 = tpu.matmul %2, %108, %cst_56 {dimension_numbers = #tpu.dot_dimension_numbers<[1], [0], [0], [1], [0, 0, 1, 1], [], []>} : vector<32x32xf32>, vector<32x64xf32>, vector<32x64xf32> -> vector<32x64xf32>
    %110 = vector.broadcast %3 : vector<32x1xf32> to vector<32x64xf32>
    %111 = arith.addf %109, %110 : vector<32x64xf32>
    %112 = arith.maximumf %101, %111 : vector<32x64xf32>
    %c10 = arith.constant 10 : index
    %c0_57 = arith.constant 0 : index
    %c0_58 = arith.constant 0 : index
    %113 = vector.load %arg1[%c10, %c0_57, %c0_58] : memref<16x35x64xf32, #tpu.memory_space<vmem>>, vector<1x35x64xf32>
    %114 = vector.shape_cast %113 : vector<1x35x64xf32> to vector<35x64xf32>
    %cst_59 = arith.constant dense<0.000000e+00> : vector<32x64xf32>
    %115 = tpu.matmul %0, %114, %cst_59 {dimension_numbers = #tpu.dot_dimension_numbers<[1], [0], [0], [1], [0, 0, 1, 1], [], []>} : vector<32x35xf32>, vector<35x64xf32>, vector<32x64xf32> -> vector<32x64xf32>
    %116 = vector.broadcast %1 : vector<32x1xf32> to vector<32x64xf32>
    %117 = arith.addf %115, %116 : vector<32x64xf32>
    %cst_60 = arith.constant 0.000000e+00 : f32
    %118 = vector.broadcast %cst_60 : f32 to vector<32x64xf32>
    %119 = arith.maximumf %117, %118 : vector<32x64xf32>
    %cst_61 = arith.constant dense<0.000000e+00> : vector<32x64xf32>
    %120 = tpu.matmul %2, %119, %cst_61 {dimension_numbers = #tpu.dot_dimension_numbers<[1], [0], [0], [1], [0, 0, 1, 1], [], []>} : vector<32x32xf32>, vector<32x64xf32>, vector<32x64xf32> -> vector<32x64xf32>
    %121 = vector.broadcast %3 : vector<32x1xf32> to vector<32x64xf32>
    %122 = arith.addf %120, %121 : vector<32x64xf32>
    %123 = arith.maximumf %112, %122 : vector<32x64xf32>
    %c11 = arith.constant 11 : index
    %c0_62 = arith.constant 0 : index
    %c0_63 = arith.constant 0 : index
    %124 = vector.load %arg1[%c11, %c0_62, %c0_63] : memref<16x35x64xf32, #tpu.memory_space<vmem>>, vector<1x35x64xf32>
    %125 = vector.shape_cast %124 : vector<1x35x64xf32> to vector<35x64xf32>
    %cst_64 = arith.constant dense<0.000000e+00> : vector<32x64xf32>
    %126 = tpu.matmul %0, %125, %cst_64 {dimension_numbers = #tpu.dot_dimension_numbers<[1], [0], [0], [1], [0, 0, 1, 1], [], []>} : vector<32x35xf32>, vector<35x64xf32>, vector<32x64xf32> -> vector<32x64xf32>
    %127 = vector.broadcast %1 : vector<32x1xf32> to vector<32x64xf32>
    %128 = arith.addf %126, %127 : vector<32x64xf32>
    %cst_65 = arith.constant 0.000000e+00 : f32
    %129 = vector.broadcast %cst_65 : f32 to vector<32x64xf32>
    %130 = arith.maximumf %128, %129 : vector<32x64xf32>
    %cst_66 = arith.constant dense<0.000000e+00> : vector<32x64xf32>
    %131 = tpu.matmul %2, %130, %cst_66 {dimension_numbers = #tpu.dot_dimension_numbers<[1], [0], [0], [1], [0, 0, 1, 1], [], []>} : vector<32x32xf32>, vector<32x64xf32>, vector<32x64xf32> -> vector<32x64xf32>
    %132 = vector.broadcast %3 : vector<32x1xf32> to vector<32x64xf32>
    %133 = arith.addf %131, %132 : vector<32x64xf32>
    %134 = arith.maximumf %123, %133 : vector<32x64xf32>
    %c12 = arith.constant 12 : index
    %c0_67 = arith.constant 0 : index
    %c0_68 = arith.constant 0 : index
    %135 = vector.load %arg1[%c12, %c0_67, %c0_68] : memref<16x35x64xf32, #tpu.memory_space<vmem>>, vector<1x35x64xf32>
    %136 = vector.shape_cast %135 : vector<1x35x64xf32> to vector<35x64xf32>
    %cst_69 = arith.constant dense<0.000000e+00> : vector<32x64xf32>
    %137 = tpu.matmul %0, %136, %cst_69 {dimension_numbers = #tpu.dot_dimension_numbers<[1], [0], [0], [1], [0, 0, 1, 1], [], []>} : vector<32x35xf32>, vector<35x64xf32>, vector<32x64xf32> -> vector<32x64xf32>
    %138 = vector.broadcast %1 : vector<32x1xf32> to vector<32x64xf32>
    %139 = arith.addf %137, %138 : vector<32x64xf32>
    %cst_70 = arith.constant 0.000000e+00 : f32
    %140 = vector.broadcast %cst_70 : f32 to vector<32x64xf32>
    %141 = arith.maximumf %139, %140 : vector<32x64xf32>
    %cst_71 = arith.constant dense<0.000000e+00> : vector<32x64xf32>
    %142 = tpu.matmul %2, %141, %cst_71 {dimension_numbers = #tpu.dot_dimension_numbers<[1], [0], [0], [1], [0, 0, 1, 1], [], []>} : vector<32x32xf32>, vector<32x64xf32>, vector<32x64xf32> -> vector<32x64xf32>
    %143 = vector.broadcast %3 : vector<32x1xf32> to vector<32x64xf32>
    %144 = arith.addf %142, %143 : vector<32x64xf32>
    %145 = arith.maximumf %134, %144 : vector<32x64xf32>
    %c13 = arith.constant 13 : index
    %c0_72 = arith.constant 0 : index
    %c0_73 = arith.constant 0 : index
    %146 = vector.load %arg1[%c13, %c0_72, %c0_73] : memref<16x35x64xf32, #tpu.memory_space<vmem>>, vector<1x35x64xf32>
    %147 = vector.shape_cast %146 : vector<1x35x64xf32> to vector<35x64xf32>
    %cst_74 = arith.constant dense<0.000000e+00> : vector<32x64xf32>
    %148 = tpu.matmul %0, %147, %cst_74 {dimension_numbers = #tpu.dot_dimension_numbers<[1], [0], [0], [1], [0, 0, 1, 1], [], []>} : vector<32x35xf32>, vector<35x64xf32>, vector<32x64xf32> -> vector<32x64xf32>
    %149 = vector.broadcast %1 : vector<32x1xf32> to vector<32x64xf32>
    %150 = arith.addf %148, %149 : vector<32x64xf32>
    %cst_75 = arith.constant 0.000000e+00 : f32
    %151 = vector.broadcast %cst_75 : f32 to vector<32x64xf32>
    %152 = arith.maximumf %150, %151 : vector<32x64xf32>
    %cst_76 = arith.constant dense<0.000000e+00> : vector<32x64xf32>
    %153 = tpu.matmul %2, %152, %cst_76 {dimension_numbers = #tpu.dot_dimension_numbers<[1], [0], [0], [1], [0, 0, 1, 1], [], []>} : vector<32x32xf32>, vector<32x64xf32>, vector<32x64xf32> -> vector<32x64xf32>
    %154 = vector.broadcast %3 : vector<32x1xf32> to vector<32x64xf32>
    %155 = arith.addf %153, %154 : vector<32x64xf32>
    %156 = arith.maximumf %145, %155 : vector<32x64xf32>
    %c14 = arith.constant 14 : index
    %c0_77 = arith.constant 0 : index
    %c0_78 = arith.constant 0 : index
    %157 = vector.load %arg1[%c14, %c0_77, %c0_78] : memref<16x35x64xf32, #tpu.memory_space<vmem>>, vector<1x35x64xf32>
    %158 = vector.shape_cast %157 : vector<1x35x64xf32> to vector<35x64xf32>
    %cst_79 = arith.constant dense<0.000000e+00> : vector<32x64xf32>
    %159 = tpu.matmul %0, %158, %cst_79 {dimension_numbers = #tpu.dot_dimension_numbers<[1], [0], [0], [1], [0, 0, 1, 1], [], []>} : vector<32x35xf32>, vector<35x64xf32>, vector<32x64xf32> -> vector<32x64xf32>
    %160 = vector.broadcast %1 : vector<32x1xf32> to vector<32x64xf32>
    %161 = arith.addf %159, %160 : vector<32x64xf32>
    %cst_80 = arith.constant 0.000000e+00 : f32
    %162 = vector.broadcast %cst_80 : f32 to vector<32x64xf32>
    %163 = arith.maximumf %161, %162 : vector<32x64xf32>
    %cst_81 = arith.constant dense<0.000000e+00> : vector<32x64xf32>
    %164 = tpu.matmul %2, %163, %cst_81 {dimension_numbers = #tpu.dot_dimension_numbers<[1], [0], [0], [1], [0, 0, 1, 1], [], []>} : vector<32x32xf32>, vector<32x64xf32>, vector<32x64xf32> -> vector<32x64xf32>
    %165 = vector.broadcast %3 : vector<32x1xf32> to vector<32x64xf32>
    %166 = arith.addf %164, %165 : vector<32x64xf32>
    %167 = arith.maximumf %156, %166 : vector<32x64xf32>
    %c15 = arith.constant 15 : index
    %c0_82 = arith.constant 0 : index
    %c0_83 = arith.constant 0 : index
    %168 = vector.load %arg1[%c15, %c0_82, %c0_83] : memref<16x35x64xf32, #tpu.memory_space<vmem>>, vector<1x35x64xf32>
    %169 = vector.shape_cast %168 : vector<1x35x64xf32> to vector<35x64xf32>
    %cst_84 = arith.constant dense<0.000000e+00> : vector<32x64xf32>
    %170 = tpu.matmul %0, %169, %cst_84 {dimension_numbers = #tpu.dot_dimension_numbers<[1], [0], [0], [1], [0, 0, 1, 1], [], []>} : vector<32x35xf32>, vector<35x64xf32>, vector<32x64xf32> -> vector<32x64xf32>
    %171 = vector.broadcast %1 : vector<32x1xf32> to vector<32x64xf32>
    %172 = arith.addf %170, %171 : vector<32x64xf32>
    %cst_85 = arith.constant 0.000000e+00 : f32
    %173 = vector.broadcast %cst_85 : f32 to vector<32x64xf32>
    %174 = arith.maximumf %172, %173 : vector<32x64xf32>
    %cst_86 = arith.constant dense<0.000000e+00> : vector<32x64xf32>
    %175 = tpu.matmul %2, %174, %cst_86 {dimension_numbers = #tpu.dot_dimension_numbers<[1], [0], [0], [1], [0, 0, 1, 1], [], []>} : vector<32x32xf32>, vector<32x64xf32>, vector<32x64xf32> -> vector<32x64xf32>
    %176 = vector.broadcast %3 : vector<32x1xf32> to vector<32x64xf32>
    %177 = arith.addf %175, %176 : vector<32x64xf32>
    %178 = arith.maximumf %167, %177 : vector<32x64xf32>
    %cst_87 = arith.constant 0.000000e+00 : f32
    %179 = vector.broadcast %cst_87 : f32 to vector<32x64xf32>
    %180 = arith.maximumf %178, %179 : vector<32x64xf32>
    %c0_88 = arith.constant 0 : index
    %c0_89 = arith.constant 0 : index
    %181 = vector.load %arg6[%c0_88, %c0_89] : memref<32x64xf32, #tpu.memory_space<vmem>>, vector<32x64xf32>
    tpu.vector_store %arg6[%c0_88, %c0_89], %180 {strides = array<i32>} : memref<32x64xf32, #tpu.memory_space<vmem>>, vector<32x64xf32>,
    return
  }
  func.func @transform_0(%arg0: i32) -> (i32, i32, i32) {
    %c0_i32 = arith.constant 0 : i32
    %c0_i32_0 = arith.constant 0 : i32
    %c0_i32_1 = arith.constant 0 : i32
    return %c0_i32, %c0_i32_0, %arg0 : i32, i32, i32
  }
  func.func @transform_1(%arg0: i32) -> (i32, i32) {
    %c0_i32 = arith.constant 0 : i32
    %c0_i32_0 = arith.constant 0 : i32
    %c0_i32_1 = arith.constant 0 : i32
    return %c0_i32, %c0_i32_0 : i32, i32
  }
  func.func @transform_2(%arg0: i32) -> (i32, i32) {
    %c0_i32 = arith.constant 0 : i32
    %c0_i32_0 = arith.constant 0 : i32
    %c0_i32_1 = arith.constant 0 : i32
    return %c0_i32, %c0_i32_0 : i32, i32
  }
  func.func @transform_3(%arg0: i32) -> (i32, i32) {
    %c0_i32 = arith.constant 0 : i32
    %c0_i32_0 = arith.constant 0 : i32
    %c0_i32_1 = arith.constant 0 : i32
    return %c0_i32, %c0_i32_0 : i32, i32
  }
  func.func @transform_4(%arg0: i32) -> (i32, i32) {
    %c0_i32 = arith.constant 0 : i32
    %c0_i32_0 = arith.constant 0 : i32
    %c0_i32_1 = arith.constant 0 : i32
    return %c0_i32, %c0_i32_0 : i32, i32
  }
  func.func @transform_5(%arg0: i32) -> (i32, i32) {
    %c0_i32 = arith.constant 0 : i32
    %c0_i32_0 = arith.constant 0 : i32
    return %c0_i32, %arg0 : i32, i32
  }
}

module attributes {stable_mosaic.version = 11 : i64} {
  func.func @pool_classify_kernel(%arg0: memref<32x2x32xf32, #tpu.memory_space<vmem>>, %arg1: memref<1x32xf32, #tpu.memory_space<vmem>>, %arg2: memref<1x1xf32, #tpu.memory_space<vmem>>, %arg3: memref<1x2xf32, #tpu.memory_space<vmem>>) attributes {dimension_semantics = [], scalar_prefetch = 0 : i64, scratch_operands = 0 : i64, tpu.core_type = #tpu.core_type<tc>} {
    %c0 = arith.constant 0 : index
    %c0_0 = arith.constant 0 : index
    %c0_1 = arith.constant 0 : index
    %0 = vector.load %arg0[%c0, %c0_0, %c0_1] : memref<32x2x32xf32, #tpu.memory_space<vmem>>, vector<32x2x32xf32>
    %cst = arith.constant dense<0xFF800000> : vector<32x2xf32>
    %1 = vector.multi_reduction <maximumf>, %0, %cst [2] : vector<32x2x32xf32> to vector<32x2xf32>
    %c0_2 = arith.constant 0 : index
    %c0_3 = arith.constant 0 : index
    %2 = vector.load %arg1[%c0_2, %c0_3] : memref<1x32xf32, #tpu.memory_space<vmem>>, vector<1x32xf32>
    %cst_4 = arith.constant dense<0.000000e+00> : vector<1x2xf32>
    %3 = tpu.matmul %2, %1, %cst_4 {dimension_numbers = #tpu.dot_dimension_numbers<[1], [0], [0], [1], [0, 0, 1, 1], [], []>} : vector<1x32xf32>, vector<32x2xf32>, vector<1x2xf32> -> vector<1x2xf32>
    %c0_5 = arith.constant 0 : index
    %c0_6 = arith.constant 0 : index
    %4 = vector.load %arg2[%c0_5, %c0_6] : memref<1x1xf32, #tpu.memory_space<vmem>>, vector<1x1xf32>
    %5 = vector.broadcast %4 : vector<1x1xf32> to vector<1x2xf32>
    %6 = arith.addf %3, %5 : vector<1x2xf32>
    %c0_7 = arith.constant 0 : index
    %c0_8 = arith.constant 0 : index
    %7 = vector.load %arg3[%c0_7, %c0_8] : memref<1x2xf32, #tpu.memory_space<vmem>>, vector<1x2xf32>
    tpu.vector_store %arg3[%c0_7, %c0_8], %6 {strides = array<i32>} : memref<1x2xf32, #tpu.memory_space<vmem>>, vector<1x2xf32>,
    return
  }
}

</mosaic_0001>

<llo_original>
// kernel: pointnet_forward.3
$region0: #{pointnet_forward.3}
  #allocation0 [shape = 'u32[]', space=smem, size = 0x4, offset = 0x4, fixed_abs, tag = 'smem constant byte address 0x4 - core index']
  #allocation1 [shape = 'u32[72,128]{1,0:T(1,128)}', space=vmem, size = 0x9000, scoped, tag = 'internal scratch']
  %s0 = inlined_call_operand.vmem [shape: f32[16,6,64], index: 0, kind: input, shape index: {}]
  %s1 = inlined_call_operand.vmem [shape: f32[32,6], index: 1, kind: input, shape index: {}]
  %s2 = inlined_call_operand.vmem [shape: f32[32,1], index: 2, kind: input, shape index: {}]
  %s3 = inlined_call_operand.vmem [shape: f32[32,32], index: 3, kind: input, shape index: {}]
  %s4 = inlined_call_operand.vmem [shape: f32[32,1], index: 4, kind: input, shape index: {}]
  %s5 = inlined_call_operand.vmem [shape: f32[32,64], index: 5, kind: output, shape index: {}]
  %s6 = sld [smem:[#allocation0]]
  $region30: #{pointnet_forward.3} parent=0
    _
  %s8 = ssub.s32 1, %s6
  %s9 = scalar_select 0, %s8, %s6
  // Predicated region
  $region2: #{pointnet_forward.3} parent=0 // pred_check
    _
  $region3: #{pointnet_forward.3} parent=0 // pred_check_branch
    %11 = sbr.rel (0) target = $region5
  $region4: #{pointnet_forward.3} parent=0 // pred_region
    _
  $region5: #{pointnet_forward.3} parent=0 // pred_fallthru
    _
  // Predicated region
  $region6: #{pointnet_forward.3} parent=0 // pred_check
    _
  $region7: #{pointnet_forward.3} parent=0 // pred_check_branch
    %13 = sbr.rel (0) target = $region9
  $region8: #{pointnet_forward.3} parent=0 // pred_region
    _
  $region9: #{pointnet_forward.3} parent=0 // pred_fallthru
    _
  // Predicated region
  $region10: #{pointnet_forward.3} parent=0 // pred_check
    _
  $region11: #{pointnet_forward.3} parent=0 // pred_check_branch
    %15 = sbr.rel (0) target = $region13
  $region12: #{pointnet_forward.3} parent=0 // pred_region
    _
  $region13: #{pointnet_forward.3} parent=0 // pred_fallthru
    _
  // Predicated region
  $region14: #{pointnet_forward.3} parent=0 // pred_check
    _
  $region15: #{pointnet_forward.3} parent=0 // pred_check_branch
    %17 = sbr.rel (0) target = $region17
  $region16: #{pointnet_forward.3} parent=0 // pred_region
    _
  $region17: #{pointnet_forward.3} parent=0 // pred_fallthru
    _
  // Predicated region
  $region18: #{pointnet_forward.3} parent=0 // pred_check
    _
  $region19: #{pointnet_forward.3} parent=0 // pred_check_branch
    %19 = sbr.rel (0) target = $region21
  $region20: #{pointnet_forward.3} parent=0 // pred_region
    _
  $region21: #{pointnet_forward.3} parent=0 // pred_fallthru
    _
  %v20 = vld [vmem:[%s1] sm:$0xff]
  %v21 = vld [vmem:[%s1 + $0x8] sm:$0xff]
  %v22 = vld [vmem:[%s1 + $0x10] sm:$0xff]
  %v23 = vld [vmem:[%s1 + $0x18] sm:$0xff]
  %v24 = vld [vmem:[%s2] sm:$0xff]
  %v25 = vld [vmem:[%s2 + $0x8] sm:$0xff]
  %v26 = vld [vmem:[%s2 + $0x10] sm:$0xff]
  %v27 = vld [vmem:[%s2 + $0x18] sm:$0xff]
  %v28 = vld [vmem:[%s3] sm:$0xff]
  %v29 = vld [vmem:[%s3 + $0x8] sm:$0xff]
  %v30 = vld [vmem:[%s3 + $0x10] sm:$0xff]
  %v31 = vld [vmem:[%s3 + $0x18] sm:$0xff]
  %v32 = vld [vmem:[%s4] sm:$0xff]
  %v33 = vld [vmem:[%s4 + $0x8] sm:$0xff]
  %v34 = vld [vmem:[%s4 + $0x10] sm:$0xff]
  %v35 = vld [vmem:[%s4 + $0x18] sm:$0xff]
  %v36 = vld [vmem:[%s0] sm:$0x3f]
  %38 = vset.pattern.permute.xlu0 0
  %39 = vperm.xlu0 %38, %v24
  %v40 = vpop.permute.xlu0 %39
  %43 = vset.pattern.permute.xlu0 0
  %44 = vperm.xlu0 %43, %v25
  %v45 = vpop.permute.xlu0 %44
  %48 = vset.pattern.permute.xlu0 0
  %49 = vperm.xlu0 %48, %v26
  %v50 = vpop.permute.xlu0 %49
  %53 = vset.pattern.permute.xlu0 0
  %54 = vperm.xlu0 %53, %v27
  %v55 = vpop.permute.xlu0 %54
  %vm57 = vcmask 48128
  %v59 = vsel %vm57, %v20, 0
  %v62 = vsel %vm57, %v21, 0
  %v65 = vsel %vm57, %v22, 0
  %v68 = vsel %vm57, %v23, 0
  %vm70 = vcmask 1045504
  %v72 = vsel %vm70, %v36, 0
  %74 = vmatpush.msra.mxu0 0.0
  %75 = vmatpush.msra.mxu0 0.0
  %76 = vmatpush.msra.mxu0 0.0
  %77 = vmatpush.msra.mxu0 0.0
  %78 = vmatpush.msra.mxu0 0.0
  %79 = vmatpush.msra.mxu0 0.0
  %80 = vmatpush.msra.mxu0 0.0
  %81 = vmatpush.msra.mxu0 0.0
  %82 = vmatpush.msra.mxu0 0.0
  %83 = vmatpush.msra.mxu0 0.0
  %84 = vmatpush.msra.mxu0 0.0
  %85 = vmatpush.msra.mxu0 0.0
  %86 = vmatpush.msra.mxu0 0.0
  %87 = vmatpush.msra.mxu0 0.0
  %88 = vmatpush.msra.mxu0 0.0
  %89 = vmatpush.msra.mxu0 %v72
  %90 = vmatmul.f32.gmra.mxu0 %v59
  %v91 = vpop.f32.mrf.mxu0
  %v92 = vadd.f32 %v40, %v91
  %93 = vmatmul.f32.gmra.mxu0 %v62
  %v94 = vpop.f32.mrf.mxu0
  %v95 = vadd.f32 %v45, %v94
  %96 = vmatmul.f32.gmra.mxu0 %v65
  %v97 = vpop.f32.mrf.mxu0
  %v98 = vadd.f32 %v50, %v97
  %99 = vmatmul.f32.gmra.mxu0 %v68
  %v100 = vpop.f32.mrf.mxu0
  %v101 = vadd.f32 %v55, %v100
  %102 = vdwg.mxu0
  %v103 = vmax.f32 %v92, 0.0
  %v104 = vmax.f32 %v95, 0.0
  %v105 = vmax.f32 %v98, 0.0
  %v106 = vmax.f32 %v101, 0.0
  %108 = vset.pattern.permute.xlu0 0
  %109 = vperm.xlu0 %108, %v32
  %v110 = vpop.permute.xlu0 %109
  %113 = vset.pattern.permute.xlu0 0
  %114 = vperm.xlu0 %113, %v33
  %v115 = vpop.permute.xlu0 %114
  %118 = vset.pattern.permute.xlu0 0
  %119 = vperm.xlu0 %118, %v34
  %v120 = vpop.permute.xlu0 %119
  %123 = vset.pattern.permute.xlu0 0
  %124 = vperm.xlu0 %123, %v35
  %v125 = vpop.permute.xlu0 %124
  %vm127 = vcmask 261120
  %v129 = vsel %vm127, %v28, 0
  %v132 = vsel %vm127, %v29, 0
  %v135 = vsel %vm127, %v30, 0
  %v138 = vsel %vm127, %v31, 0
  %140 = vmatpush.msra.mxu0 0.0
  %141 = vmatpush.msra.mxu0 0.0
  %142 = vmatpush.msra.mxu0 0.0
  %143 = vmatpush.msra.mxu0 0.0
  %144 = vmatpush.msra.mxu0 0.0
  %145 = vmatpush.msra.mxu0 0.0
  %146 = vmatpush.msra.mxu0 0.0
  %147 = vmatpush.msra.mxu0 0.0
  %148 = vmatpush.msra.mxu0 0.0
  %149 = vmatpush.msra.mxu0 0.0
  %150 = vmatpush.msra.mxu0 0.0
  %151 = vmatpush.msra.mxu0 0.0
  %152 = vmatpush.msra.mxu0 %v106
  %153 = vmatpush.msra.mxu0 %v105
  %154 = vmatpush.msra.mxu0 %v104
  %155 = vmatpush.msra.mxu0 %v103
  %156 = vmatmul.f32.gmra.mxu0 %v129
  %v157 = vpop.f32.mrf.mxu0
  %v158 = vadd.f32 %v110, %v157
  %159 = vmatmul.f32.gmra.mxu0 %v132
  %v160 = vpop.f32.mrf.mxu0
  %v161 = vadd.f32 %v115, %v160
  %162 = vmatmul.f32.gmra.mxu0 %v135
  %v163 = vpop.f32.mrf.mxu0
  %v164 = vadd.f32 %v120, %v163
  %165 = vmatmul.f32.gmra.mxu0 %v138
  %v166 = vpop.f32.mrf.mxu0
  %v167 = vadd.f32 %v125, %v166
  %168 = vdwg.mxu0
  %s169 = scalar_lea.vmem %s0, 8
  %v170 = vld [vmem:[%s169] sm:$0x3f]
  %v172 = vsel %vm70, %v170, 0
  %174 = vmatpush.msra.mxu0 0.0
  %175 = vmatpush.msra.mxu0 0.0
  %176 = vmatpush.msra.mxu0 0.0
  %177 = vmatpush.msra.mxu0 0.0
  %178 = vmatpush.msra.mxu0 0.0
  %179 = vmatpush.msra.mxu0 0.0
  %180 = vmatpush.msra.mxu0 0.0
  %181 = vmatpush.msra.mxu0 0.0
  %182 = vmatpush.msra.mxu0 0.0
  %183 = vmatpush.msra.mxu0 0.0
  %184 = vmatpush.msra.mxu0 0.0
  %185 = vmatpush.msra.mxu0 0.0
  %186 = vmatpush.msra.mxu0 0.0
  %187 = vmatpush.msra.mxu0 0.0
  %188 = vmatpush.msra.mxu0 0.0
  %189 = vmatpush.msra.mxu0 %v172
  %190 = vmatmul.f32.gmra.mxu0 %v59
  %v191 = vpop.f32.mrf.mxu0
  %v192 = vadd.f32 %v40, %v191
  %193 = vmatmul.f32.gmra.mxu0 %v62
  %v194 = vpop.f32.mrf.mxu0
  %v195 = vadd.f32 %v45, %v194
  %196 = vmatmul.f32.gmra.mxu0 %v65
  %v197 = vpop.f32.mrf.mxu0
  %v198 = vadd.f32 %v50, %v197
  %199 = vmatmul.f32.gmra.mxu0 %v68
  %v200 = vpop.f32.mrf.mxu0
  %v201 = vadd.f32 %v55, %v200
  %202 = vdwg.mxu0
  %v203 = vmax.f32 %v192, 0.0
  %v204 = vmax.f32 %v195, 0.0
  %v205 = vmax.f32 %v198, 0.0
  %v206 = vmax.f32 %v201, 0.0
  %207 = vmatpush.msra.mxu0 0.0
  %208 = vmatpush.msra.mxu0 0.0
  %209 = vmatpush.msra.mxu0 0.0
  %210 = vmatpush.msra.mxu0 0.0
  %211 = vmatpush.msra.mxu0 0.0
  %212 = vmatpush.msra.mxu0 0.0
  %213 = vmatpush.msra.mxu0 0.0
  %214 = vmatpush.msra.mxu0 0.0
  %215 = vmatpush.msra.mxu0 0.0
  %216 = vmatpush.msra.mxu0 0.0
  %217 = vmatpush.msra.mxu0 0.0
  %218 = vmatpush.msra.mxu0 0.0
  %219 = vmatpush.msra.mxu0 %v206
  %220 = vmatpush.msra.mxu0 %v205
  %221 = vmatpush.msra.mxu0 %v204
  %222 = vmatpush.msra.mxu0 %v203
  %223 = vmatmul.f32.gmra.mxu0 %v129
  %v224 = vpop.f32.mrf.mxu0
  %v225 = vadd.f32 %v110, %v224
  %226 = vmatmul.f32.gmra.mxu0 %v132
  %v227 = vpop.f32.mrf.mxu0
  %v228 = vadd.f32 %v115, %v227
  %229 = vmatmul.f32.gmra.mxu0 %v135
  %v230 = vpop.f32.mrf.mxu0
  %v231 = vadd.f32 %v120, %v230
  %232 = vmatmul.f32.gmra.mxu0 %v138
  %v233 = vpop.f32.mrf.mxu0
  %v234 = vadd.f32 %v125, %v233
  %235 = vdwg.mxu0
  %v236 = vmax.f32 %v158, %v225
  %v237 = vmax.f32 %v161, %v228
  %v238 = vmax.f32 %v164, %v231
  %v239 = vmax.f32 %v167, %v234
  %s240 = scalar_lea.vmem %s0, 16
  %v241 = vld [vmem:[%s240] sm:$0x3f]
  %v243 = vsel %vm70, %v241, 0
  %245 = vmatpush.msra.mxu0 0.0
  %246 = vmatpush.msra.mxu0 0.0
  %247 = vmatpush.msra.mxu0 0.0
  %248 = vmatpush.msra.mxu0 0.0
  %249 = vmatpush.msra.mxu0 0.0
  %250 = vmatpush.msra.mxu0 0.0
  %251 = vmatpush.msra.mxu0 0.0
  %252 = vmatpush.msra.mxu0 0.0
  %253 = vmatpush.msra.mxu0 0.0
  %254 = vmatpush.msra.mxu0 0.0
  %255 = vmatpush.msra.mxu0 0.0
  %256 = vmatpush.msra.mxu0 0.0
  %257 = vmatpush.msra.mxu0 0.0
  %258 = vmatpush.msra.mxu0 0.0
  %259 = vmatpush.msra.mxu0 0.0
  %260 = vmatpush.msra.mxu0 %v243
  %261 = vmatmul.f32.gmra.mxu0 %v59
  %v262 = vpop.f32.mrf.mxu0
  %v263 = vadd.f32 %v40, %v262
  %264 = vmatmul.f32.gmra.mxu0 %v62
  %v265 = vpop.f32.mrf.mxu0
  %v266 = vadd.f32 %v45, %v265
  %267 = vmatmul.f32.gmra.mxu0 %v65
  %v268 = vpop.f32.mrf.mxu0
  %v269 = vadd.f32 %v50, %v268
  %270 = vmatmul.f32.gmra.mxu0 %v68
  %v271 = vpop.f32.mrf.mxu0
  %v272 = vadd.f32 %v55, %v271
  %273 = vdwg.mxu0
  %v274 = vmax.f32 %v263, 0.0
  %v275 = vmax.f32 %v266, 0.0
  %v276 = vmax.f32 %v269, 0.0
  %v277 = vmax.f32 %v272, 0.0
  %278 = vmatpush.msra.mxu0 0.0
  %279 = vmatpush.msra.mxu0 0.0
  %280 = vmatpush.msra.mxu0 0.0
  %281 = vmatpush.msra.mxu0 0.0
  %282 = vmatpush.msra.mxu0 0.0
  %283 = vmatpush.msra.mxu0 0.0
  %284 = vmatpush.msra.mxu0 0.0
  %285 = vmatpush.msra.mxu0 0.0
  %286 = vmatpush.msra.mxu0 0.0
  %287 = vmatpush.msra.mxu0 0.0
  %288 = vmatpush.msra.mxu0 0.0
  %289 = vmatpush.msra.mxu0 0.0
  %290 = vmatpush.msra.mxu0 %v277
  %291 = vmatpush.msra.mxu0 %v276
  %292 = vmatpush.msra.mxu0 %v275
  %293 = vmatpush.msra.mxu0 %v274
  %294 = vmatmul.f32.gmra.mxu0 %v129
  %v295 = vpop.f32.mrf.mxu0
  %v296 = vadd.f32 %v110, %v295
  %297 = vmatmul.f32.gmra.mxu0 %v132
  %v298 = vpop.f32.mrf.mxu0
  %v299 = vadd.f32 %v115, %v298
  %300 = vmatmul.f32.gmra.mxu0 %v135
  %v301 = vpop.f32.mrf.mxu0
  %v302 = vadd.f32 %v120, %v301
  %303 = vmatmul.f32.gmra.mxu0 %v138
  %v304 = vpop.f32.mrf.mxu0
  %v305 = vadd.f32 %v125, %v304
  %306 = vdwg.mxu0
  %v307 = vmax.f32 %v236, %v296
  %v308 = vmax.f32 %v237, %v299
  %v309 = vmax.f32 %v238, %v302
  %v310 = vmax.f32 %v239, %v305
  %s311 = scalar_lea.vmem %s0, 24
  %v312 = vld [vmem:[%s311] sm:$0x3f]
  %v314 = vsel %vm70, %v312, 0
  %316 = vmatpush.msra.mxu0 0.0
  %317 = vmatpush.msra.mxu0 0.0
  %318 = vmatpush.msra.mxu0 0.0
  %319 = vmatpush.msra.mxu0 0.0
  %320 = vmatpush.msra.mxu0 0.0
  %321 = vmatpush.msra.mxu0 0.0
  %322 = vmatpush.msra.mxu0 0.0
  %323 = vmatpush.msra.mxu0 0.0
  %324 = vmatpush.msra.mxu0 0.0
  %325 = vmatpush.msra.mxu0 0.0
  %326 = vmatpush.msra.mxu0 0.0
  %327 = vmatpush.msra.mxu0 0.0
  %328 = vmatpush.msra.mxu0 0.0
  %329 = vmatpush.msra.mxu0 0.0
  %330 = vmatpush.msra.mxu0 0.0
  %331 = vmatpush.msra.mxu0 %v314
  %332 = vmatmul.f32.gmra.mxu0 %v59
  %v333 = vpop.f32.mrf.mxu0
  %v334 = vadd.f32 %v40, %v333
  %335 = vmatmul.f32.gmra.mxu0 %v62
  %v336 = vpop.f32.mrf.mxu0
  %v337 = vadd.f32 %v45, %v336
  %338 = vmatmul.f32.gmra.mxu0 %v65
  %v339 = vpop.f32.mrf.mxu0
  %v340 = vadd.f32 %v50, %v339
  %341 = vmatmul.f32.gmra.mxu0 %v68
  %v342 = vpop.f32.mrf.mxu0
  %v343 = vadd.f32 %v55, %v342
  %344 = vdwg.mxu0
  %v345 = vmax.f32 %v334, 0.0
  %v346 = vmax.f32 %v337, 0.0
  %v347 = vmax.f32 %v340, 0.0
  %v348 = vmax.f32 %v343, 0.0
  %349 = vmatpush.msra.mxu0 0.0
  %350 = vmatpush.msra.mxu0 0.0
  %351 = vmatpush.msra.mxu0 0.0
  %352 = vmatpush.msra.mxu0 0.0
  %353 = vmatpush.msra.mxu0 0.0
  %354 = vmatpush.msra.mxu0 0.0
  %355 = vmatpush.msra.mxu0 0.0
  %356 = vmatpush.msra.mxu0 0.0
  %357 = vmatpush.msra.mxu0 0.0
  %358 = vmatpush.msra.mxu0 0.0
  %359 = vmatpush.msra.mxu0 0.0
  %360 = vmatpush.msra.mxu0 0.0
  %361 = vmatpush.msra.mxu0 %v348
  %362 = vmatpush.msra.mxu0 %v347
  %363 = vmatpush.msra.mxu0 %v346
  %364 = vmatpush.msra.mxu0 %v345
  %365 = vmatmul.f32.gmra.mxu0 %v129
  %v366 = vpop.f32.mrf.mxu0
  %v367 = vadd.f32 %v110, %v366
  %368 = vmatmul.f32.gmra.mxu0 %v132
  %v369 = vpop.f32.mrf.mxu0
  %v370 = vadd.f32 %v115, %v369
  %371 = vmatmul.f32.gmra.mxu0 %v135
  %v372 = vpop.f32.mrf.mxu0
  %v373 = vadd.f32 %v120, %v372
  %374 = vmatmul.f32.gmra.mxu0 %v138
  %v375 = vpop.f32.mrf.mxu0
  %v376 = vadd.f32 %v125, %v375
  %377 = vdwg.mxu0
  %v378 = vmax.f32 %v307, %v367
  %v379 = vmax.f32 %v308, %v370
  %v380 = vmax.f32 %v309, %v373
  %v381 = vmax.f32 %v310, %v376
  %s382 = scalar_lea.vmem %s0, 32
  %v383 = vld [vmem:[%s382] sm:$0x3f]
  %v385 = vsel %vm70, %v383, 0
  %387 = vmatpush.msra.mxu0 0.0
  %388 = vmatpush.msra.mxu0 0.0
  %389 = vmatpush.msra.mxu0 0.0
  %390 = vmatpush.msra.mxu0 0.0
  %391 = vmatpush.msra.mxu0 0.0
  %392 = vmatpush.msra.mxu0 0.0
  %393 = vmatpush.msra.mxu0 0.0
  %394 = vmatpush.msra.mxu0 0.0
  %395 = vmatpush.msra.mxu0 0.0
  %396 = vmatpush.msra.mxu0 0.0
  %397 = vmatpush.msra.mxu0 0.0
  %398 = vmatpush.msra.mxu0 0.0
  %399 = vmatpush.msra.mxu0 0.0
  %400 = vmatpush.msra.mxu0 0.0
  %401 = vmatpush.msra.mxu0 0.0
  %402 = vmatpush.msra.mxu0 %v385
  %403 = vmatmul.f32.gmra.mxu0 %v59
  %v404 = vpop.f32.mrf.mxu0
  %v405 = vadd.f32 %v40, %v404
  %406 = vmatmul.f32.gmra.mxu0 %v62
  %v407 = vpop.f32.mrf.mxu0
  %v408 = vadd.f32 %v45, %v407
  %409 = vmatmul.f32.gmra.mxu0 %v65
  %v410 = vpop.f32.mrf.mxu0
  %v411 = vadd.f32 %v50, %v410
  %412 = vmatmul.f32.gmra.mxu0 %v68
  %v413 = vpop.f32.mrf.mxu0
  %v414 = vadd.f32 %v55, %v413
  %415 = vdwg.mxu0
  %v416 = vmax.f32 %v405, 0.0
  %v417 = vmax.f32 %v408, 0.0
  %v418 = vmax.f32 %v411, 0.0
  %v419 = vmax.f32 %v414, 0.0
  %420 = vmatpush.msra.mxu0 0.0
  %421 = vmatpush.msra.mxu0 0.0
  %422 = vmatpush.msra.mxu0 0.0
  %423 = vmatpush.msra.mxu0 0.0
  %424 = vmatpush.msra.mxu0 0.0
  %425 = vmatpush.msra.mxu0 0.0
  %426 = vmatpush.msra.mxu0 0.0
  %427 = vmatpush.msra.mxu0 0.0
  %428 = vmatpush.msra.mxu0 0.0
  %429 = vmatpush.msra.mxu0 0.0
  %430 = vmatpush.msra.mxu0 0.0
  %431 = vmatpush.msra.mxu0 0.0
  %432 = vmatpush.msra.mxu0 %v419
  %433 = vmatpush.msra.mxu0 %v418
  %434 = vmatpush.msra.mxu0 %v417
  %435 = vmatpush.msra.mxu0 %v416
  %436 = vmatmul.f32.gmra.mxu0 %v129
  %v437 = vpop.f32.mrf.mxu0
  %v438 = vadd.f32 %v110, %v437
  %439 = vmatmul.f32.gmra.mxu0 %v132
  %v440 = vpop.f32.mrf.mxu0
  %v441 = vadd.f32 %v115, %v440
  %442 = vmatmul.f32.gmra.mxu0 %v135
  %v443 = vpop.f32.mrf.mxu0
  %v444 = vadd.f32 %v120, %v443
  %445 = vmatmul.f32.gmra.mxu0 %v138
  %v446 = vpop.f32.mrf.mxu0
  %v447 = vadd.f32 %v125, %v446
  %448 = vdwg.mxu0
  %v449 = vmax.f32 %v378, %v438
  %v450 = vmax.f32 %v379, %v441
  %v451 = vmax.f32 %v380, %v444
  %v452 = vmax.f32 %v381, %v447
  %s453 = scalar_lea.vmem %s0, 40
  %v454 = vld [vmem:[%s453] sm:$0x3f]
  %v456 = vsel %vm70, %v454, 0
  %458 = vmatpush.msra.mxu0 0.0
  %459 = vmatpush.msra.mxu0 0.0
  %460 = vmatpush.msra.mxu0 0.0
  %461 = vmatpush.msra.mxu0 0.0
  %462 = vmatpush.msra.mxu0 0.0
  %463 = vmatpush.msra.mxu0 0.0
  %464 = vmatpush.msra.mxu0 0.0
  %465 = vmatpush.msra.mxu0 0.0
  %466 = vmatpush.msra.mxu0 0.0
  %467 = vmatpush.msra.mxu0 0.0
  %468 = vmatpush.msra.mxu0 0.0
  %469 = vmatpush.msra.mxu0 0.0
  %470 = vmatpush.msra.mxu0 0.0
  %471 = vmatpush.msra.mxu0 0.0
  %472 = vmatpush.msra.mxu0 0.0
  %473 = vmatpush.msra.mxu0 %v456
  %474 = vmatmul.f32.gmra.mxu0 %v59
  %v475 = vpop.f32.mrf.mxu0
  %v476 = vadd.f32 %v40, %v475
  %477 = vmatmul.f32.gmra.mxu0 %v62
  %v478 = vpop.f32.mrf.mxu0
  %v479 = vadd.f32 %v45, %v478
  %480 = vmatmul.f32.gmra.mxu0 %v65
  %v481 = vpop.f32.mrf.mxu0
  %v482 = vadd.f32 %v50, %v481
  %483 = vmatmul.f32.gmra.mxu0 %v68
  %v484 = vpop.f32.mrf.mxu0
  %v485 = vadd.f32 %v55, %v484
  %486 = vdwg.mxu0
  %v487 = vmax.f32 %v476, 0.0
  %v488 = vmax.f32 %v479, 0.0
  %v489 = vmax.f32 %v482, 0.0
  %v490 = vmax.f32 %v485, 0.0
  %491 = vmatpush.msra.mxu0 0.0
  %492 = vmatpush.msra.mxu0 0.0
  %493 = vmatpush.msra.mxu0 0.0
  %494 = vmatpush.msra.mxu0 0.0
  %495 = vmatpush.msra.mxu0 0.0
  %496 = vmatpush.msra.mxu0 0.0
  %497 = vmatpush.msra.mxu0 0.0
  %498 = vmatpush.msra.mxu0 0.0
  %499 = vmatpush.msra.mxu0 0.0
  %500 = vmatpush.msra.mxu0 0.0
  %501 = vmatpush.msra.mxu0 0.0
  %502 = vmatpush.msra.mxu0 0.0
  %503 = vmatpush.msra.mxu0 %v490
  %504 = vmatpush.msra.mxu0 %v489
  %505 = vmatpush.msra.mxu0 %v488
  %506 = vmatpush.msra.mxu0 %v487
  %507 = vmatmul.f32.gmra.mxu0 %v129
  %v508 = vpop.f32.mrf.mxu0
  %v509 = vadd.f32 %v110, %v508
  %510 = vmatmul.f32.gmra.mxu0 %v132
  %v511 = vpop.f32.mrf.mxu0
  %v512 = vadd.f32 %v115, %v511
  %513 = vmatmul.f32.gmra.mxu0 %v135
  %v514 = vpop.f32.mrf.mxu0
  %v515 = vadd.f32 %v120, %v514
  %516 = vmatmul.f32.gmra.mxu0 %v138
  %v517 = vpop.f32.mrf.mxu0
  %v518 = vadd.f32 %v125, %v517
  %519 = vdwg.mxu0
  %v520 = vmax.f32 %v449, %v509
  %v521 = vmax.f32 %v450, %v512
  %v522 = vmax.f32 %v451, %v515
  %v523 = vmax.f32 %v452, %v518
  %s524 = scalar_lea.vmem %s0, 48
  %v525 = vld [vmem:[%s524] sm:$0x3f]
  %v527 = vsel %vm70, %v525, 0
  %529 = vmatpush.msra.mxu0 0.0
  %530 = vmatpush.msra.mxu0 0.0
  %531 = vmatpush.msra.mxu0 0.0
  %532 = vmatpush.msra.mxu0 0.0
  %533 = vmatpush.msra.mxu0 0.0
  %534 = vmatpush.msra.mxu0 0.0
  %535 = vmatpush.msra.mxu0 0.0
  %536 = vmatpush.msra.mxu0 0.0
  %537 = vmatpush.msra.mxu0 0.0
  %538 = vmatpush.msra.mxu0 0.0
  %539 = vmatpush.msra.mxu0 0.0
  %540 = vmatpush.msra.mxu0 0.0
  %541 = vmatpush.msra.mxu0 0.0
  %542 = vmatpush.msra.mxu0 0.0
  %543 = vmatpush.msra.mxu0 0.0
  %544 = vmatpush.msra.mxu0 %v527
  %545 = vmatmul.f32.gmra.mxu0 %v59
  %v546 = vpop.f32.mrf.mxu0
  %v547 = vadd.f32 %v40, %v546
  %548 = vmatmul.f32.gmra.mxu0 %v62
  %v549 = vpop.f32.mrf.mxu0
  %v550 = vadd.f32 %v45, %v549
  %551 = vmatmul.f32.gmra.mxu0 %v65
  %v552 = vpop.f32.mrf.mxu0
  %v553 = vadd.f32 %v50, %v552
  %554 = vmatmul.f32.gmra.mxu0 %v68
  %v555 = vpop.f32.mrf.mxu0
  %v556 = vadd.f32 %v55, %v555
  %557 = vdwg.mxu0
  %v558 = vmax.f32 %v547, 0.0
  %v559 = vmax.f32 %v550, 0.0
  %v560 = vmax.f32 %v553, 0.0
  %v561 = vmax.f32 %v556, 0.0
  %562 = vmatpush.msra.mxu0 0.0
  %563 = vmatpush.msra.mxu0 0.0
  %564 = vmatpush.msra.mxu0 0.0
  %565 = vmatpush.msra.mxu0 0.0
  %566 = vmatpush.msra.mxu0 0.0
  %567 = vmatpush.msra.mxu0 0.0
  %568 = vmatpush.msra.mxu0 0.0
  %569 = vmatpush.msra.mxu0 0.0
  %570 = vmatpush.msra.mxu0 0.0
  %571 = vmatpush.msra.mxu0 0.0
  %572 = vmatpush.msra.mxu0 0.0
  %573 = vmatpush.msra.mxu0 0.0
  %574 = vmatpush.msra.mxu0 %v561
  %575 = vmatpush.msra.mxu0 %v560
  %576 = vmatpush.msra.mxu0 %v559
  %577 = vmatpush.msra.mxu0 %v558
  %578 = vmatmul.f32.gmra.mxu0 %v129
  %v579 = vpop.f32.mrf.mxu0
  %v580 = vadd.f32 %v110, %v579
  %581 = vmatmul.f32.gmra.mxu0 %v132
  %v582 = vpop.f32.mrf.mxu0
  %v583 = vadd.f32 %v115, %v582
  %584 = vmatmul.f32.gmra.mxu0 %v135
  %v585 = vpop.f32.mrf.mxu0
  %v586 = vadd.f32 %v120, %v585
  %587 = vmatmul.f32.gmra.mxu0 %v138
  %v588 = vpop.f32.mrf.mxu0
  %v589 = vadd.f32 %v125, %v588
  %590 = vdwg.mxu0
  %v591 = vmax.f32 %v520, %v580
  %v592 = vmax.f32 %v521, %v583
  %v593 = vmax.f32 %v522, %v586
  %v594 = vmax.f32 %v523, %v589
  %s595 = scalar_lea.vmem %s0, 56
  %v596 = vld [vmem:[%s595] sm:$0x3f]
  %v598 = vsel %vm70, %v596, 0
  %600 = vmatpush.msra.mxu0 0.0
  %601 = vmatpush.msra.mxu0 0.0
  %602 = vmatpush.msra.mxu0 0.0
  %603 = vmatpush.msra.mxu0 0.0
  %604 = vmatpush.msra.mxu0 0.0
  %605 = vmatpush.msra.mxu0 0.0
  %606 = vmatpush.msra.mxu0 0.0
  %607 = vmatpush.msra.mxu0 0.0
  %608 = vmatpush.msra.mxu0 0.0
  %609 = vmatpush.msra.mxu0 0.0
  %610 = vmatpush.msra.mxu0 0.0
  %611 = vmatpush.msra.mxu0 0.0
  %612 = vmatpush.msra.mxu0 0.0
  %613 = vmatpush.msra.mxu0 0.0
  %614 = vmatpush.msra.mxu0 0.0
  %615 = vmatpush.msra.mxu0 %v598
  %616 = vmatmul.f32.gmra.mxu0 %v59
  %v617 = vpop.f32.mrf.mxu0
  %v618 = vadd.f32 %v40, %v617
  %619 = vmatmul.f32.gmra.mxu0 %v62
  %v620 = vpop.f32.mrf.mxu0
  %v621 = vadd.f32 %v45, %v620
  %622 = vmatmul.f32.gmra.mxu0 %v65
  %v623 = vpop.f32.mrf.mxu0
  %v624 = vadd.f32 %v50, %v623
  %625 = vmatmul.f32.gmra.mxu0 %v68
  %v626 = vpop.f32.mrf.mxu0
  %v627 = vadd.f32 %v55, %v626
  %628 = vdwg.mxu0
  %v629 = vmax.f32 %v618, 0.0
  %v630 = vmax.f32 %v621, 0.0
  %v631 = vmax.f32 %v624, 0.0
  %v632 = vmax.f32 %v627, 0.0
  %633 = vmatpush.msra.mxu0 0.0
  %634 = vmatpush.msra.mxu0 0.0
  %635 = vmatpush.msra.mxu0 0.0
  %636 = vmatpush.msra.mxu0 0.0
  %637 = vmatpush.msra.mxu0 0.0
  %638 = vmatpush.msra.mxu0 0.0
  %639 = vmatpush.msra.mxu0 0.0
  %640 = vmatpush.msra.mxu0 0.0
  %641 = vmatpush.msra.mxu0 0.0
  %642 = vmatpush.msra.mxu0 0.0
  %643 = vmatpush.msra.mxu0 0.0
  %644 = vmatpush.msra.mxu0 0.0
  %645 = vmatpush.msra.mxu0 %v632
  %646 = vmatpush.msra.mxu0 %v631
  %647 = vmatpush.msra.mxu0 %v630
  %648 = vmatpush.msra.mxu0 %v629
  %649 = vmatmul.f32.gmra.mxu0 %v129
  %v650 = vpop.f32.mrf.mxu0
  %v651 = vadd.f32 %v110, %v650
  %652 = vmatmul.f32.gmra.mxu0 %v132
  %v653 = vpop.f32.mrf.mxu0
  %v654 = vadd.f32 %v115, %v653
  %655 = vmatmul.f32.gmra.mxu0 %v135
  %v656 = vpop.f32.mrf.mxu0
  %v657 = vadd.f32 %v120, %v656
  %658 = vmatmul.f32.gmra.mxu0 %v138
  %v659 = vpop.f32.mrf.mxu0
  %v660 = vadd.f32 %v125, %v659
  %661 = vdwg.mxu0
  %v662 = vmax.f32 %v591, %v651
  %v663 = vmax.f32 %v592, %v654
  %v664 = vmax.f32 %v593, %v657
  %v665 = vmax.f32 %v594, %v660
  %s666 = scalar_lea.vmem %s0, 64
  %v667 = vld [vmem:[%s666] sm:$0x3f]
  %v669 = vsel %vm70, %v667, 0
  %671 = vmatpush.msra.mxu0 0.0
  %672 = vmatpush.msra.mxu0 0.0
  %673 = vmatpush.msra.mxu0 0.0
  %674 = vmatpush.msra.mxu0 0.0
  %675 = vmatpush.msra.mxu0 0.0
  %676 = vmatpush.msra.mxu0 0.0
  %677 = vmatpush.msra.mxu0 0.0
  %678 = vmatpush.msra.mxu0 0.0
  %679 = vmatpush.msra.mxu0 0.0
  %680 = vmatpush.msra.mxu0 0.0
  %681 = vmatpush.msra.mxu0 0.0
  %682 = vmatpush.msra.mxu0 0.0
  %683 = vmatpush.msra.mxu0 0.0
  %684 = vmatpush.msra.mxu0 0.0
  %685 = vmatpush.msra.mxu0 0.0
  %686 = vmatpush.msra.mxu0 %v669
  %687 = vmatmul.f32.gmra.mxu0 %v59
  %v688 = vpop.f32.mrf.mxu0
  %v689 = vadd.f32 %v40, %v688
  %690 = vmatmul.f32.gmra.mxu0 %v62
  %v691 = vpop.f32.mrf.mxu0
  %v692 = vadd.f32 %v45, %v691
  %693 = vmatmul.f32.gmra.mxu0 %v65
  %v694 = vpop.f32.mrf.mxu0
  %v695 = vadd.f32 %v50, %v694
  %696 = vmatmul.f32.gmra.mxu0 %v68
  %v697 = vpop.f32.mrf.mxu0
  %v698 = vadd.f32 %v55, %v697
  %699 = vdwg.mxu0
  %v700 = vmax.f32 %v689, 0.0
  %v701 = vmax.f32 %v692, 0.0
  %v702 = vmax.f32 %v695, 0.0
  %v703 = vmax.f32 %v698, 0.0
  %704 = vmatpush.msra.mxu0 0.0
  %705 = vmatpush.msra.mxu0 0.0
  %706 = vmatpush.msra.mxu0 0.0
  %707 = vmatpush.msra.mxu0 0.0
  %708 = vmatpush.msra.mxu0 0.0
  %709 = vmatpush.msra.mxu0 0.0
  %710 = vmatpush.msra.mxu0 0.0
  %711 = vmatpush.msra.mxu0 0.0
  %712 = vmatpush.msra.mxu0 0.0
  %713 = vmatpush.msra.mxu0 0.0
  %714 = vmatpush.msra.mxu0 0.0
  %715 = vmatpush.msra.mxu0 0.0
  %716 = vmatpush.msra.mxu0 %v703
  %717 = vmatpush.msra.mxu0 %v702
  %718 = vmatpush.msra.mxu0 %v701
  %719 = vmatpush.msra.mxu0 %v700
  %720 = vmatmul.f32.gmra.mxu0 %v129
  %v721 = vpop.f32.mrf.mxu0
  %v722 = vadd.f32 %v110, %v721
  %723 = vmatmul.f32.gmra.mxu0 %v132
  %v724 = vpop.f32.mrf.mxu0
  %v725 = vadd.f32 %v115, %v724
  %726 = vmatmul.f32.gmra.mxu0 %v135
  %v727 = vpop.f32.mrf.mxu0
  %v728 = vadd.f32 %v120, %v727
  %729 = vmatmul.f32.gmra.mxu0 %v138
  %v730 = vpop.f32.mrf.mxu0
  %v731 = vadd.f32 %v125, %v730
  %732 = vdwg.mxu0
  %v733 = vmax.f32 %v662, %v722
  %v734 = vmax.f32 %v663, %v725
  %v735 = vmax.f32 %v664, %v728
  %v736 = vmax.f32 %v665, %v731
  %s737 = scalar_lea.vmem %s0, 72
  %v738 = vld [vmem:[%s737] sm:$0x3f]
  %v740 = vsel %vm70, %v738, 0
  %742 = vmatpush.msra.mxu0 0.0
  %743 = vmatpush.msra.mxu0 0.0
  %744 = vmatpush.msra.mxu0 0.0
  %745 = vmatpush.msra.mxu0 0.0
  %746 = vmatpush.msra.mxu0 0.0
  %747 = vmatpush.msra.mxu0 0.0
  %748 = vmatpush.msra.mxu0 0.0
  %749 = vmatpush.msra.mxu0 0.0
  %750 = vmatpush.msra.mxu0 0.0
  %751 = vmatpush.msra.mxu0 0.0
  %752 = vmatpush.msra.mxu0 0.0
  %753 = vmatpush.msra.mxu0 0.0
  %754 = vmatpush.msra.mxu0 0.0
  %755 = vmatpush.msra.mxu0 0.0
  %756 = vmatpush.msra.mxu0 0.0
  %757 = vmatpush.msra.mxu0 %v740
  %758 = vmatmul.f32.gmra.mxu0 %v59
  %v759 = vpop.f32.mrf.mxu0
  %v760 = vadd.f32 %v40, %v759
  %761 = vmatmul.f32.gmra.mxu0 %v62
  %v762 = vpop.f32.mrf.mxu0
  %v763 = vadd.f32 %v45, %v762
  %764 = vmatmul.f32.gmra.mxu0 %v65
  %v765 = vpop.f32.mrf.mxu0
  %v766 = vadd.f32 %v50, %v765
  %767 = vmatmul.f32.gmra.mxu0 %v68
  %v768 = vpop.f32.mrf.mxu0
  %v769 = vadd.f32 %v55, %v768
  %770 = vdwg.mxu0
  %v771 = vmax.f32 %v760, 0.0
  %v772 = vmax.f32 %v763, 0.0
  %v773 = vmax.f32 %v766, 0.0
  %v774 = vmax.f32 %v769, 0.0
  %775 = vmatpush.msra.mxu0 0.0
  %776 = vmatpush.msra.mxu0 0.0
  %777 = vmatpush.msra.mxu0 0.0
  %778 = vmatpush.msra.mxu0 0.0
  %779 = vmatpush.msra.mxu0 0.0
  %780 = vmatpush.msra.mxu0 0.0
  %781 = vmatpush.msra.mxu0 0.0
  %782 = vmatpush.msra.mxu0 0.0
  %783 = vmatpush.msra.mxu0 0.0
  %784 = vmatpush.msra.mxu0 0.0
  %785 = vmatpush.msra.mxu0 0.0
  %786 = vmatpush.msra.mxu0 0.0
  %787 = vmatpush.msra.mxu0 %v774
  %788 = vmatpush.msra.mxu0 %v773
  %789 = vmatpush.msra.mxu0 %v772
  %790 = vmatpush.msra.mxu0 %v771
  %791 = vmatmul.f32.gmra.mxu0 %v129
  %v792 = vpop.f32.mrf.mxu0
  %v793 = vadd.f32 %v110, %v792
  %794 = vmatmul.f32.gmra.mxu0 %v132
  %v795 = vpop.f32.mrf.mxu0
  %v796 = vadd.f32 %v115, %v795
  %797 = vmatmul.f32.gmra.mxu0 %v135
  %v798 = vpop.f32.mrf.mxu0
  %v799 = vadd.f32 %v120, %v798
  %800 = vmatmul.f32.gmra.mxu0 %v138
  %v801 = vpop.f32.mrf.mxu0
  %v802 = vadd.f32 %v125, %v801
  %803 = vdwg.mxu0
  %v804 = vmax.f32 %v733, %v793
  %v805 = vmax.f32 %v734, %v796
  %v806 = vmax.f32 %v735, %v799
  %v807 = vmax.f32 %v736, %v802
  %s808 = scalar_lea.vmem %s0, 80
  %v809 = vld [vmem:[%s808] sm:$0x3f]
  %v811 = vsel %vm70, %v809, 0
  %813 = vmatpush.msra.mxu0 0.0
  %814 = vmatpush.msra.mxu0 0.0
  %815 = vmatpush.msra.mxu0 0.0
  %816 = vmatpush.msra.mxu0 0.0
  %817 = vmatpush.msra.mxu0 0.0
  %818 = vmatpush.msra.mxu0 0.0
  %819 = vmatpush.msra.mxu0 0.0
  %820 = vmatpush.msra.mxu0 0.0
  %821 = vmatpush.msra.mxu0 0.0
  %822 = vmatpush.msra.mxu0 0.0
  %823 = vmatpush.msra.mxu0 0.0
  %824 = vmatpush.msra.mxu0 0.0
  %825 = vmatpush.msra.mxu0 0.0
  %826 = vmatpush.msra.mxu0 0.0
  %827 = vmatpush.msra.mxu0 0.0
  %828 = vmatpush.msra.mxu0 %v811
  %829 = vmatmul.f32.gmra.mxu0 %v59
  %v830 = vpop.f32.mrf.mxu0
  %v831 = vadd.f32 %v40, %v830
  %832 = vmatmul.f32.gmra.mxu0 %v62
  %v833 = vpop.f32.mrf.mxu0
  %v834 = vadd.f32 %v45, %v833
  %835 = vmatmul.f32.gmra.mxu0 %v65
  %v836 = vpop.f32.mrf.mxu0
  %v837 = vadd.f32 %v50, %v836
  %838 = vmatmul.f32.gmra.mxu0 %v68
  %v839 = vpop.f32.mrf.mxu0
  %v840 = vadd.f32 %v55, %v839
  %841 = vdwg.mxu0
  %v842 = vmax.f32 %v831, 0.0
  %v843 = vmax.f32 %v834, 0.0
  %v844 = vmax.f32 %v837, 0.0
  %v845 = vmax.f32 %v840, 0.0
  %846 = vmatpush.msra.mxu0 0.0
  %847 = vmatpush.msra.mxu0 0.0
  %848 = vmatpush.msra.mxu0 0.0
  %849 = vmatpush.msra.mxu0 0.0
  %850 = vmatpush.msra.mxu0 0.0
  %851 = vmatpush.msra.mxu0 0.0
  %852 = vmatpush.msra.mxu0 0.0
  %853 = vmatpush.msra.mxu0 0.0
  %854 = vmatpush.msra.mxu0 0.0
  %855 = vmatpush.msra.mxu0 0.0
  %856 = vmatpush.msra.mxu0 0.0
  %857 = vmatpush.msra.mxu0 0.0
  %858 = vmatpush.msra.mxu0 %v845
  %859 = vmatpush.msra.mxu0 %v844
  %860 = vmatpush.msra.mxu0 %v843
  %861 = vmatpush.msra.mxu0 %v842
  %862 = vmatmul.f32.gmra.mxu0 %v129
  %v863 = vpop.f32.mrf.mxu0
  %v864 = vadd.f32 %v110, %v863
  %865 = vmatmul.f32.gmra.mxu0 %v132
  %v866 = vpop.f32.mrf.mxu0
  %v867 = vadd.f32 %v115, %v866
  %868 = vmatmul.f32.gmra.mxu0 %v135
  %v869 = vpop.f32.mrf.mxu0
  %v870 = vadd.f32 %v120, %v869
  %871 = vmatmul.f32.gmra.mxu0 %v138
  %v872 = vpop.f32.mrf.mxu0
  %v873 = vadd.f32 %v125, %v872
  %874 = vdwg.mxu0
  %v875 = vmax.f32 %v804, %v864
  %v876 = vmax.f32 %v805, %v867
  %v877 = vmax.f32 %v806, %v870
  %v878 = vmax.f32 %v807, %v873
  %s879 = scalar_lea.vmem %s0, 88
  %v880 = vld [vmem:[%s879] sm:$0x3f]
  %v882 = vsel %vm70, %v880, 0
  %884 = vmatpush.msra.mxu0 0.0
  %885 = vmatpush.msra.mxu0 0.0
  %886 = vmatpush.msra.mxu0 0.0
  %887 = vmatpush.msra.mxu0 0.0
  %888 = vmatpush.msra.mxu0 0.0
  %889 = vmatpush.msra.mxu0 0.0
  %890 = vmatpush.msra.mxu0 0.0
  %891 = vmatpush.msra.mxu0 0.0
  %892 = vmatpush.msra.mxu0 0.0
  %893 = vmatpush.msra.mxu0 0.0
  %894 = vmatpush.msra.mxu0 0.0
  %895 = vmatpush.msra.mxu0 0.0
  %896 = vmatpush.msra.mxu0 0.0
  %897 = vmatpush.msra.mxu0 0.0
  %898 = vmatpush.msra.mxu0 0.0
  %899 = vmatpush.msra.mxu0 %v882
  %900 = vmatmul.f32.gmra.mxu0 %v59
  %v901 = vpop.f32.mrf.mxu0
  %v902 = vadd.f32 %v40, %v901
  %903 = vmatmul.f32.gmra.mxu0 %v62
  %v904 = vpop.f32.mrf.mxu0
  %v905 = vadd.f32 %v45, %v904
  %906 = vmatmul.f32.gmra.mxu0 %v65
  %v907 = vpop.f32.mrf.mxu0
  %v908 = vadd.f32 %v50, %v907
  %909 = vmatmul.f32.gmra.mxu0 %v68
  %v910 = vpop.f32.mrf.mxu0
  %v911 = vadd.f32 %v55, %v910
  %912 = vdwg.mxu0
  %v913 = vmax.f32 %v902, 0.0
  %v914 = vmax.f32 %v905, 0.0
  %v915 = vmax.f32 %v908, 0.0
  %v916 = vmax.f32 %v911, 0.0
  %917 = vmatpush.msra.mxu0 0.0
  %918 = vmatpush.msra.mxu0 0.0
  %919 = vmatpush.msra.mxu0 0.0
  %920 = vmatpush.msra.mxu0 0.0
  %921 = vmatpush.msra.mxu0 0.0
  %922 = vmatpush.msra.mxu0 0.0
  %923 = vmatpush.msra.mxu0 0.0
  %924 = vmatpush.msra.mxu0 0.0
  %925 = vmatpush.msra.mxu0 0.0
  %926 = vmatpush.msra.mxu0 0.0
  %927 = vmatpush.msra.mxu0 0.0
  %928 = vmatpush.msra.mxu0 0.0
  %929 = vmatpush.msra.mxu0 %v916
  %930 = vmatpush.msra.mxu0 %v915
  %931 = vmatpush.msra.mxu0 %v914
  %932 = vmatpush.msra.mxu0 %v913
  %933 = vmatmul.f32.gmra.mxu0 %v129
  %v934 = vpop.f32.mrf.mxu0
  %v935 = vadd.f32 %v110, %v934
  %936 = vmatmul.f32.gmra.mxu0 %v132
  %v937 = vpop.f32.mrf.mxu0
  %v938 = vadd.f32 %v115, %v937
  %939 = vmatmul.f32.gmra.mxu0 %v135
  %v940 = vpop.f32.mrf.mxu0
  %v941 = vadd.f32 %v120, %v940
  %942 = vmatmul.f32.gmra.mxu0 %v138
  %v943 = vpop.f32.mrf.mxu0
  %v944 = vadd.f32 %v125, %v943
  %945 = vdwg.mxu0
  %v946 = vmax.f32 %v875, %v935
  %v947 = vmax.f32 %v876, %v938
  %v948 = vmax.f32 %v877, %v941
  %v949 = vmax.f32 %v878, %v944
  %s950 = scalar_lea.vmem %s0, 96
  %v951 = vld [vmem:[%s950] sm:$0x3f]
  %v953 = vsel %vm70, %v951, 0
  %955 = vmatpush.msra.mxu0 0.0
  %956 = vmatpush.msra.mxu0 0.0
  %957 = vmatpush.msra.mxu0 0.0
  %958 = vmatpush.msra.mxu0 0.0
  %959 = vmatpush.msra.mxu0 0.0
  %960 = vmatpush.msra.mxu0 0.0
  %961 = vmatpush.msra.mxu0 0.0
  %962 = vmatpush.msra.mxu0 0.0
  %963 = vmatpush.msra.mxu0 0.0
  %964 = vmatpush.msra.mxu0 0.0
  %965 = vmatpush.msra.mxu0 0.0
  %966 = vmatpush.msra.mxu0 0.0
  %967 = vmatpush.msra.mxu0 0.0
  %968 = vmatpush.msra.mxu0 0.0
  %969 = vmatpush.msra.mxu0 0.0
  %970 = vmatpush.msra.mxu0 %v953
  %971 = vmatmul.f32.gmra.mxu0 %v59
  %v972 = vpop.f32.mrf.mxu0
  %v973 = vadd.f32 %v40, %v972
  %974 = vmatmul.f32.gmra.mxu0 %v62
  %v975 = vpop.f32.mrf.mxu0
  %v976 = vadd.f32 %v45, %v975
  %977 = vmatmul.f32.gmra.mxu0 %v65
  %v978 = vpop.f32.mrf.mxu0
  %v979 = vadd.f32 %v50, %v978
  %980 = vmatmul.f32.gmra.mxu0 %v68
  %v981 = vpop.f32.mrf.mxu0
  %v982 = vadd.f32 %v55, %v981
  %983 = vdwg.mxu0
  %v984 = vmax.f32 %v973, 0.0
  %v985 = vmax.f32 %v976, 0.0
  %v986 = vmax.f32 %v979, 0.0
  %v987 = vmax.f32 %v982, 0.0
  %988 = vmatpush.msra.mxu0 0.0
  %989 = vmatpush.msra.mxu0 0.0
  %990 = vmatpush.msra.mxu0 0.0
  %991 = vmatpush.msra.mxu0 0.0
  %992 = vmatpush.msra.mxu0 0.0
  %993 = vmatpush.msra.mxu0 0.0
  %994 = vmatpush.msra.mxu0 0.0
  %995 = vmatpush.msra.mxu0 0.0
  %996 = vmatpush.msra.mxu0 0.0
  %997 = vmatpush.msra.mxu0 0.0
  %998 = vmatpush.msra.mxu0 0.0
  %999 = vmatpush.msra.mxu0 0.0
  %1000 = vmatpush.msra.mxu0 %v987
  %1001 = vmatpush.msra.mxu0 %v986
  %1002 = vmatpush.msra.mxu0 %v985
  %1003 = vmatpush.msra.mxu0 %v984
  %1004 = vmatmul.f32.gmra.mxu0 %v129
  %v1005 = vpop.f32.mrf.mxu0
  %v1006 = vadd.f32 %v110, %v1005
  %1007 = vmatmul.f32.gmra.mxu0 %v132
  %v1008 = vpop.f32.mrf.mxu0
  %v1009 = vadd.f32 %v115, %v1008
  %1010 = vmatmul.f32.gmra.mxu0 %v135
  %v1011 = vpop.f32.mrf.mxu0
  %v1012 = vadd.f32 %v120, %v1011
  %1013 = vmatmul.f32.gmra.mxu0 %v138
  %v1014 = vpop.f32.mrf.mxu0
  %v1015 = vadd.f32 %v125, %v1014
  %1016 = vdwg.mxu0
  %v1017 = vmax.f32 %v946, %v1006
  %v1018 = vmax.f32 %v947, %v1009
  %v1019 = vmax.f32 %v948, %v1012
  %v1020 = vmax.f32 %v949, %v1015
  %s1021 = scalar_lea.vmem %s0, 104
  %v1022 = vld [vmem:[%s1021] sm:$0x3f]
  %v1024 = vsel %vm70, %v1022, 0
  %1026 = vmatpush.msra.mxu0 0.0
  %1027 = vmatpush.msra.mxu0 0.0
  %1028 = vmatpush.msra.mxu0 0.0
  %1029 = vmatpush.msra.mxu0 0.0
  %1030 = vmatpush.msra.mxu0 0.0
  %1031 = vmatpush.msra.mxu0 0.0
  %1032 = vmatpush.msra.mxu0 0.0
  %1033 = vmatpush.msra.mxu0 0.0
  %1034 = vmatpush.msra.mxu0 0.0
  %1035 = vmatpush.msra.mxu0 0.0
  %1036 = vmatpush.msra.mxu0 0.0
  %1037 = vmatpush.msra.mxu0 0.0
  %1038 = vmatpush.msra.mxu0 0.0
  %1039 = vmatpush.msra.mxu0 0.0
  %1040 = vmatpush.msra.mxu0 0.0
  %1041 = vmatpush.msra.mxu0 %v1024
  %1042 = vmatmul.f32.gmra.mxu0 %v59
  %v1043 = vpop.f32.mrf.mxu0
  %v1044 = vadd.f32 %v40, %v1043
  %1045 = vmatmul.f32.gmra.mxu0 %v62
  %v1046 = vpop.f32.mrf.mxu0
  %v1047 = vadd.f32 %v45, %v1046
  %1048 = vmatmul.f32.gmra.mxu0 %v65
  %v1049 = vpop.f32.mrf.mxu0
  %v1050 = vadd.f32 %v50, %v1049
  %1051 = vmatmul.f32.gmra.mxu0 %v68
  %v1052 = vpop.f32.mrf.mxu0
  %v1053 = vadd.f32 %v55, %v1052
  %1054 = vdwg.mxu0
  %v1055 = vmax.f32 %v1044, 0.0
  %v1056 = vmax.f32 %v1047, 0.0
  %v1057 = vmax.f32 %v1050, 0.0
  %v1058 = vmax.f32 %v1053, 0.0
  %1059 = vmatpush.msra.mxu0 0.0
  %1060 = vmatpush.msra.mxu0 0.0
  %1061 = vmatpush.msra.mxu0 0.0
  %1062 = vmatpush.msra.mxu0 0.0
  %1063 = vmatpush.msra.mxu0 0.0
  %1064 = vmatpush.msra.mxu0 0.0
  %1065 = vmatpush.msra.mxu0 0.0
  %1066 = vmatpush.msra.mxu0 0.0
  %1067 = vmatpush.msra.mxu0 0.0
  %1068 = vmatpush.msra.mxu0 0.0
  %1069 = vmatpush.msra.mxu0 0.0
  %1070 = vmatpush.msra.mxu0 0.0
  %1071 = vmatpush.msra.mxu0 %v1058
  %1072 = vmatpush.msra.mxu0 %v1057
  %1073 = vmatpush.msra.mxu0 %v1056
  %1074 = vmatpush.msra.mxu0 %v1055
  %1075 = vmatmul.f32.gmra.mxu0 %v129
  %v1076 = vpop.f32.mrf.mxu0
  %v1077 = vadd.f32 %v110, %v1076
  %1078 = vmatmul.f32.gmra.mxu0 %v132
  %v1079 = vpop.f32.mrf.mxu0
  %v1080 = vadd.f32 %v115, %v1079
  %1081 = vmatmul.f32.gmra.mxu0 %v135
  %v1082 = vpop.f32.mrf.mxu0
  %v1083 = vadd.f32 %v120, %v1082
  %1084 = vmatmul.f32.gmra.mxu0 %v138
  %v1085 = vpop.f32.mrf.mxu0
  %v1086 = vadd.f32 %v125, %v1085
  %1087 = vdwg.mxu0
  %v1088 = vmax.f32 %v1017, %v1077
  %v1089 = vmax.f32 %v1018, %v1080
  %v1090 = vmax.f32 %v1019, %v1083
  %v1091 = vmax.f32 %v1020, %v1086
  %s1092 = scalar_lea.vmem %s0, 112
  %v1093 = vld [vmem:[%s1092] sm:$0x3f]
  %v1095 = vsel %vm70, %v1093, 0
  %1097 = vmatpush.msra.mxu0 0.0
  %1098 = vmatpush.msra.mxu0 0.0
  %1099 = vmatpush.msra.mxu0 0.0
  %1100 = vmatpush.msra.mxu0 0.0
  %1101 = vmatpush.msra.mxu0 0.0
  %1102 = vmatpush.msra.mxu0 0.0
  %1103 = vmatpush.msra.mxu0 0.0
  %1104 = vmatpush.msra.mxu0 0.0
  %1105 = vmatpush.msra.mxu0 0.0
  %1106 = vmatpush.msra.mxu0 0.0
  %1107 = vmatpush.msra.mxu0 0.0
  %1108 = vmatpush.msra.mxu0 0.0
  %1109 = vmatpush.msra.mxu0 0.0
  %1110 = vmatpush.msra.mxu0 0.0
  %1111 = vmatpush.msra.mxu0 0.0
  %1112 = vmatpush.msra.mxu0 %v1095
  %1113 = vmatmul.f32.gmra.mxu0 %v59
  %v1114 = vpop.f32.mrf.mxu0
  %v1115 = vadd.f32 %v40, %v1114
  %1116 = vmatmul.f32.gmra.mxu0 %v62
  %v1117 = vpop.f32.mrf.mxu0
  %v1118 = vadd.f32 %v45, %v1117
  %1119 = vmatmul.f32.gmra.mxu0 %v65
  %v1120 = vpop.f32.mrf.mxu0
  %v1121 = vadd.f32 %v50, %v1120
  %1122 = vmatmul.f32.gmra.mxu0 %v68
  %v1123 = vpop.f32.mrf.mxu0
  %v1124 = vadd.f32 %v55, %v1123
  %1125 = vdwg.mxu0
  %v1126 = vmax.f32 %v1115, 0.0
  %v1127 = vmax.f32 %v1118, 0.0
  %v1128 = vmax.f32 %v1121, 0.0
  %v1129 = vmax.f32 %v1124, 0.0
  %1130 = vmatpush.msra.mxu0 0.0
  %1131 = vmatpush.msra.mxu0 0.0
  %1132 = vmatpush.msra.mxu0 0.0
  %1133 = vmatpush.msra.mxu0 0.0
  %1134 = vmatpush.msra.mxu0 0.0
  %1135 = vmatpush.msra.mxu0 0.0
  %1136 = vmatpush.msra.mxu0 0.0
  %1137 = vmatpush.msra.mxu0 0.0
  %1138 = vmatpush.msra.mxu0 0.0
  %1139 = vmatpush.msra.mxu0 0.0
  %1140 = vmatpush.msra.mxu0 0.0
  %1141 = vmatpush.msra.mxu0 0.0
  %1142 = vmatpush.msra.mxu0 %v1129
  %1143 = vmatpush.msra.mxu0 %v1128
  %1144 = vmatpush.msra.mxu0 %v1127
  %1145 = vmatpush.msra.mxu0 %v1126
  %1146 = vmatmul.f32.gmra.mxu0 %v129
  %v1147 = vpop.f32.mrf.mxu0
  %v1148 = vadd.f32 %v110, %v1147
  %1149 = vmatmul.f32.gmra.mxu0 %v132
  %v1150 = vpop.f32.mrf.mxu0
  %v1151 = vadd.f32 %v115, %v1150
  %1152 = vmatmul.f32.gmra.mxu0 %v135
  %v1153 = vpop.f32.mrf.mxu0
  %v1154 = vadd.f32 %v120, %v1153
  %1155 = vmatmul.f32.gmra.mxu0 %v138
  %v1156 = vpop.f32.mrf.mxu0
  %v1157 = vadd.f32 %v125, %v1156
  %1158 = vdwg.mxu0
  %v1159 = vmax.f32 %v1088, %v1148
  %v1160 = vmax.f32 %v1089, %v1151
  %v1161 = vmax.f32 %v1090, %v1154
  %v1162 = vmax.f32 %v1091, %v1157
  %s1163 = scalar_lea.vmem %s0, 120
  %v1164 = vld [vmem:[%s1163] sm:$0x3f]
  %v1166 = vsel %vm70, %v1164, 0
  %1168 = vmatpush.msra.mxu0 0.0
  %1169 = vmatpush.msra.mxu0 0.0
  %1170 = vmatpush.msra.mxu0 0.0
  %1171 = vmatpush.msra.mxu0 0.0
  %1172 = vmatpush.msra.mxu0 0.0
  %1173 = vmatpush.msra.mxu0 0.0
  %1174 = vmatpush.msra.mxu0 0.0
  %1175 = vmatpush.msra.mxu0 0.0
  %1176 = vmatpush.msra.mxu0 0.0
  %1177 = vmatpush.msra.mxu0 0.0
  %1178 = vmatpush.msra.mxu0 0.0
  %1179 = vmatpush.msra.mxu0 0.0
  %1180 = vmatpush.msra.mxu0 0.0
  %1181 = vmatpush.msra.mxu0 0.0
  %1182 = vmatpush.msra.mxu0 0.0
  %1183 = vmatpush.msra.mxu0 %v1166
  %1184 = vmatmul.f32.gmra.mxu0 %v59
  %v1185 = vpop.f32.mrf.mxu0
  %v1186 = vadd.f32 %v40, %v1185
  %1187 = vmatmul.f32.gmra.mxu0 %v62
  %v1188 = vpop.f32.mrf.mxu0
  %v1189 = vadd.f32 %v45, %v1188
  %1190 = vmatmul.f32.gmra.mxu0 %v65
  %v1191 = vpop.f32.mrf.mxu0
  %v1192 = vadd.f32 %v50, %v1191
  %1193 = vmatmul.f32.gmra.mxu0 %v68
  %v1194 = vpop.f32.mrf.mxu0
  %v1195 = vadd.f32 %v55, %v1194
  %1196 = vdwg.mxu0
  %v1197 = vmax.f32 %v1186, 0.0
  %v1198 = vmax.f32 %v1189, 0.0
  %v1199 = vmax.f32 %v1192, 0.0
  %v1200 = vmax.f32 %v1195, 0.0
  %1201 = vmatpush.msra.mxu0 0.0
  %1202 = vmatpush.msra.mxu0 0.0
  %1203 = vmatpush.msra.mxu0 0.0
  %1204 = vmatpush.msra.mxu0 0.0
  %1205 = vmatpush.msra.mxu0 0.0
  %1206 = vmatpush.msra.mxu0 0.0
  %1207 = vmatpush.msra.mxu0 0.0
  %1208 = vmatpush.msra.mxu0 0.0
  %1209 = vmatpush.msra.mxu0 0.0
  %1210 = vmatpush.msra.mxu0 0.0
  %1211 = vmatpush.msra.mxu0 0.0
  %1212 = vmatpush.msra.mxu0 0.0
  %1213 = vmatpush.msra.mxu0 %v1200
  %1214 = vmatpush.msra.mxu0 %v1199
  %1215 = vmatpush.msra.mxu0 %v1198
  %1216 = vmatpush.msra.mxu0 %v1197
  %1217 = vmatmul.f32.gmra.mxu0 %v129
  %v1218 = vpop.f32.mrf.mxu0
  %v1219 = vadd.f32 %v110, %v1218
  %1220 = vmatmul.f32.gmra.mxu0 %v132
  %v1221 = vpop.f32.mrf.mxu0
  %v1222 = vadd.f32 %v115, %v1221
  %1223 = vmatmul.f32.gmra.mxu0 %v135
  %v1224 = vpop.f32.mrf.mxu0
  %v1225 = vadd.f32 %v120, %v1224
  %1226 = vmatmul.f32.gmra.mxu0 %v138
  %v1227 = vpop.f32.mrf.mxu0
  %v1228 = vadd.f32 %v125, %v1227
  %1229 = vdwg.mxu0
  %v1230 = vmax.f32 %v1159, %v1219
  %v1231 = vmax.f32 %v1160, %v1222
  %v1232 = vmax.f32 %v1161, %v1225
  %v1233 = vmax.f32 %v1162, %v1228
  %v1234 = vmax.f32 %v1230, 0.0
  %v1235 = vmax.f32 %v1231, 0.0
  %v1236 = vmax.f32 %v1232, 0.0
  %v1237 = vmax.f32 %v1233, 0.0
  %vm1238 = vcmask 523264
  %1239 = vst.msk [vmem:[%s5] sm:$0xff] %vm1238, %v1234
  %1240 = vst.msk [vmem:[%s5 + $0x8] sm:$0xff] %vm1238, %v1235
  %1241 = vst.msk [vmem:[%s5 + $0x10] sm:$0xff] %vm1238, %v1236
  %1242 = vst.msk [vmem:[%s5 + $0x18] sm:$0xff] %vm1238, %v1237
  // Predicated region
  $region22: #{pointnet_forward.3} parent=0 // pred_check
    _
  $region23: #{pointnet_forward.3} parent=0 // pred_check_branch
    %1244 = sbr.rel (0) target = $region25
  $region24: #{pointnet_forward.3} parent=0 // pred_region
    _
  $region25: #{pointnet_forward.3} parent=0 // pred_fallthru
    _
  // Predicated region
  $region26: #{pointnet_forward.3} parent=0 // pred_check
    _
  $region27: #{pointnet_forward.3} parent=0 // pred_check_branch
    %1246 = sbr.rel (0) target = $region29
  $region28: #{pointnet_forward.3} parent=0 // pred_region
    _
  $region29: #{pointnet_forward.3} parent=0 // pred_fallthru
    _

// kernel: pointnet_forward.5
$region0: #{pointnet_forward.5}
  #allocation0 [shape = 'u32[]', space=smem, size = 0x4, offset = 0x4, fixed_abs, tag = 'smem constant byte address 0x4 - core index']
  #allocation1 [shape = 'u32[72,128]{1,0:T(1,128)}', space=vmem, size = 0x9000, scoped, tag = 'internal scratch']
  #allocation2 [shape = 'f32[1,1]{1,0:T(1,128)S(1)}', space=vmem, size = 0x200, scoped, tag = 'scoped memory for pointnet_forward.5']
  %s0 = inlined_call_operand.vmem [shape: f32[32,2,32], index: 0, kind: input, shape index: {}]
  %s1 = inlined_call_operand.vmem [shape: f32[1,32], index: 1, kind: input, shape index: {}]
  %s2 = inlined_call_operand.<no memory space> [shape: f32[1,1], index: 2, kind: input, shape index: {}]
  %s3 = inlined_call_operand.hbm [shape: f32[1,2], index: 3, kind: output, shape index: {}]
  %s4 = sld [smem:[#allocation0]]
  $region22: #{pointnet_forward.5} parent=0
    _
  %s6 = ssub.s32 1, %s4
  %s7 = scalar_select 0, %s6, %s4
  %v8 = vstv %s2
  %9 = vst [vmem:[#allocation2] sm:$0x1] %v8
  $region1: #{pointnet_forward.5} parent=0
    #allocation3 [shape = 'u8[512]{0}', space=vmem, size = 0x400, scoped, tag = 'output window, operand 0, single buffered']
    #allocation4 [shape = 's32[1]{0}', space=sflag, size = 0x4, scoped, tag = 'scoped memory for pointnet_forward.5']
    %10 = vsyncpa [#allocation4], 0
    // Predicated region
    $region2: #{pointnet_forward.5} parent=1 // pred_check
      _
    $region3: #{pointnet_forward.5} parent=1 // pred_check_branch
      %12 = sbr.rel (0) target = $region5
    $region4: #{pointnet_forward.5} parent=1 // pred_region
      _
    $region5: #{pointnet_forward.5} parent=1 // pred_fallthru
      _
    // Predicated region
    $region6: #{pointnet_forward.5} parent=1 // pred_check
      _
    $region7: #{pointnet_forward.5} parent=1 // pred_check_branch
      %14 = sbr.rel (0) target = $region9
    $region8: #{pointnet_forward.5} parent=1 // pred_region
      _
    $region9: #{pointnet_forward.5} parent=1 // pred_fallthru
      _
    // Predicated region
    $region10: #{pointnet_forward.5} parent=1 // pred_check
      _
    $region11: #{pointnet_forward.5} parent=1 // pred_check_branch
      %16 = sbr.rel (0) target = $region13
    $region12: #{pointnet_forward.5} parent=1 // pred_region
      _
    $region13: #{pointnet_forward.5} parent=1 // pred_fallthru
      _
    %v17 = vld [vmem:[%s0] sm:$0x3]
    %v18 = vld [vmem:[%s0 + $0x2] sm:$0x3]
    %v19 = vld [vmem:[%s0 + $0x4] sm:$0x3]
    %v20 = vld [vmem:[%s0 + $0x6] sm:$0x3]
    %v21 = vld [vmem:[%s0 + $0x8] sm:$0x3]
    %v22 = vld [vmem:[%s0 + $0xa] sm:$0x3]
    %v23 = vld [vmem:[%s0 + $0xc] sm:$0x3]
    %v24 = vld [vmem:[%s0 + $0xe] sm:$0x3]
    %v25 = vld [vmem:[%s0 + $0x10] sm:$0x3]
    %v26 = vld [vmem:[%s0 + $0x12] sm:$0x3]
    %v27 = vld [vmem:[%s0 + $0x14] sm:$0x3]
    %v28 = vld [vmem:[%s0 + $0x16] sm:$0x3]
    %v29 = vld [vmem:[%s0 + $0x18] sm:$0x3]
    %v30 = vld [vmem:[%s0 + $0x1a] sm:$0x3]
    %v31 = vld [vmem:[%s0 + $0x1c] sm:$0x3]
    %v32 = vld [vmem:[%s0 + $0x1e] sm:$0x3]
    %v33 = vld [vmem:[%s0 + $0x20] sm:$0x3]
    %v34 = vld [vmem:[%s0 + $0x22] sm:$0x3]
    %v35 = vld [vmem:[%s0 + $0x24] sm:$0x3]
    %v36 = vld [vmem:[%s0 + $0x26] sm:$0x3]
    %v37 = vld [vmem:[%s0 + $0x28] sm:$0x3]
    %v38 = vld [vmem:[%s0 + $0x2a] sm:$0x3]
    %v39 = vld [vmem:[%s0 + $0x2c] sm:$0x3]
    %v40 = vld [vmem:[%s0 + $0x2e] sm:$0x3]
    %v41 = vld [vmem:[%s0 + $0x30] sm:$0x3]
    %v42 = vld [vmem:[%s0 + $0x32] sm:$0x3]
    %v43 = vld [vmem:[%s0 + $0x34] sm:$0x3]
    %v44 = vld [vmem:[%s0 + $0x36] sm:$0x3]
    %v45 = vld [vmem:[%s0 + $0x38] sm:$0x3]
    %v46 = vld [vmem:[%s0 + $0x3a] sm:$0x3]
    %v47 = vld [vmem:[%s0 + $0x3c] sm:$0x3]
    %v48 = vld [vmem:[%s0 + $0x3e] sm:$0x3]
    %vm49 = vcmask 254976
    %v50 = vsel %vm49, %v17, -inf
    %51 = vmax.xlane.f32.xlu0 %v50
    %v52 = vpop.xlane.xlu0 %51
    %v53 = vsel %vm49, %v18, -inf
    %54 = vmax.xlane.f32.xlu0 %v53
    %v55 = vpop.xlane.xlu0 %54
    %v56 = vsel %vm49, %v19, -inf
    %57 = vmax.xlane.f32.xlu0 %v56
    %v58 = vpop.xlane.xlu0 %57
    %v59 = vsel %vm49, %v20, -inf
    %60 = vmax.xlane.f32.xlu0 %v59
    %v61 = vpop.xlane.xlu0 %60
    %v62 = vsel %vm49, %v21, -inf
    %63 = vmax.xlane.f32.xlu0 %v62
    %v64 = vpop.xlane.xlu0 %63
    %v65 = vsel %vm49, %v22, -inf
    %66 = vmax.xlane.f32.xlu0 %v65
    %v67 = vpop.xlane.xlu0 %66
    %v68 = vsel %vm49, %v23, -inf
    %69 = vmax.xlane.f32.xlu0 %v68
    %v70 = vpop.xlane.xlu0 %69
    %v71 = vsel %vm49, %v24, -inf
    %72 = vmax.xlane.f32.xlu0 %v71
    %v73 = vpop.xlane.xlu0 %72
    %v74 = vsel %vm49, %v25, -inf
    %75 = vmax.xlane.f32.xlu0 %v74
    %v76 = vpop.xlane.xlu0 %75
    %v77 = vsel %vm49, %v26, -inf
    %78 = vmax.xlane.f32.xlu0 %v77
    %v79 = vpop.xlane.xlu0 %78
    %v80 = vsel %vm49, %v27, -inf
    %81 = vmax.xlane.f32.xlu0 %v80
    %v82 = vpop.xlane.xlu0 %81
    %v83 = vsel %vm49, %v28, -inf
    %84 = vmax.xlane.f32.xlu0 %v83
    %v85 = vpop.xlane.xlu0 %84
    %v86 = vsel %vm49, %v29, -inf
    %87 = vmax.xlane.f32.xlu0 %v86
    %v88 = vpop.xlane.xlu0 %87
    %v89 = vsel %vm49, %v30, -inf
    %90 = vmax.xlane.f32.xlu0 %v89
    %v91 = vpop.xlane.xlu0 %90
    %v92 = vsel %vm49, %v31, -inf
    %93 = vmax.xlane.f32.xlu0 %v92
    %v94 = vpop.xlane.xlu0 %93
    %v95 = vsel %vm49, %v32, -inf
    %96 = vmax.xlane.f32.xlu0 %v95
    %v97 = vpop.xlane.xlu0 %96
    %v98 = vsel %vm49, %v33, -inf
    %99 = vmax.xlane.f32.xlu0 %v98
    %v100 = vpop.xlane.xlu0 %99
    %v101 = vsel %vm49, %v34, -inf
    %102 = vmax.xlane.f32.xlu0 %v101
    %v103 = vpop.xlane.xlu0 %102
    %v104 = vsel %vm49, %v35, -inf
    %105 = vmax.xlane.f32.xlu0 %v104
    %v106 = vpop.xlane.xlu0 %105
    %v107 = vsel %vm49, %v36, -inf
    %108 = vmax.xlane.f32.xlu0 %v107
    %v109 = vpop.xlane.xlu0 %108
    %v110 = vsel %vm49, %v37, -inf
    %111 = vmax.xlane.f32.xlu0 %v110
    %v112 = vpop.xlane.xlu0 %111
    %v113 = vsel %vm49, %v38, -inf
    %114 = vmax.xlane.f32.xlu0 %v113
    %v115 = vpop.xlane.xlu0 %114
    %v116 = vsel %vm49, %v39, -inf
    %117 = vmax.xlane.f32.xlu0 %v116
    %v118 = vpop.xlane.xlu0 %117
    %v119 = vsel %vm49, %v40, -inf
    %120 = vmax.xlane.f32.xlu0 %v119
    %v121 = vpop.xlane.xlu0 %120
    %v122 = vsel %vm49, %v41, -inf
    %123 = vmax.xlane.f32.xlu0 %v122
    %v124 = vpop.xlane.xlu0 %123
    %v125 = vsel %vm49, %v42, -inf
    %126 = vmax.xlane.f32.xlu0 %v125
    %v127 = vpop.xlane.xlu0 %126
    %v128 = vsel %vm49, %v43, -inf
    %129 = vmax.xlane.f32.xlu0 %v128
    %v130 = vpop.xlane.xlu0 %129
    %v131 = vsel %vm49, %v44, -inf
    %132 = vmax.xlane.f32.xlu0 %v131
    %v133 = vpop.xlane.xlu0 %132
    %v134 = vsel %vm49, %v45, -inf
    %135 = vmax.xlane.f32.xlu0 %v134
    %v136 = vpop.xlane.xlu0 %135
    %v137 = vsel %vm49, %v46, -inf
    %138 = vmax.xlane.f32.xlu0 %v137
    %v139 = vpop.xlane.xlu0 %138
    %v140 = vsel %vm49, %v47, -inf
    %141 = vmax.xlane.f32.xlu0 %v140
    %v142 = vpop.xlane.xlu0 %141
    %v143 = vsel %vm49, %v48, -inf
    %144 = vmax.xlane.f32.xlu0 %v143
    %v145 = vpop.xlane.xlu0 %144
    %v146 = vld [vmem:[%s1] sm:$0x1]
    %v147 = vld [vmem:[#allocation2] sm:$0x1]
    %149 = vset.pattern.permute.xlu0 0
    %150 = vperm.xlu0 %149, %v147
    %v151 = vpop.permute.xlu0 %150
    %v153 = vperm.slane %v151, 0
    %v186 = vlaneseq
    %v187 = vand.u32 %v186, 127
    %v188 = vperm.slane %v52, %v187
    %v189 = vperm.slane %v55, %v187
    %v190 = vperm.slane %v58, %v187
    %v191 = vperm.slane %v61, %v187
    %v192 = vperm.slane %v64, %v187
    %v193 = vperm.slane %v67, %v187
    %v194 = vperm.slane %v70, %v187
    %v195 = vperm.slane %v73, %v187
    %v196 = vperm.slane %v76, %v187
    %v197 = vperm.slane %v79, %v187
    %v198 = vperm.slane %v82, %v187
    %v199 = vperm.slane %v85, %v187
    %v200 = vperm.slane %v88, %v187
    %v201 = vperm.slane %v91, %v187
    %v202 = vperm.slane %v94, %v187
    %v203 = vperm.slane %v97, %v187
    %v204 = vperm.slane %v100, %v187
    %v205 = vperm.slane %v103, %v187
    %v206 = vperm.slane %v106, %v187
    %v207 = vperm.slane %v109, %v187
    %v208 = vperm.slane %v112, %v187
    %v209 = vperm.slane %v115, %v187
    %v210 = vperm.slane %v118, %v187
    %v211 = vperm.slane %v121, %v187
    %v212 = vperm.slane %v124, %v187
    %v213 = vperm.slane %v127, %v187
    %v214 = vperm.slane %v130, %v187
    %v215 = vperm.slane %v133, %v187
    %v216 = vperm.slane %v136, %v187
    %v217 = vperm.slane %v139, %v187
    %v218 = vperm.slane %v142, %v187
    %v219 = vperm.slane %v145, %v187
    %vm220 = vcmask 1041409
    %v221 = vsel %vm220, %v189, %v188
    %vm222 = vcmask 1042434
    %v223 = vsel %vm222, %v190, %v221
    %vm224 = vcmask 1043459
    %v225 = vsel %vm224, %v191, %v223
    %vm226 = vcmask 1044484
    %v227 = vsel %vm226, %v192, %v225
    %vm228 = vcmask 1045509
    %v229 = vsel %vm228, %v193, %v227
    %vm230 = vcmask 1046534
    %v231 = vsel %vm230, %v194, %v229
    %vm232 = vcmask 1047559
    %v233 = vsel %vm232, %v195, %v231
    %v234 = vsel %vm220, %v197, %v196
    %v235 = vsel %vm222, %v198, %v234
    %v236 = vsel %vm224, %v199, %v235
    %v237 = vsel %vm226, %v200, %v236
    %v238 = vsel %vm228, %v201, %v237
    %v239 = vsel %vm230, %v202, %v238
    %v240 = vsel %vm232, %v203, %v239
    %v241 = vsel %vm220, %v205, %v204
    %v242 = vsel %vm222, %v206, %v241
    %v243 = vsel %vm224, %v207, %v242
    %v244 = vsel %vm226, %v208, %v243
    %v245 = vsel %vm228, %v209, %v244
    %v246 = vsel %vm230, %v210, %v245
    %v247 = vsel %vm232, %v211, %v246
    %v248 = vsel %vm220, %v213, %v212
    %v249 = vsel %vm222, %v214, %v248
    %v250 = vsel %vm224, %v215, %v249
    %v251 = vsel %vm226, %v216, %v250
    %v252 = vsel %vm228, %v217, %v251
    %v253 = vsel %vm230, %v218, %v252
    %v254 = vsel %vm232, %v219, %v253
    %vm259 = vcmask 261120
    %v261 = vsel %vm259, %v146, 0
    %263 = vmatpush.msra.mxu0 0.0
    %264 = vmatpush.msra.mxu0 0.0
    %265 = vmatpush.msra.mxu0 0.0
    %266 = vmatpush.msra.mxu0 0.0
    %267 = vmatpush.msra.mxu0 0.0
    %268 = vmatpush.msra.mxu0 0.0
    %269 = vmatpush.msra.mxu0 0.0
    %270 = vmatpush.msra.mxu0 0.0
    %271 = vmatpush.msra.mxu0 0.0
    %272 = vmatpush.msra.mxu0 0.0
    %273 = vmatpush.msra.mxu0 0.0
    %274 = vmatpush.msra.mxu0 0.0
    %275 = vmatpush.msra.mxu0 %v254
    %276 = vmatpush.msra.mxu0 %v247
    %277 = vmatpush.msra.mxu0 %v240
    %278 = vmatpush.msra.mxu0 %v233
    %279 = vmatmul.f32.gmra.mxu0 %v261
    %v280 = vpop.f32.mrf.mxu0
    %v281 = vadd.f32 %v153, %v280
    %282 = vdwg.mxu0
    %vm283 = vcmask 8192
    %284 = vst.msk [vmem:[#allocation3] sm:$0x1] %vm283, %v281
    // Predicated region
    $region14: #{pointnet_forward.5} parent=1 // pred_check
      _
    $region15: #{pointnet_forward.5} parent=1 // pred_check_branch
      %286 = sbr.rel (0) target = $region17
    $region16: #{pointnet_forward.5} parent=1 // pred_region
      %288 = vsyncadd [#allocation4], 0
      %s290 = sshll.u32 [#allocation3], 4
      %s291 = int_to_ptr.vmem [resolvable:$true] %s290
      %s292 = sshll.u32 %s3, 4
      %s293 = int_to_ptr.hbm [resolvable:$true] %s292
      %295 = dma.vmem_to_hbm [thread:$0]  %s291, 16, %s293, [#allocation4]
    $region17: #{pointnet_forward.5} parent=1 // pred_fallthru
      _
    // Predicated region
    $region18: #{pointnet_forward.5} parent=1 // pred_check
      _
    $region19: #{pointnet_forward.5} parent=1 // pred_check_branch
      %297 = sbr.rel (0) target = $region21
    $region20: #{pointnet_forward.5} parent=1 // pred_region
      %299 = dma.done [#allocation4], 16
    $region21: #{pointnet_forward.5} parent=1 // pred_fallthru
      _
    %300 = vsyncpa [#allocation4], 1

// kernel: pointnet_forward.4
$region0: #{pointnet_forward.4}
  #allocation0 [shape = 'u32[]', space=smem, size = 0x4, offset = 0x4, fixed_abs, tag = 'smem constant byte address 0x4 - core index']
  #allocation1 [shape = 'u32[72,128]{1,0:T(1,128)}', space=vmem, size = 0x9000, scoped, tag = 'internal scratch']
  %s0 = inlined_call_operand.vmem [shape: f32[16,35,64], index: 0, kind: input, shape index: {}]
  %s1 = inlined_call_operand.vmem [shape: f32[32,35], index: 1, kind: input, shape index: {}]
  %s2 = inlined_call_operand.vmem [shape: f32[32,1], index: 2, kind: input, shape index: {}]
  %s3 = inlined_call_operand.vmem [shape: f32[32,32], index: 3, kind: input, shape index: {}]
  %s4 = inlined_call_operand.vmem [shape: f32[32,1], index: 4, kind: input, shape index: {}]
  %s5 = inlined_call_operand.vmem [shape: f32[32,64], index: 5, kind: output, shape index: {}]
  %s6 = sld [smem:[#allocation0]]
  $region30: #{pointnet_forward.4} parent=0
    _
  %s8 = ssub.s32 1, %s6
  %s9 = scalar_select 0, %s8, %s6
  // Predicated region
  $region2: #{pointnet_forward.4} parent=0 // pred_check
    _
  $region3: #{pointnet_forward.4} parent=0 // pred_check_branch
    %11 = sbr.rel (0) target = $region5
  $region4: #{pointnet_forward.4} parent=0 // pred_region
    _
  $region5: #{pointnet_forward.4} parent=0 // pred_fallthru
    _
  // Predicated region
  $region6: #{pointnet_forward.4} parent=0 // pred_check
    _
  $region7: #{pointnet_forward.4} parent=0 // pred_check_branch
    %13 = sbr.rel (0) target = $region9
  $region8: #{pointnet_forward.4} parent=0 // pred_region
    _
  $region9: #{pointnet_forward.4} parent=0 // pred_fallthru
    _
  // Predicated region
  $region10: #{pointnet_forward.4} parent=0 // pred_check
    _
  $region11: #{pointnet_forward.4} parent=0 // pred_check_branch
    %15 = sbr.rel (0) target = $region13
  $region12: #{pointnet_forward.4} parent=0 // pred_region
    _
  $region13: #{pointnet_forward.4} parent=0 // pred_fallthru
    _
  // Predicated region
  $region14: #{pointnet_forward.4} parent=0 // pred_check
    _
  $region15: #{pointnet_forward.4} parent=0 // pred_check_branch
    %17 = sbr.rel (0) target = $region17
  $region16: #{pointnet_forward.4} parent=0 // pred_region
    _
  $region17: #{pointnet_forward.4} parent=0 // pred_fallthru
    _
  // Predicated region
  $region18: #{pointnet_forward.4} parent=0 // pred_check
    _
  $region19: #{pointnet_forward.4} parent=0 // pred_check_branch
    %19 = sbr.rel (0) target = $region21
  $region20: #{pointnet_forward.4} parent=0 // pred_region
    _
  $region21: #{pointnet_forward.4} parent=0 // pred_fallthru
    _
  %v20 = vld [vmem:[%s1] sm:$0xff]
  %v21 = vld [vmem:[%s1 + $0x8] sm:$0xff]
  %v22 = vld [vmem:[%s1 + $0x10] sm:$0xff]
  %v23 = vld [vmem:[%s1 + $0x18] sm:$0xff]
  %v24 = vld [vmem:[%s2] sm:$0xff]
  %v25 = vld [vmem:[%s2 + $0x8] sm:$0xff]
  %v26 = vld [vmem:[%s2 + $0x10] sm:$0xff]
  %v27 = vld [vmem:[%s2 + $0x18] sm:$0xff]
  %v28 = vld [vmem:[%s3] sm:$0xff]
  %v29 = vld [vmem:[%s3 + $0x8] sm:$0xff]
  %v30 = vld [vmem:[%s3 + $0x10] sm:$0xff]
  %v31 = vld [vmem:[%s3 + $0x18] sm:$0xff]
  %v32 = vld [vmem:[%s4] sm:$0xff]
  %v33 = vld [vmem:[%s4 + $0x8] sm:$0xff]
  %v34 = vld [vmem:[%s4 + $0x10] sm:$0xff]
  %v35 = vld [vmem:[%s4 + $0x18] sm:$0xff]
  %v36 = vld [vmem:[%s0] sm:$0xff]
  %v37 = vld [vmem:[%s0 + $0x8] sm:$0xff]
  %v38 = vld [vmem:[%s0 + $0x10] sm:$0xff]
  %v39 = vld [vmem:[%s0 + $0x18] sm:$0xff]
  %v40 = vld [vmem:[%s0 + $0x20] sm:$0x7]
  %42 = vset.pattern.permute.xlu0 0
  %43 = vperm.xlu0 %42, %v24
  %v44 = vpop.permute.xlu0 %43
  %47 = vset.pattern.permute.xlu0 0
  %48 = vperm.xlu0 %47, %v25
  %v49 = vpop.permute.xlu0 %48
  %52 = vset.pattern.permute.xlu0 0
  %53 = vperm.xlu0 %52, %v26
  %v54 = vpop.permute.xlu0 %53
  %57 = vset.pattern.permute.xlu0 0
  %58 = vperm.xlu0 %57, %v27
  %v59 = vpop.permute.xlu0 %58
  %vm61 = vcmask 285696
  %v63 = vsel %vm61, %v20, 0
  %v66 = vsel %vm61, %v21, 0
  %v69 = vsel %vm61, %v22, 0
  %v72 = vsel %vm61, %v23, 0
  %vm74 = vcmask 1042432
  %v76 = vsel %vm74, %v40, 0
  %78 = vmatpush.msra.mxu0 0.0
  %79 = vmatpush.msra.mxu0 0.0
  %80 = vmatpush.msra.mxu0 0.0
  %81 = vmatpush.msra.mxu0 0.0
  %82 = vmatpush.msra.mxu0 0.0
  %83 = vmatpush.msra.mxu0 0.0
  %84 = vmatpush.msra.mxu0 0.0
  %85 = vmatpush.msra.mxu0 0.0
  %86 = vmatpush.msra.mxu0 0.0
  %87 = vmatpush.msra.mxu0 0.0
  %88 = vmatpush.msra.mxu0 0.0
  %89 = vmatpush.msra.mxu0 %v76
  %90 = vmatpush.msra.mxu0 %v39
  %91 = vmatpush.msra.mxu0 %v38
  %92 = vmatpush.msra.mxu0 %v37
  %93 = vmatpush.msra.mxu0 %v36
  %94 = vmatmul.f32.gmra.mxu0 %v63
  %v95 = vpop.f32.mrf.mxu0
  %v96 = vadd.f32 %v44, %v95
  %97 = vmatmul.f32.gmra.mxu0 %v66
  %v98 = vpop.f32.mrf.mxu0
  %v99 = vadd.f32 %v49, %v98
  %100 = vmatmul.f32.gmra.mxu0 %v69
  %v101 = vpop.f32.mrf.mxu0
  %v102 = vadd.f32 %v54, %v101
  %103 = vmatmul.f32.gmra.mxu0 %v72
  %v104 = vpop.f32.mrf.mxu0
  %v105 = vadd.f32 %v59, %v104
  %106 = vdwg.mxu0
  %v107 = vmax.f32 %v96, 0.0
  %v108 = vmax.f32 %v99, 0.0
  %v109 = vmax.f32 %v102, 0.0
  %v110 = vmax.f32 %v105, 0.0
  %112 = vset.pattern.permute.xlu0 0
  %113 = vperm.xlu0 %112, %v32
  %v114 = vpop.permute.xlu0 %113
  %117 = vset.pattern.permute.xlu0 0
  %118 = vperm.xlu0 %117, %v33
  %v119 = vpop.permute.xlu0 %118
  %122 = vset.pattern.permute.xlu0 0
  %123 = vperm.xlu0 %122, %v34
  %v124 = vpop.permute.xlu0 %123
  %127 = vset.pattern.permute.xlu0 0
  %128 = vperm.xlu0 %127, %v35
  %v129 = vpop.permute.xlu0 %128
  %vm131 = vcmask 261120
  %v133 = vsel %vm131, %v28, 0
  %v136 = vsel %vm131, %v29, 0
  %v139 = vsel %vm131, %v30, 0
  %v142 = vsel %vm131, %v31, 0
  %144 = vmatpush.msra.mxu0 0.0
  %145 = vmatpush.msra.mxu0 0.0
  %146 = vmatpush.msra.mxu0 0.0
  %147 = vmatpush.msra.mxu0 0.0
  %148 = vmatpush.msra.mxu0 0.0
  %149 = vmatpush.msra.mxu0 0.0
  %150 = vmatpush.msra.mxu0 0.0
  %151 = vmatpush.msra.mxu0 0.0
  %152 = vmatpush.msra.mxu0 0.0
  %153 = vmatpush.msra.mxu0 0.0
  %154 = vmatpush.msra.mxu0 0.0
  %155 = vmatpush.msra.mxu0 0.0
  %156 = vmatpush.msra.mxu0 %v110
  %157 = vmatpush.msra.mxu0 %v109
  %158 = vmatpush.msra.mxu0 %v108
  %159 = vmatpush.msra.mxu0 %v107
  %160 = vmatmul.f32.gmra.mxu0 %v133
  %v161 = vpop.f32.mrf.mxu0
  %v162 = vadd.f32 %v114, %v161
  %163 = vmatmul.f32.gmra.mxu0 %v136
  %v164 = vpop.f32.mrf.mxu0
  %v165 = vadd.f32 %v119, %v164
  %166 = vmatmul.f32.gmra.mxu0 %v139
  %v167 = vpop.f32.mrf.mxu0
  %v168 = vadd.f32 %v124, %v167
  %169 = vmatmul.f32.gmra.mxu0 %v142
  %v170 = vpop.f32.mrf.mxu0
  %v171 = vadd.f32 %v129, %v170
  %172 = vdwg.mxu0
  %s173 = scalar_lea.vmem %s0, 40
  %v174 = vld [vmem:[%s173] sm:$0xff]
  %v175 = vld [vmem:[%s173 + $0x8] sm:$0xff]
  %v176 = vld [vmem:[%s173 + $0x10] sm:$0xff]
  %v177 = vld [vmem:[%s173 + $0x18] sm:$0xff]
  %v178 = vld [vmem:[%s173 + $0x20] sm:$0x7]
  %v180 = vsel %vm74, %v178, 0
  %182 = vmatpush.msra.mxu0 0.0
  %183 = vmatpush.msra.mxu0 0.0
  %184 = vmatpush.msra.mxu0 0.0
  %185 = vmatpush.msra.mxu0 0.0
  %186 = vmatpush.msra.mxu0 0.0
  %187 = vmatpush.msra.mxu0 0.0
  %188 = vmatpush.msra.mxu0 0.0
  %189 = vmatpush.msra.mxu0 0.0
  %190 = vmatpush.msra.mxu0 0.0
  %191 = vmatpush.msra.mxu0 0.0
  %192 = vmatpush.msra.mxu0 0.0
  %193 = vmatpush.msra.mxu0 %v180
  %194 = vmatpush.msra.mxu0 %v177
  %195 = vmatpush.msra.mxu0 %v176
  %196 = vmatpush.msra.mxu0 %v175
  %197 = vmatpush.msra.mxu0 %v174
  %198 = vmatmul.f32.gmra.mxu0 %v63
  %v199 = vpop.f32.mrf.mxu0
  %v200 = vadd.f32 %v44, %v199
  %201 = vmatmul.f32.gmra.mxu0 %v66
  %v202 = vpop.f32.mrf.mxu0
  %v203 = vadd.f32 %v49, %v202
  %204 = vmatmul.f32.gmra.mxu0 %v69
  %v205 = vpop.f32.mrf.mxu0
  %v206 = vadd.f32 %v54, %v205
  %207 = vmatmul.f32.gmra.mxu0 %v72
  %v208 = vpop.f32.mrf.mxu0
  %v209 = vadd.f32 %v59, %v208
  %210 = vdwg.mxu0
  %v211 = vmax.f32 %v200, 0.0
  %v212 = vmax.f32 %v203, 0.0
  %v213 = vmax.f32 %v206, 0.0
  %v214 = vmax.f32 %v209, 0.0
  %215 = vmatpush.msra.mxu0 0.0
  %216 = vmatpush.msra.mxu0 0.0
  %217 = vmatpush.msra.mxu0 0.0
  %218 = vmatpush.msra.mxu0 0.0
  %219 = vmatpush.msra.mxu0 0.0
  %220 = vmatpush.msra.mxu0 0.0
  %221 = vmatpush.msra.mxu0 0.0
  %222 = vmatpush.msra.mxu0 0.0
  %223 = vmatpush.msra.mxu0 0.0
  %224 = vmatpush.msra.mxu0 0.0
  %225 = vmatpush.msra.mxu0 0.0
  %226 = vmatpush.msra.mxu0 0.0
  %227 = vmatpush.msra.mxu0 %v214
  %228 = vmatpush.msra.mxu0 %v213
  %229 = vmatpush.msra.mxu0 %v212
  %230 = vmatpush.msra.mxu0 %v211
  %231 = vmatmul.f32.gmra.mxu0 %v133
  %v232 = vpop.f32.mrf.mxu0
  %v233 = vadd.f32 %v114, %v232
  %234 = vmatmul.f32.gmra.mxu0 %v136
  %v235 = vpop.f32.mrf.mxu0
  %v236 = vadd.f32 %v119, %v235
  %237 = vmatmul.f32.gmra.mxu0 %v139
  %v238 = vpop.f32.mrf.mxu0
  %v239 = vadd.f32 %v124, %v238
  %240 = vmatmul.f32.gmra.mxu0 %v142
  %v241 = vpop.f32.mrf.mxu0
  %v242 = vadd.f32 %v129, %v241
  %243 = vdwg.mxu0
  %v244 = vmax.f32 %v162, %v233
  %v245 = vmax.f32 %v165, %v236
  %v246 = vmax.f32 %v168, %v239
  %v247 = vmax.f32 %v171, %v242
  %s248 = scalar_lea.vmem %s0, 80
  %v249 = vld [vmem:[%s248] sm:$0xff]
  %v250 = vld [vmem:[%s248 + $0x8] sm:$0xff]
  %v251 = vld [vmem:[%s248 + $0x10] sm:$0xff]
  %v252 = vld [vmem:[%s248 + $0x18] sm:$0xff]
  %v253 = vld [vmem:[%s248 + $0x20] sm:$0x7]
  %v255 = vsel %vm74, %v253, 0
  %257 = vmatpush.msra.mxu0 0.0
  %258 = vmatpush.msra.mxu0 0.0
  %259 = vmatpush.msra.mxu0 0.0
  %260 = vmatpush.msra.mxu0 0.0
  %261 = vmatpush.msra.mxu0 0.0
  %262 = vmatpush.msra.mxu0 0.0
  %263 = vmatpush.msra.mxu0 0.0
  %264 = vmatpush.msra.mxu0 0.0
  %265 = vmatpush.msra.mxu0 0.0
  %266 = vmatpush.msra.mxu0 0.0
  %267 = vmatpush.msra.mxu0 0.0
  %268 = vmatpush.msra.mxu0 %v255
  %269 = vmatpush.msra.mxu0 %v252
  %270 = vmatpush.msra.mxu0 %v251
  %271 = vmatpush.msra.mxu0 %v250
  %272 = vmatpush.msra.mxu0 %v249
  %273 = vmatmul.f32.gmra.mxu0 %v63
  %v274 = vpop.f32.mrf.mxu0
  %v275 = vadd.f32 %v44, %v274
  %276 = vmatmul.f32.gmra.mxu0 %v66
  %v277 = vpop.f32.mrf.mxu0
  %v278 = vadd.f32 %v49, %v277
  %279 = vmatmul.f32.gmra.mxu0 %v69
  %v280 = vpop.f32.mrf.mxu0
  %v281 = vadd.f32 %v54, %v280
  %282 = vmatmul.f32.gmra.mxu0 %v72
  %v283 = vpop.f32.mrf.mxu0
  %v284 = vadd.f32 %v59, %v283
  %285 = vdwg.mxu0
  %v286 = vmax.f32 %v275, 0.0
  %v287 = vmax.f32 %v278, 0.0
  %v288 = vmax.f32 %v281, 0.0
  %v289 = vmax.f32 %v284, 0.0
  %290 = vmatpush.msra.mxu0 0.0
  %291 = vmatpush.msra.mxu0 0.0
  %292 = vmatpush.msra.mxu0 0.0
  %293 = vmatpush.msra.mxu0 0.0
  %294 = vmatpush.msra.mxu0 0.0
  %295 = vmatpush.msra.mxu0 0.0
  %296 = vmatpush.msra.mxu0 0.0
  %297 = vmatpush.msra.mxu0 0.0
  %298 = vmatpush.msra.mxu0 0.0
  %299 = vmatpush.msra.mxu0 0.0
  %300 = vmatpush.msra.mxu0 0.0
  %301 = vmatpush.msra.mxu0 0.0
  %302 = vmatpush.msra.mxu0 %v289
  %303 = vmatpush.msra.mxu0 %v288
  %304 = vmatpush.msra.mxu0 %v287
  %305 = vmatpush.msra.mxu0 %v286
  %306 = vmatmul.f32.gmra.mxu0 %v133
  %v307 = vpop.f32.mrf.mxu0
  %v308 = vadd.f32 %v114, %v307
  %309 = vmatmul.f32.gmra.mxu0 %v136
  %v310 = vpop.f32.mrf.mxu0
  %v311 = vadd.f32 %v119, %v310
  %312 = vmatmul.f32.gmra.mxu0 %v139
  %v313 = vpop.f32.mrf.mxu0
  %v314 = vadd.f32 %v124, %v313
  %315 = vmatmul.f32.gmra.mxu0 %v142
  %v316 = vpop.f32.mrf.mxu0
  %v317 = vadd.f32 %v129, %v316
  %318 = vdwg.mxu0
  %v319 = vmax.f32 %v244, %v308
  %v320 = vmax.f32 %v245, %v311
  %v321 = vmax.f32 %v246, %v314
  %v322 = vmax.f32 %v247, %v317
  %s323 = scalar_lea.vmem %s0, 120
  %v324 = vld [vmem:[%s323] sm:$0xff]
  %v325 = vld [vmem:[%s323 + $0x8] sm:$0xff]
  %v326 = vld [vmem:[%s323 + $0x10] sm:$0xff]
  %v327 = vld [vmem:[%s323 + $0x18] sm:$0xff]
  %v328 = vld [vmem:[%s323 + $0x20] sm:$0x7]
  %v330 = vsel %vm74, %v328, 0
  %332 = vmatpush.msra.mxu0 0.0
  %333 = vmatpush.msra.mxu0 0.0
  %334 = vmatpush.msra.mxu0 0.0
  %335 = vmatpush.msra.mxu0 0.0
  %336 = vmatpush.msra.mxu0 0.0
  %337 = vmatpush.msra.mxu0 0.0
  %338 = vmatpush.msra.mxu0 0.0
  %339 = vmatpush.msra.mxu0 0.0
  %340 = vmatpush.msra.mxu0 0.0
  %341 = vmatpush.msra.mxu0 0.0
  %342 = vmatpush.msra.mxu0 0.0
  %343 = vmatpush.msra.mxu0 %v330
  %344 = vmatpush.msra.mxu0 %v327
  %345 = vmatpush.msra.mxu0 %v326
  %346 = vmatpush.msra.mxu0 %v325
  %347 = vmatpush.msra.mxu0 %v324
  %348 = vmatmul.f32.gmra.mxu0 %v63
  %v349 = vpop.f32.mrf.mxu0
  %v350 = vadd.f32 %v44, %v349
  %351 = vmatmul.f32.gmra.mxu0 %v66
  %v352 = vpop.f32.mrf.mxu0
  %v353 = vadd.f32 %v49, %v352
  %354 = vmatmul.f32.gmra.mxu0 %v69
  %v355 = vpop.f32.mrf.mxu0
  %v356 = vadd.f32 %v54, %v355
  %357 = vmatmul.f32.gmra.mxu0 %v72
  %v358 = vpop.f32.mrf.mxu0
  %v359 = vadd.f32 %v59, %v358
  %360 = vdwg.mxu0
  %v361 = vmax.f32 %v350, 0.0
  %v362 = vmax.f32 %v353, 0.0
  %v363 = vmax.f32 %v356, 0.0
  %v364 = vmax.f32 %v359, 0.0
  %365 = vmatpush.msra.mxu0 0.0
  %366 = vmatpush.msra.mxu0 0.0
  %367 = vmatpush.msra.mxu0 0.0
  %368 = vmatpush.msra.mxu0 0.0
  %369 = vmatpush.msra.mxu0 0.0
  %370 = vmatpush.msra.mxu0 0.0
  %371 = vmatpush.msra.mxu0 0.0
  %372 = vmatpush.msra.mxu0 0.0
  %373 = vmatpush.msra.mxu0 0.0
  %374 = vmatpush.msra.mxu0 0.0
  %375 = vmatpush.msra.mxu0 0.0
  %376 = vmatpush.msra.mxu0 0.0
  %377 = vmatpush.msra.mxu0 %v364
  %378 = vmatpush.msra.mxu0 %v363
  %379 = vmatpush.msra.mxu0 %v362
  %380 = vmatpush.msra.mxu0 %v361
  %381 = vmatmul.f32.gmra.mxu0 %v133
  %v382 = vpop.f32.mrf.mxu0
  %v383 = vadd.f32 %v114, %v382
  %384 = vmatmul.f32.gmra.mxu0 %v136
  %v385 = vpop.f32.mrf.mxu0
  %v386 = vadd.f32 %v119, %v385
  %387 = vmatmul.f32.gmra.mxu0 %v139
  %v388 = vpop.f32.mrf.mxu0
  %v389 = vadd.f32 %v124, %v388
  %390 = vmatmul.f32.gmra.mxu0 %v142
  %v391 = vpop.f32.mrf.mxu0
  %v392 = vadd.f32 %v129, %v391
  %393 = vdwg.mxu0
  %v394 = vmax.f32 %v319, %v383
  %v395 = vmax.f32 %v320, %v386
  %v396 = vmax.f32 %v321, %v389
  %v397 = vmax.f32 %v322, %v392
  %s398 = scalar_lea.vmem %s0, 160
  %v399 = vld [vmem:[%s398] sm:$0xff]
  %v400 = vld [vmem:[%s398 + $0x8] sm:$0xff]
  %v401 = vld [vmem:[%s398 + $0x10] sm:$0xff]
  %v402 = vld [vmem:[%s398 + $0x18] sm:$0xff]
  %v403 = vld [vmem:[%s398 + $0x20] sm:$0x7]
  %v405 = vsel %vm74, %v403, 0
  %407 = vmatpush.msra.mxu0 0.0
  %408 = vmatpush.msra.mxu0 0.0
  %409 = vmatpush.msra.mxu0 0.0
  %410 = vmatpush.msra.mxu0 0.0
  %411 = vmatpush.msra.mxu0 0.0
  %412 = vmatpush.msra.mxu0 0.0
  %413 = vmatpush.msra.mxu0 0.0
  %414 = vmatpush.msra.mxu0 0.0
  %415 = vmatpush.msra.mxu0 0.0
  %416 = vmatpush.msra.mxu0 0.0
  %417 = vmatpush.msra.mxu0 0.0
  %418 = vmatpush.msra.mxu0 %v405
  %419 = vmatpush.msra.mxu0 %v402
  %420 = vmatpush.msra.mxu0 %v401
  %421 = vmatpush.msra.mxu0 %v400
  %422 = vmatpush.msra.mxu0 %v399
  %423 = vmatmul.f32.gmra.mxu0 %v63
  %v424 = vpop.f32.mrf.mxu0
  %v425 = vadd.f32 %v44, %v424
  %426 = vmatmul.f32.gmra.mxu0 %v66
  %v427 = vpop.f32.mrf.mxu0
  %v428 = vadd.f32 %v49, %v427
  %429 = vmatmul.f32.gmra.mxu0 %v69
  %v430 = vpop.f32.mrf.mxu0
  %v431 = vadd.f32 %v54, %v430
  %432 = vmatmul.f32.gmra.mxu0 %v72
  %v433 = vpop.f32.mrf.mxu0
  %v434 = vadd.f32 %v59, %v433
  %435 = vdwg.mxu0
  %v436 = vmax.f32 %v425, 0.0
  %v437 = vmax.f32 %v428, 0.0
  %v438 = vmax.f32 %v431, 0.0
  %v439 = vmax.f32 %v434, 0.0
  %440 = vmatpush.msra.mxu0 0.0
  %441 = vmatpush.msra.mxu0 0.0
  %442 = vmatpush.msra.mxu0 0.0
  %443 = vmatpush.msra.mxu0 0.0
  %444 = vmatpush.msra.mxu0 0.0
  %445 = vmatpush.msra.mxu0 0.0
  %446 = vmatpush.msra.mxu0 0.0
  %447 = vmatpush.msra.mxu0 0.0
  %448 = vmatpush.msra.mxu0 0.0
  %449 = vmatpush.msra.mxu0 0.0
  %450 = vmatpush.msra.mxu0 0.0
  %451 = vmatpush.msra.mxu0 0.0
  %452 = vmatpush.msra.mxu0 %v439
  %453 = vmatpush.msra.mxu0 %v438
  %454 = vmatpush.msra.mxu0 %v437
  %455 = vmatpush.msra.mxu0 %v436
  %456 = vmatmul.f32.gmra.mxu0 %v133
  %v457 = vpop.f32.mrf.mxu0
  %v458 = vadd.f32 %v114, %v457
  %459 = vmatmul.f32.gmra.mxu0 %v136
  %v460 = vpop.f32.mrf.mxu0
  %v461 = vadd.f32 %v119, %v460
  %462 = vmatmul.f32.gmra.mxu0 %v139
  %v463 = vpop.f32.mrf.mxu0
  %v464 = vadd.f32 %v124, %v463
  %465 = vmatmul.f32.gmra.mxu0 %v142
  %v466 = vpop.f32.mrf.mxu0
  %v467 = vadd.f32 %v129, %v466
  %468 = vdwg.mxu0
  %v469 = vmax.f32 %v394, %v458
  %v470 = vmax.f32 %v395, %v461
  %v471 = vmax.f32 %v396, %v464
  %v472 = vmax.f32 %v397, %v467
  %s473 = scalar_lea.vmem %s0, 200
  %v474 = vld [vmem:[%s473] sm:$0xff]
  %v475 = vld [vmem:[%s473 + $0x8] sm:$0xff]
  %v476 = vld [vmem:[%s473 + $0x10] sm:$0xff]
  %v477 = vld [vmem:[%s473 + $0x18] sm:$0xff]
  %v478 = vld [vmem:[%s473 + $0x20] sm:$0x7]
  %v480 = vsel %vm74, %v478, 0
  %482 = vmatpush.msra.mxu0 0.0
  %483 = vmatpush.msra.mxu0 0.0
  %484 = vmatpush.msra.mxu0 0.0
  %485 = vmatpush.msra.mxu0 0.0
  %486 = vmatpush.msra.mxu0 0.0
  %487 = vmatpush.msra.mxu0 0.0
  %488 = vmatpush.msra.mxu0 0.0
  %489 = vmatpush.msra.mxu0 0.0
  %490 = vmatpush.msra.mxu0 0.0
  %491 = vmatpush.msra.mxu0 0.0
  %492 = vmatpush.msra.mxu0 0.0
  %493 = vmatpush.msra.mxu0 %v480
  %494 = vmatpush.msra.mxu0 %v477
  %495 = vmatpush.msra.mxu0 %v476
  %496 = vmatpush.msra.mxu0 %v475
  %497 = vmatpush.msra.mxu0 %v474
  %498 = vmatmul.f32.gmra.mxu0 %v63
  %v499 = vpop.f32.mrf.mxu0
  %v500 = vadd.f32 %v44, %v499
  %501 = vmatmul.f32.gmra.mxu0 %v66
  %v502 = vpop.f32.mrf.mxu0
  %v503 = vadd.f32 %v49, %v502
  %504 = vmatmul.f32.gmra.mxu0 %v69
  %v505 = vpop.f32.mrf.mxu0
  %v506 = vadd.f32 %v54, %v505
  %507 = vmatmul.f32.gmra.mxu0 %v72
  %v508 = vpop.f32.mrf.mxu0
  %v509 = vadd.f32 %v59, %v508
  %510 = vdwg.mxu0
  %v511 = vmax.f32 %v500, 0.0
  %v512 = vmax.f32 %v503, 0.0
  %v513 = vmax.f32 %v506, 0.0
  %v514 = vmax.f32 %v509, 0.0
  %515 = vmatpush.msra.mxu0 0.0
  %516 = vmatpush.msra.mxu0 0.0
  %517 = vmatpush.msra.mxu0 0.0
  %518 = vmatpush.msra.mxu0 0.0
  %519 = vmatpush.msra.mxu0 0.0
  %520 = vmatpush.msra.mxu0 0.0
  %521 = vmatpush.msra.mxu0 0.0
  %522 = vmatpush.msra.mxu0 0.0
  %523 = vmatpush.msra.mxu0 0.0
  %524 = vmatpush.msra.mxu0 0.0
  %525 = vmatpush.msra.mxu0 0.0
  %526 = vmatpush.msra.mxu0 0.0
  %527 = vmatpush.msra.mxu0 %v514
  %528 = vmatpush.msra.mxu0 %v513
  %529 = vmatpush.msra.mxu0 %v512
  %530 = vmatpush.msra.mxu0 %v511
  %531 = vmatmul.f32.gmra.mxu0 %v133
  %v532 = vpop.f32.mrf.mxu0
  %v533 = vadd.f32 %v114, %v532
  %534 = vmatmul.f32.gmra.mxu0 %v136
  %v535 = vpop.f32.mrf.mxu0
  %v536 = vadd.f32 %v119, %v535
  %537 = vmatmul.f32.gmra.mxu0 %v139
  %v538 = vpop.f32.mrf.mxu0
  %v539 = vadd.f32 %v124, %v538
  %540 = vmatmul.f32.gmra.mxu0 %v142
  %v541 = vpop.f32.mrf.mxu0
  %v542 = vadd.f32 %v129, %v541
  %543 = vdwg.mxu0
  %v544 = vmax.f32 %v469, %v533
  %v545 = vmax.f32 %v470, %v536
  %v546 = vmax.f32 %v471, %v539
  %v547 = vmax.f32 %v472, %v542
  %s548 = scalar_lea.vmem %s0, 240
  %v549 = vld [vmem:[%s548] sm:$0xff]
  %v550 = vld [vmem:[%s548 + $0x8] sm:$0xff]
  %v551 = vld [vmem:[%s548 + $0x10] sm:$0xff]
  %v552 = vld [vmem:[%s548 + $0x18] sm:$0xff]
  %v553 = vld [vmem:[%s548 + $0x20] sm:$0x7]
  %v555 = vsel %vm74, %v553, 0
  %557 = vmatpush.msra.mxu0 0.0
  %558 = vmatpush.msra.mxu0 0.0
  %559 = vmatpush.msra.mxu0 0.0
  %560 = vmatpush.msra.mxu0 0.0
  %561 = vmatpush.msra.mxu0 0.0
  %562 = vmatpush.msra.mxu0 0.0
  %563 = vmatpush.msra.mxu0 0.0
  %564 = vmatpush.msra.mxu0 0.0
  %565 = vmatpush.msra.mxu0 0.0
  %566 = vmatpush.msra.mxu0 0.0
  %567 = vmatpush.msra.mxu0 0.0
  %568 = vmatpush.msra.mxu0 %v555
  %569 = vmatpush.msra.mxu0 %v552
  %570 = vmatpush.msra.mxu0 %v551
  %571 = vmatpush.msra.mxu0 %v550
  %572 = vmatpush.msra.mxu0 %v549
  %573 = vmatmul.f32.gmra.mxu0 %v63
  %v574 = vpop.f32.mrf.mxu0
  %v575 = vadd.f32 %v44, %v574
  %576 = vmatmul.f32.gmra.mxu0 %v66
  %v577 = vpop.f32.mrf.mxu0
  %v578 = vadd.f32 %v49, %v577
  %579 = vmatmul.f32.gmra.mxu0 %v69
  %v580 = vpop.f32.mrf.mxu0
  %v581 = vadd.f32 %v54, %v580
  %582 = vmatmul.f32.gmra.mxu0 %v72
  %v583 = vpop.f32.mrf.mxu0
  %v584 = vadd.f32 %v59, %v583
  %585 = vdwg.mxu0
  %v586 = vmax.f32 %v575, 0.0
  %v587 = vmax.f32 %v578, 0.0
  %v588 = vmax.f32 %v581, 0.0
  %v589 = vmax.f32 %v584, 0.0
  %590 = vmatpush.msra.mxu0 0.0
  %591 = vmatpush.msra.mxu0 0.0
  %592 = vmatpush.msra.mxu0 0.0
  %593 = vmatpush.msra.mxu0 0.0
  %594 = vmatpush.msra.mxu0 0.0
  %595 = vmatpush.msra.mxu0 0.0
  %596 = vmatpush.msra.mxu0 0.0
  %597 = vmatpush.msra.mxu0 0.0
  %598 = vmatpush.msra.mxu0 0.0
  %599 = vmatpush.msra.mxu0 0.0
  %600 = vmatpush.msra.mxu0 0.0
  %601 = vmatpush.msra.mxu0 0.0
  %602 = vmatpush.msra.mxu0 %v589
  %603 = vmatpush.msra.mxu0 %v588
  %604 = vmatpush.msra.mxu0 %v587
  %605 = vmatpush.msra.mxu0 %v586
  %606 = vmatmul.f32.gmra.mxu0 %v133
  %v607 = vpop.f32.mrf.mxu0
  %v608 = vadd.f32 %v114, %v607
  %609 = vmatmul.f32.gmra.mxu0 %v136
  %v610 = vpop.f32.mrf.mxu0
  %v611 = vadd.f32 %v119, %v610
  %612 = vmatmul.f32.gmra.mxu0 %v139
  %v613 = vpop.f32.mrf.mxu0
  %v614 = vadd.f32 %v124, %v613
  %615 = vmatmul.f32.gmra.mxu0 %v142
  %v616 = vpop.f32.mrf.mxu0
  %v617 = vadd.f32 %v129, %v616
  %618 = vdwg.mxu0
  %v619 = vmax.f32 %v544, %v608
  %v620 = vmax.f32 %v545, %v611
  %v621 = vmax.f32 %v546, %v614
  %v622 = vmax.f32 %v547, %v617
  %s623 = scalar_lea.vmem %s0, 280
  %v624 = vld [vmem:[%s623] sm:$0xff]
  %v625 = vld [vmem:[%s623 + $0x8] sm:$0xff]
  %v626 = vld [vmem:[%s623 + $0x10] sm:$0xff]
  %v627 = vld [vmem:[%s623 + $0x18] sm:$0xff]
  %v628 = vld [vmem:[%s623 + $0x20] sm:$0x7]
  %v630 = vsel %vm74, %v628, 0
  %632 = vmatpush.msra.mxu0 0.0
  %633 = vmatpush.msra.mxu0 0.0
  %634 = vmatpush.msra.mxu0 0.0
  %635 = vmatpush.msra.mxu0 0.0
  %636 = vmatpush.msra.mxu0 0.0
  %637 = vmatpush.msra.mxu0 0.0
  %638 = vmatpush.msra.mxu0 0.0
  %639 = vmatpush.msra.mxu0 0.0
  %640 = vmatpush.msra.mxu0 0.0
  %641 = vmatpush.msra.mxu0 0.0
  %642 = vmatpush.msra.mxu0 0.0
  %643 = vmatpush.msra.mxu0 %v630
  %644 = vmatpush.msra.mxu0 %v627
  %645 = vmatpush.msra.mxu0 %v626
  %646 = vmatpush.msra.mxu0 %v625
  %647 = vmatpush.msra.mxu0 %v624
  %648 = vmatmul.f32.gmra.mxu0 %v63
  %v649 = vpop.f32.mrf.mxu0
  %v650 = vadd.f32 %v44, %v649
  %651 = vmatmul.f32.gmra.mxu0 %v66
  %v652 = vpop.f32.mrf.mxu0
  %v653 = vadd.f32 %v49, %v652
  %654 = vmatmul.f32.gmra.mxu0 %v69
  %v655 = vpop.f32.mrf.mxu0
  %v656 = vadd.f32 %v54, %v655
  %657 = vmatmul.f32.gmra.mxu0 %v72
  %v658 = vpop.f32.mrf.mxu0
  %v659 = vadd.f32 %v59, %v658
  %660 = vdwg.mxu0
  %v661 = vmax.f32 %v650, 0.0
  %v662 = vmax.f32 %v653, 0.0
  %v663 = vmax.f32 %v656, 0.0
  %v664 = vmax.f32 %v659, 0.0
  %665 = vmatpush.msra.mxu0 0.0
  %666 = vmatpush.msra.mxu0 0.0
  %667 = vmatpush.msra.mxu0 0.0
  %668 = vmatpush.msra.mxu0 0.0
  %669 = vmatpush.msra.mxu0 0.0
  %670 = vmatpush.msra.mxu0 0.0
  %671 = vmatpush.msra.mxu0 0.0
  %672 = vmatpush.msra.mxu0 0.0
  %673 = vmatpush.msra.mxu0 0.0
  %674 = vmatpush.msra.mxu0 0.0
  %675 = vmatpush.msra.mxu0 0.0
  %676 = vmatpush.msra.mxu0 0.0
  %677 = vmatpush.msra.mxu0 %v664
  %678 = vmatpush.msra.mxu0 %v663
  %679 = vmatpush.msra.mxu0 %v662
  %680 = vmatpush.msra.mxu0 %v661
  %681 = vmatmul.f32.gmra.mxu0 %v133
  %v682 = vpop.f32.mrf.mxu0
  %v683 = vadd.f32 %v114, %v682
  %684 = vmatmul.f32.gmra.mxu0 %v136
  %v685 = vpop.f32.mrf.mxu0
  %v686 = vadd.f32 %v119, %v685
  %687 = vmatmul.f32.gmra.mxu0 %v139
  %v688 = vpop.f32.mrf.mxu0
  %v689 = vadd.f32 %v124, %v688
  %690 = vmatmul.f32.gmra.mxu0 %v142
  %v691 = vpop.f32.mrf.mxu0
  %v692 = vadd.f32 %v129, %v691
  %693 = vdwg.mxu0
  %v694 = vmax.f32 %v619, %v683
  %v695 = vmax.f32 %v620, %v686
  %v696 = vmax.f32 %v621, %v689
  %v697 = vmax.f32 %v622, %v692
  %s698 = scalar_lea.vmem %s0, 320
  %v699 = vld [vmem:[%s698] sm:$0xff]
  %v700 = vld [vmem:[%s698 + $0x8] sm:$0xff]
  %v701 = vld [vmem:[%s698 + $0x10] sm:$0xff]
  %v702 = vld [vmem:[%s698 + $0x18] sm:$0xff]
  %v703 = vld [vmem:[%s698 + $0x20] sm:$0x7]
  %v705 = vsel %vm74, %v703, 0
  %707 = vmatpush.msra.mxu0 0.0
  %708 = vmatpush.msra.mxu0 0.0
  %709 = vmatpush.msra.mxu0 0.0
  %710 = vmatpush.msra.mxu0 0.0
  %711 = vmatpush.msra.mxu0 0.0
  %712 = vmatpush.msra.mxu0 0.0
  %713 = vmatpush.msra.mxu0 0.0
  %714 = vmatpush.msra.mxu0 0.0
  %715 = vmatpush.msra.mxu0 0.0
  %716 = vmatpush.msra.mxu0 0.0
  %717 = vmatpush.msra.mxu0 0.0
  %718 = vmatpush.msra.mxu0 %v705
  %719 = vmatpush.msra.mxu0 %v702
  %720 = vmatpush.msra.mxu0 %v701
  %721 = vmatpush.msra.mxu0 %v700
  %722 = vmatpush.msra.mxu0 %v699
  %723 = vmatmul.f32.gmra.mxu0 %v63
  %v724 = vpop.f32.mrf.mxu0
  %v725 = vadd.f32 %v44, %v724
  %726 = vmatmul.f32.gmra.mxu0 %v66
  %v727 = vpop.f32.mrf.mxu0
  %v728 = vadd.f32 %v49, %v727
  %729 = vmatmul.f32.gmra.mxu0 %v69
  %v730 = vpop.f32.mrf.mxu0
  %v731 = vadd.f32 %v54, %v730
  %732 = vmatmul.f32.gmra.mxu0 %v72
  %v733 = vpop.f32.mrf.mxu0
  %v734 = vadd.f32 %v59, %v733
  %735 = vdwg.mxu0
  %v736 = vmax.f32 %v725, 0.0
  %v737 = vmax.f32 %v728, 0.0
  %v738 = vmax.f32 %v731, 0.0
  %v739 = vmax.f32 %v734, 0.0
  %740 = vmatpush.msra.mxu0 0.0
  %741 = vmatpush.msra.mxu0 0.0
  %742 = vmatpush.msra.mxu0 0.0
  %743 = vmatpush.msra.mxu0 0.0
  %744 = vmatpush.msra.mxu0 0.0
  %745 = vmatpush.msra.mxu0 0.0
  %746 = vmatpush.msra.mxu0 0.0
  %747 = vmatpush.msra.mxu0 0.0
  %748 = vmatpush.msra.mxu0 0.0
  %749 = vmatpush.msra.mxu0 0.0
  %750 = vmatpush.msra.mxu0 0.0
  %751 = vmatpush.msra.mxu0 0.0
  %752 = vmatpush.msra.mxu0 %v739
  %753 = vmatpush.msra.mxu0 %v738
  %754 = vmatpush.msra.mxu0 %v737
  %755 = vmatpush.msra.mxu0 %v736
  %756 = vmatmul.f32.gmra.mxu0 %v133
  %v757 = vpop.f32.mrf.mxu0
  %v758 = vadd.f32 %v114, %v757
  %759 = vmatmul.f32.gmra.mxu0 %v136
  %v760 = vpop.f32.mrf.mxu0
  %v761 = vadd.f32 %v119, %v760
  %762 = vmatmul.f32.gmra.mxu0 %v139
  %v763 = vpop.f32.mrf.mxu0
  %v764 = vadd.f32 %v124, %v763
  %765 = vmatmul.f32.gmra.mxu0 %v142
  %v766 = vpop.f32.mrf.mxu0
  %v767 = vadd.f32 %v129, %v766
  %768 = vdwg.mxu0
  %v769 = vmax.f32 %v694, %v758
  %v770 = vmax.f32 %v695, %v761
  %v771 = vmax.f32 %v696, %v764
  %v772 = vmax.f32 %v697, %v767
  %s773 = scalar_lea.vmem %s0, 360
  %v774 = vld [vmem:[%s773] sm:$0xff]
  %v775 = vld [vmem:[%s773 + $0x8] sm:$0xff]
  %v776 = vld [vmem:[%s773 + $0x10] sm:$0xff]
  %v777 = vld [vmem:[%s773 + $0x18] sm:$0xff]
  %v778 = vld [vmem:[%s773 + $0x20] sm:$0x7]
  %v780 = vsel %vm74, %v778, 0
  %782 = vmatpush.msra.mxu0 0.0
  %783 = vmatpush.msra.mxu0 0.0
  %784 = vmatpush.msra.mxu0 0.0
  %785 = vmatpush.msra.mxu0 0.0
  %786 = vmatpush.msra.mxu0 0.0
  %787 = vmatpush.msra.mxu0 0.0
  %788 = vmatpush.msra.mxu0 0.0
  %789 = vmatpush.msra.mxu0 0.0
  %790 = vmatpush.msra.mxu0 0.0
  %791 = vmatpush.msra.mxu0 0.0
  %792 = vmatpush.msra.mxu0 0.0
  %793 = vmatpush.msra.mxu0 %v780
  %794 = vmatpush.msra.mxu0 %v777
  %795 = vmatpush.msra.mxu0 %v776
  %796 = vmatpush.msra.mxu0 %v775
  %797 = vmatpush.msra.mxu0 %v774
  %798 = vmatmul.f32.gmra.mxu0 %v63
  %v799 = vpop.f32.mrf.mxu0
  %v800 = vadd.f32 %v44, %v799
  %801 = vmatmul.f32.gmra.mxu0 %v66
  %v802 = vpop.f32.mrf.mxu0
  %v803 = vadd.f32 %v49, %v802
  %804 = vmatmul.f32.gmra.mxu0 %v69
  %v805 = vpop.f32.mrf.mxu0
  %v806 = vadd.f32 %v54, %v805
  %807 = vmatmul.f32.gmra.mxu0 %v72
  %v808 = vpop.f32.mrf.mxu0
  %v809 = vadd.f32 %v59, %v808
  %810 = vdwg.mxu0
  %v811 = vmax.f32 %v800, 0.0
  %v812 = vmax.f32 %v803, 0.0
  %v813 = vmax.f32 %v806, 0.0
  %v814 = vmax.f32 %v809, 0.0
  %815 = vmatpush.msra.mxu0 0.0
  %816 = vmatpush.msra.mxu0 0.0
  %817 = vmatpush.msra.mxu0 0.0
  %818 = vmatpush.msra.mxu0 0.0
  %819 = vmatpush.msra.mxu0 0.0
  %820 = vmatpush.msra.mxu0 0.0
  %821 = vmatpush.msra.mxu0 0.0
  %822 = vmatpush.msra.mxu0 0.0
  %823 = vmatpush.msra.mxu0 0.0
  %824 = vmatpush.msra.mxu0 0.0
  %825 = vmatpush.msra.mxu0 0.0
  %826 = vmatpush.msra.mxu0 0.0
  %827 = vmatpush.msra.mxu0 %v814
  %828 = vmatpush.msra.mxu0 %v813
  %829 = vmatpush.msra.mxu0 %v812
  %830 = vmatpush.msra.mxu0 %v811
  %831 = vmatmul.f32.gmra.mxu0 %v133
  %v832 = vpop.f32.mrf.mxu0
  %v833 = vadd.f32 %v114, %v832
  %834 = vmatmul.f32.gmra.mxu0 %v136
  %v835 = vpop.f32.mrf.mxu0
  %v836 = vadd.f32 %v119, %v835
  %837 = vmatmul.f32.gmra.mxu0 %v139
  %v838 = vpop.f32.mrf.mxu0
  %v839 = vadd.f32 %v124, %v838
  %840 = vmatmul.f32.gmra.mxu0 %v142
  %v841 = vpop.f32.mrf.mxu0
  %v842 = vadd.f32 %v129, %v841
  %843 = vdwg.mxu0
  %v844 = vmax.f32 %v769, %v833
  %v845 = vmax.f32 %v770, %v836
  %v846 = vmax.f32 %v771, %v839
  %v847 = vmax.f32 %v772, %v842
  %s848 = scalar_lea.vmem %s0, 400
  %v849 = vld [vmem:[%s848] sm:$0xff]
  %v850 = vld [vmem:[%s848 + $0x8] sm:$0xff]
  %v851 = vld [vmem:[%s848 + $0x10] sm:$0xff]
  %v852 = vld [vmem:[%s848 + $0x18] sm:$0xff]
  %v853 = vld [vmem:[%s848 + $0x20] sm:$0x7]
  %v855 = vsel %vm74, %v853, 0
  %857 = vmatpush.msra.mxu0 0.0
  %858 = vmatpush.msra.mxu0 0.0
  %859 = vmatpush.msra.mxu0 0.0
  %860 = vmatpush.msra.mxu0 0.0
  %861 = vmatpush.msra.mxu0 0.0
  %862 = vmatpush.msra.mxu0 0.0
  %863 = vmatpush.msra.mxu0 0.0
  %864 = vmatpush.msra.mxu0 0.0
  %865 = vmatpush.msra.mxu0 0.0
  %866 = vmatpush.msra.mxu0 0.0
  %867 = vmatpush.msra.mxu0 0.0
  %868 = vmatpush.msra.mxu0 %v855
  %869 = vmatpush.msra.mxu0 %v852
  %870 = vmatpush.msra.mxu0 %v851
  %871 = vmatpush.msra.mxu0 %v850
  %872 = vmatpush.msra.mxu0 %v849
  %873 = vmatmul.f32.gmra.mxu0 %v63
  %v874 = vpop.f32.mrf.mxu0
  %v875 = vadd.f32 %v44, %v874
  %876 = vmatmul.f32.gmra.mxu0 %v66
  %v877 = vpop.f32.mrf.mxu0
  %v878 = vadd.f32 %v49, %v877
  %879 = vmatmul.f32.gmra.mxu0 %v69
  %v880 = vpop.f32.mrf.mxu0
  %v881 = vadd.f32 %v54, %v880
  %882 = vmatmul.f32.gmra.mxu0 %v72
  %v883 = vpop.f32.mrf.mxu0
  %v884 = vadd.f32 %v59, %v883
  %885 = vdwg.mxu0
  %v886 = vmax.f32 %v875, 0.0
  %v887 = vmax.f32 %v878, 0.0
  %v888 = vmax.f32 %v881, 0.0
  %v889 = vmax.f32 %v884, 0.0
  %890 = vmatpush.msra.mxu0 0.0
  %891 = vmatpush.msra.mxu0 0.0
  %892 = vmatpush.msra.mxu0 0.0
  %893 = vmatpush.msra.mxu0 0.0
  %894 = vmatpush.msra.mxu0 0.0
  %895 = vmatpush.msra.mxu0 0.0
  %896 = vmatpush.msra.mxu0 0.0
  %897 = vmatpush.msra.mxu0 0.0
  %898 = vmatpush.msra.mxu0 0.0
  %899 = vmatpush.msra.mxu0 0.0
  %900 = vmatpush.msra.mxu0 0.0
  %901 = vmatpush.msra.mxu0 0.0
  %902 = vmatpush.msra.mxu0 %v889
  %903 = vmatpush.msra.mxu0 %v888
  %904 = vmatpush.msra.mxu0 %v887
  %905 = vmatpush.msra.mxu0 %v886
  %906 = vmatmul.f32.gmra.mxu0 %v133
  %v907 = vpop.f32.mrf.mxu0
  %v908 = vadd.f32 %v114, %v907
  %909 = vmatmul.f32.gmra.mxu0 %v136
  %v910 = vpop.f32.mrf.mxu0
  %v911 = vadd.f32 %v119, %v910
  %912 = vmatmul.f32.gmra.mxu0 %v139
  %v913 = vpop.f32.mrf.mxu0
  %v914 = vadd.f32 %v124, %v913
  %915 = vmatmul.f32.gmra.mxu0 %v142
  %v916 = vpop.f32.mrf.mxu0
  %v917 = vadd.f32 %v129, %v916
  %918 = vdwg.mxu0
  %v919 = vmax.f32 %v844, %v908
  %v920 = vmax.f32 %v845, %v911
  %v921 = vmax.f32 %v846, %v914
  %v922 = vmax.f32 %v847, %v917
  %s923 = scalar_lea.vmem %s0, 440
  %v924 = vld [vmem:[%s923] sm:$0xff]
  %v925 = vld [vmem:[%s923 + $0x8] sm:$0xff]
  %v926 = vld [vmem:[%s923 + $0x10] sm:$0xff]
  %v927 = vld [vmem:[%s923 + $0x18] sm:$0xff]
  %v928 = vld [vmem:[%s923 + $0x20] sm:$0x7]
  %v930 = vsel %vm74, %v928, 0
  %932 = vmatpush.msra.mxu0 0.0
  %933 = vmatpush.msra.mxu0 0.0
  %934 = vmatpush.msra.mxu0 0.0
  %935 = vmatpush.msra.mxu0 0.0
  %936 = vmatpush.msra.mxu0 0.0
  %937 = vmatpush.msra.mxu0 0.0
  %938 = vmatpush.msra.mxu0 0.0
  %939 = vmatpush.msra.mxu0 0.0
  %940 = vmatpush.msra.mxu0 0.0
  %941 = vmatpush.msra.mxu0 0.0
  %942 = vmatpush.msra.mxu0 0.0
  %943 = vmatpush.msra.mxu0 %v930
  %944 = vmatpush.msra.mxu0 %v927
  %945 = vmatpush.msra.mxu0 %v926
  %946 = vmatpush.msra.mxu0 %v925
  %947 = vmatpush.msra.mxu0 %v924
  %948 = vmatmul.f32.gmra.mxu0 %v63
  %v949 = vpop.f32.mrf.mxu0
  %v950 = vadd.f32 %v44, %v949
  %951 = vmatmul.f32.gmra.mxu0 %v66
  %v952 = vpop.f32.mrf.mxu0
  %v953 = vadd.f32 %v49, %v952
  %954 = vmatmul.f32.gmra.mxu0 %v69
  %v955 = vpop.f32.mrf.mxu0
  %v956 = vadd.f32 %v54, %v955
  %957 = vmatmul.f32.gmra.mxu0 %v72
  %v958 = vpop.f32.mrf.mxu0
  %v959 = vadd.f32 %v59, %v958
  %960 = vdwg.mxu0
  %v961 = vmax.f32 %v950, 0.0
  %v962 = vmax.f32 %v953, 0.0
  %v963 = vmax.f32 %v956, 0.0
  %v964 = vmax.f32 %v959, 0.0
  %965 = vmatpush.msra.mxu0 0.0
  %966 = vmatpush.msra.mxu0 0.0
  %967 = vmatpush.msra.mxu0 0.0
  %968 = vmatpush.msra.mxu0 0.0
  %969 = vmatpush.msra.mxu0 0.0
  %970 = vmatpush.msra.mxu0 0.0
  %971 = vmatpush.msra.mxu0 0.0
  %972 = vmatpush.msra.mxu0 0.0
  %973 = vmatpush.msra.mxu0 0.0
  %974 = vmatpush.msra.mxu0 0.0
  %975 = vmatpush.msra.mxu0 0.0
  %976 = vmatpush.msra.mxu0 0.0
  %977 = vmatpush.msra.mxu0 %v964
  %978 = vmatpush.msra.mxu0 %v963
  %979 = vmatpush.msra.mxu0 %v962
  %980 = vmatpush.msra.mxu0 %v961
  %981 = vmatmul.f32.gmra.mxu0 %v133
  %v982 = vpop.f32.mrf.mxu0
  %v983 = vadd.f32 %v114, %v982
  %984 = vmatmul.f32.gmra.mxu0 %v136
  %v985 = vpop.f32.mrf.mxu0
  %v986 = vadd.f32 %v119, %v985
  %987 = vmatmul.f32.gmra.mxu0 %v139
  %v988 = vpop.f32.mrf.mxu0
  %v989 = vadd.f32 %v124, %v988
  %990 = vmatmul.f32.gmra.mxu0 %v142
  %v991 = vpop.f32.mrf.mxu0
  %v992 = vadd.f32 %v129, %v991
  %993 = vdwg.mxu0
  %v994 = vmax.f32 %v919, %v983
  %v995 = vmax.f32 %v920, %v986
  %v996 = vmax.f32 %v921, %v989
  %v997 = vmax.f32 %v922, %v992
  %s998 = scalar_lea.vmem %s0, 480
  %v999 = vld [vmem:[%s998] sm:$0xff]
  %v1000 = vld [vmem:[%s998 + $0x8] sm:$0xff]
  %v1001 = vld [vmem:[%s998 + $0x10] sm:$0xff]
  %v1002 = vld [vmem:[%s998 + $0x18] sm:$0xff]
  %v1003 = vld [vmem:[%s998 + $0x20] sm:$0x7]
  %v1005 = vsel %vm74, %v1003, 0
  %1007 = vmatpush.msra.mxu0 0.0
  %1008 = vmatpush.msra.mxu0 0.0
  %1009 = vmatpush.msra.mxu0 0.0
  %1010 = vmatpush.msra.mxu0 0.0
  %1011 = vmatpush.msra.mxu0 0.0
  %1012 = vmatpush.msra.mxu0 0.0
  %1013 = vmatpush.msra.mxu0 0.0
  %1014 = vmatpush.msra.mxu0 0.0
  %1015 = vmatpush.msra.mxu0 0.0
  %1016 = vmatpush.msra.mxu0 0.0
  %1017 = vmatpush.msra.mxu0 0.0
  %1018 = vmatpush.msra.mxu0 %v1005
  %1019 = vmatpush.msra.mxu0 %v1002
  %1020 = vmatpush.msra.mxu0 %v1001
  %1021 = vmatpush.msra.mxu0 %v1000
  %1022 = vmatpush.msra.mxu0 %v999
  %1023 = vmatmul.f32.gmra.mxu0 %v63
  %v1024 = vpop.f32.mrf.mxu0
  %v1025 = vadd.f32 %v44, %v1024
  %1026 = vmatmul.f32.gmra.mxu0 %v66
  %v1027 = vpop.f32.mrf.mxu0
  %v1028 = vadd.f32 %v49, %v1027
  %1029 = vmatmul.f32.gmra.mxu0 %v69
  %v1030 = vpop.f32.mrf.mxu0
  %v1031 = vadd.f32 %v54, %v1030
  %1032 = vmatmul.f32.gmra.mxu0 %v72
  %v1033 = vpop.f32.mrf.mxu0
  %v1034 = vadd.f32 %v59, %v1033
  %1035 = vdwg.mxu0
  %v1036 = vmax.f32 %v1025, 0.0
  %v1037 = vmax.f32 %v1028, 0.0
  %v1038 = vmax.f32 %v1031, 0.0
  %v1039 = vmax.f32 %v1034, 0.0
  %1040 = vmatpush.msra.mxu0 0.0
  %1041 = vmatpush.msra.mxu0 0.0
  %1042 = vmatpush.msra.mxu0 0.0
  %1043 = vmatpush.msra.mxu0 0.0
  %1044 = vmatpush.msra.mxu0 0.0
  %1045 = vmatpush.msra.mxu0 0.0
  %1046 = vmatpush.msra.mxu0 0.0
  %1047 = vmatpush.msra.mxu0 0.0
  %1048 = vmatpush.msra.mxu0 0.0
  %1049 = vmatpush.msra.mxu0 0.0
  %1050 = vmatpush.msra.mxu0 0.0
  %1051 = vmatpush.msra.mxu0 0.0
  %1052 = vmatpush.msra.mxu0 %v1039
  %1053 = vmatpush.msra.mxu0 %v1038
  %1054 = vmatpush.msra.mxu0 %v1037
  %1055 = vmatpush.msra.mxu0 %v1036
  %1056 = vmatmul.f32.gmra.mxu0 %v133
  %v1057 = vpop.f32.mrf.mxu0
  %v1058 = vadd.f32 %v114, %v1057
  %1059 = vmatmul.f32.gmra.mxu0 %v136
  %v1060 = vpop.f32.mrf.mxu0
  %v1061 = vadd.f32 %v119, %v1060
  %1062 = vmatmul.f32.gmra.mxu0 %v139
  %v1063 = vpop.f32.mrf.mxu0
  %v1064 = vadd.f32 %v124, %v1063
  %1065 = vmatmul.f32.gmra.mxu0 %v142
  %v1066 = vpop.f32.mrf.mxu0
  %v1067 = vadd.f32 %v129, %v1066
  %1068 = vdwg.mxu0
  %v1069 = vmax.f32 %v994, %v1058
  %v1070 = vmax.f32 %v995, %v1061
  %v1071 = vmax.f32 %v996, %v1064
  %v1072 = vmax.f32 %v997, %v1067
  %s1073 = scalar_lea.vmem %s0, 520
  %v1074 = vld [vmem:[%s1073] sm:$0xff]
  %v1075 = vld [vmem:[%s1073 + $0x8] sm:$0xff]
  %v1076 = vld [vmem:[%s1073 + $0x10] sm:$0xff]
  %v1077 = vld [vmem:[%s1073 + $0x18] sm:$0xff]
  %v1078 = vld [vmem:[%s1073 + $0x20] sm:$0x7]
  %v1080 = vsel %vm74, %v1078, 0
  %1082 = vmatpush.msra.mxu0 0.0
  %1083 = vmatpush.msra.mxu0 0.0
  %1084 = vmatpush.msra.mxu0 0.0
  %1085 = vmatpush.msra.mxu0 0.0
  %1086 = vmatpush.msra.mxu0 0.0
  %1087 = vmatpush.msra.mxu0 0.0
  %1088 = vmatpush.msra.mxu0 0.0
  %1089 = vmatpush.msra.mxu0 0.0
  %1090 = vmatpush.msra.mxu0 0.0
  %1091 = vmatpush.msra.mxu0 0.0
  %1092 = vmatpush.msra.mxu0 0.0
  %1093 = vmatpush.msra.mxu0 %v1080
  %1094 = vmatpush.msra.mxu0 %v1077
  %1095 = vmatpush.msra.mxu0 %v1076
  %1096 = vmatpush.msra.mxu0 %v1075
  %1097 = vmatpush.msra.mxu0 %v1074
  %1098 = vmatmul.f32.gmra.mxu0 %v63
  %v1099 = vpop.f32.mrf.mxu0
  %v1100 = vadd.f32 %v44, %v1099
  %1101 = vmatmul.f32.gmra.mxu0 %v66
  %v1102 = vpop.f32.mrf.mxu0
  %v1103 = vadd.f32 %v49, %v1102
  %1104 = vmatmul.f32.gmra.mxu0 %v69
  %v1105 = vpop.f32.mrf.mxu0
  %v1106 = vadd.f32 %v54, %v1105
  %1107 = vmatmul.f32.gmra.mxu0 %v72
  %v1108 = vpop.f32.mrf.mxu0
  %v1109 = vadd.f32 %v59, %v1108
  %1110 = vdwg.mxu0
  %v1111 = vmax.f32 %v1100, 0.0
  %v1112 = vmax.f32 %v1103, 0.0
  %v1113 = vmax.f32 %v1106, 0.0
  %v1114 = vmax.f32 %v1109, 0.0
  %1115 = vmatpush.msra.mxu0 0.0
  %1116 = vmatpush.msra.mxu0 0.0
  %1117 = vmatpush.msra.mxu0 0.0
  %1118 = vmatpush.msra.mxu0 0.0
  %1119 = vmatpush.msra.mxu0 0.0
  %1120 = vmatpush.msra.mxu0 0.0
  %1121 = vmatpush.msra.mxu0 0.0
  %1122 = vmatpush.msra.mxu0 0.0
  %1123 = vmatpush.msra.mxu0 0.0
  %1124 = vmatpush.msra.mxu0 0.0
  %1125 = vmatpush.msra.mxu0 0.0
  %1126 = vmatpush.msra.mxu0 0.0
  %1127 = vmatpush.msra.mxu0 %v1114
  %1128 = vmatpush.msra.mxu0 %v1113
  %1129 = vmatpush.msra.mxu0 %v1112
  %1130 = vmatpush.msra.mxu0 %v1111
  %1131 = vmatmul.f32.gmra.mxu0 %v133
  %v1132 = vpop.f32.mrf.mxu0
  %v1133 = vadd.f32 %v114, %v1132
  %1134 = vmatmul.f32.gmra.mxu0 %v136
  %v1135 = vpop.f32.mrf.mxu0
  %v1136 = vadd.f32 %v119, %v1135
  %1137 = vmatmul.f32.gmra.mxu0 %v139
  %v1138 = vpop.f32.mrf.mxu0
  %v1139 = vadd.f32 %v124, %v1138
  %1140 = vmatmul.f32.gmra.mxu0 %v142
  %v1141 = vpop.f32.mrf.mxu0
  %v1142 = vadd.f32 %v129, %v1141
  %1143 = vdwg.mxu0
  %v1144 = vmax.f32 %v1069, %v1133
  %v1145 = vmax.f32 %v1070, %v1136
  %v1146 = vmax.f32 %v1071, %v1139
  %v1147 = vmax.f32 %v1072, %v1142
  %s1148 = scalar_lea.vmem %s0, 560
  %v1149 = vld [vmem:[%s1148] sm:$0xff]
  %v1150 = vld [vmem:[%s1148 + $0x8] sm:$0xff]
  %v1151 = vld [vmem:[%s1148 + $0x10] sm:$0xff]
  %v1152 = vld [vmem:[%s1148 + $0x18] sm:$0xff]
  %v1153 = vld [vmem:[%s1148 + $0x20] sm:$0x7]
  %v1155 = vsel %vm74, %v1153, 0
  %1157 = vmatpush.msra.mxu0 0.0
  %1158 = vmatpush.msra.mxu0 0.0
  %1159 = vmatpush.msra.mxu0 0.0
  %1160 = vmatpush.msra.mxu0 0.0
  %1161 = vmatpush.msra.mxu0 0.0
  %1162 = vmatpush.msra.mxu0 0.0
  %1163 = vmatpush.msra.mxu0 0.0
  %1164 = vmatpush.msra.mxu0 0.0
  %1165 = vmatpush.msra.mxu0 0.0
  %1166 = vmatpush.msra.mxu0 0.0
  %1167 = vmatpush.msra.mxu0 0.0
  %1168 = vmatpush.msra.mxu0 %v1155
  %1169 = vmatpush.msra.mxu0 %v1152
  %1170 = vmatpush.msra.mxu0 %v1151
  %1171 = vmatpush.msra.mxu0 %v1150
  %1172 = vmatpush.msra.mxu0 %v1149
  %1173 = vmatmul.f32.gmra.mxu0 %v63
  %v1174 = vpop.f32.mrf.mxu0
  %v1175 = vadd.f32 %v44, %v1174
  %1176 = vmatmul.f32.gmra.mxu0 %v66
  %v1177 = vpop.f32.mrf.mxu0
  %v1178 = vadd.f32 %v49, %v1177
  %1179 = vmatmul.f32.gmra.mxu0 %v69
  %v1180 = vpop.f32.mrf.mxu0
  %v1181 = vadd.f32 %v54, %v1180
  %1182 = vmatmul.f32.gmra.mxu0 %v72
  %v1183 = vpop.f32.mrf.mxu0
  %v1184 = vadd.f32 %v59, %v1183
  %1185 = vdwg.mxu0
  %v1186 = vmax.f32 %v1175, 0.0
  %v1187 = vmax.f32 %v1178, 0.0
  %v1188 = vmax.f32 %v1181, 0.0
  %v1189 = vmax.f32 %v1184, 0.0
  %1190 = vmatpush.msra.mxu0 0.0
  %1191 = vmatpush.msra.mxu0 0.0
  %1192 = vmatpush.msra.mxu0 0.0
  %1193 = vmatpush.msra.mxu0 0.0
  %1194 = vmatpush.msra.mxu0 0.0
  %1195 = vmatpush.msra.mxu0 0.0
  %1196 = vmatpush.msra.mxu0 0.0
  %1197 = vmatpush.msra.mxu0 0.0
  %1198 = vmatpush.msra.mxu0 0.0
  %1199 = vmatpush.msra.mxu0 0.0
  %1200 = vmatpush.msra.mxu0 0.0
  %1201 = vmatpush.msra.mxu0 0.0
  %1202 = vmatpush.msra.mxu0 %v1189
  %1203 = vmatpush.msra.mxu0 %v1188
  %1204 = vmatpush.msra.mxu0 %v1187
  %1205 = vmatpush.msra.mxu0 %v1186
  %1206 = vmatmul.f32.gmra.mxu0 %v133
  %v1207 = vpop.f32.mrf.mxu0
  %v1208 = vadd.f32 %v114, %v1207
  %1209 = vmatmul.f32.gmra.mxu0 %v136
  %v1210 = vpop.f32.mrf.mxu0
  %v1211 = vadd.f32 %v119, %v1210
  %1212 = vmatmul.f32.gmra.mxu0 %v139
  %v1213 = vpop.f32.mrf.mxu0
  %v1214 = vadd.f32 %v124, %v1213
  %1215 = vmatmul.f32.gmra.mxu0 %v142
  %v1216 = vpop.f32.mrf.mxu0
  %v1217 = vadd.f32 %v129, %v1216
  %1218 = vdwg.mxu0
  %v1219 = vmax.f32 %v1144, %v1208
  %v1220 = vmax.f32 %v1145, %v1211
  %v1221 = vmax.f32 %v1146, %v1214
  %v1222 = vmax.f32 %v1147, %v1217
  %s1223 = scalar_lea.vmem %s0, 600
  %v1224 = vld [vmem:[%s1223] sm:$0xff]
  %v1225 = vld [vmem:[%s1223 + $0x8] sm:$0xff]
  %v1226 = vld [vmem:[%s1223 + $0x10] sm:$0xff]
  %v1227 = vld [vmem:[%s1223 + $0x18] sm:$0xff]
  %v1228 = vld [vmem:[%s1223 + $0x20] sm:$0x7]
  %v1230 = vsel %vm74, %v1228, 0
  %1232 = vmatpush.msra.mxu0 0.0
  %1233 = vmatpush.msra.mxu0 0.0
  %1234 = vmatpush.msra.mxu0 0.0
  %1235 = vmatpush.msra.mxu0 0.0
  %1236 = vmatpush.msra.mxu0 0.0
  %1237 = vmatpush.msra.mxu0 0.0
  %1238 = vmatpush.msra.mxu0 0.0
  %1239 = vmatpush.msra.mxu0 0.0
  %1240 = vmatpush.msra.mxu0 0.0
  %1241 = vmatpush.msra.mxu0 0.0
  %1242 = vmatpush.msra.mxu0 0.0
  %1243 = vmatpush.msra.mxu0 %v1230
  %1244 = vmatpush.msra.mxu0 %v1227
  %1245 = vmatpush.msra.mxu0 %v1226
  %1246 = vmatpush.msra.mxu0 %v1225
  %1247 = vmatpush.msra.mxu0 %v1224
  %1248 = vmatmul.f32.gmra.mxu0 %v63
  %v1249 = vpop.f32.mrf.mxu0
  %v1250 = vadd.f32 %v44, %v1249
  %1251 = vmatmul.f32.gmra.mxu0 %v66
  %v1252 = vpop.f32.mrf.mxu0
  %v1253 = vadd.f32 %v49, %v1252
  %1254 = vmatmul.f32.gmra.mxu0 %v69
  %v1255 = vpop.f32.mrf.mxu0
  %v1256 = vadd.f32 %v54, %v1255
  %1257 = vmatmul.f32.gmra.mxu0 %v72
  %v1258 = vpop.f32.mrf.mxu0
  %v1259 = vadd.f32 %v59, %v1258
  %1260 = vdwg.mxu0
  %v1261 = vmax.f32 %v1250, 0.0
  %v1262 = vmax.f32 %v1253, 0.0
  %v1263 = vmax.f32 %v1256, 0.0
  %v1264 = vmax.f32 %v1259, 0.0
  %1265 = vmatpush.msra.mxu0 0.0
  %1266 = vmatpush.msra.mxu0 0.0
  %1267 = vmatpush.msra.mxu0 0.0
  %1268 = vmatpush.msra.mxu0 0.0
  %1269 = vmatpush.msra.mxu0 0.0
  %1270 = vmatpush.msra.mxu0 0.0
  %1271 = vmatpush.msra.mxu0 0.0
  %1272 = vmatpush.msra.mxu0 0.0
  %1273 = vmatpush.msra.mxu0 0.0
  %1274 = vmatpush.msra.mxu0 0.0
  %1275 = vmatpush.msra.mxu0 0.0
  %1276 = vmatpush.msra.mxu0 0.0
  %1277 = vmatpush.msra.mxu0 %v1264
  %1278 = vmatpush.msra.mxu0 %v1263
  %1279 = vmatpush.msra.mxu0 %v1262
  %1280 = vmatpush.msra.mxu0 %v1261
  %1281 = vmatmul.f32.gmra.mxu0 %v133
  %v1282 = vpop.f32.mrf.mxu0
  %v1283 = vadd.f32 %v114, %v1282
  %1284 = vmatmul.f32.gmra.mxu0 %v136
  %v1285 = vpop.f32.mrf.mxu0
  %v1286 = vadd.f32 %v119, %v1285
  %1287 = vmatmul.f32.gmra.mxu0 %v139
  %v1288 = vpop.f32.mrf.mxu0
  %v1289 = vadd.f32 %v124, %v1288
  %1290 = vmatmul.f32.gmra.mxu0 %v142
  %v1291 = vpop.f32.mrf.mxu0
  %v1292 = vadd.f32 %v129, %v1291
  %1293 = vdwg.mxu0
  %v1294 = vmax.f32 %v1219, %v1283
  %v1295 = vmax.f32 %v1220, %v1286
  %v1296 = vmax.f32 %v1221, %v1289
  %v1297 = vmax.f32 %v1222, %v1292
  %v1298 = vmax.f32 %v1294, 0.0
  %v1299 = vmax.f32 %v1295, 0.0
  %v1300 = vmax.f32 %v1296, 0.0
  %v1301 = vmax.f32 %v1297, 0.0
  %vm1302 = vcmask 523264
  %1303 = vst.msk [vmem:[%s5] sm:$0xff] %vm1302, %v1298
  %1304 = vst.msk [vmem:[%s5 + $0x8] sm:$0xff] %vm1302, %v1299
  %1305 = vst.msk [vmem:[%s5 + $0x10] sm:$0xff] %vm1302, %v1300
  %1306 = vst.msk [vmem:[%s5 + $0x18] sm:$0xff] %vm1302, %v1301
  // Predicated region
  $region22: #{pointnet_forward.4} parent=0 // pred_check
    _
  $region23: #{pointnet_forward.4} parent=0 // pred_check_branch
    %1308 = sbr.rel (0) target = $region25
  $region24: #{pointnet_forward.4} parent=0 // pred_region
    _
  $region25: #{pointnet_forward.4} parent=0 // pred_fallthru
    _
  // Predicated region
  $region26: #{pointnet_forward.4} parent=0 // pred_check
    _
  $region27: #{pointnet_forward.4} parent=0 // pred_check_branch
    %1310 = sbr.rel (0) target = $region29
  $region28: #{pointnet_forward.4} parent=0 // pred_region
    _
  $region29: #{pointnet_forward.4} parent=0 // pred_fallthru
    _

</llo_original>
